<compile_context>
chip_gen: v6e
topology: v6e:2x2x1
jax: 0.10.0
libtpu: 0.0.40
codegen_flags: <defaults>
</compile_context>

<pallas_src>
import jax
import jax.numpy as jnp
from jax import lax
from jax.experimental import pallas as pl
from jax.experimental.pallas import tpu as pltpu

K = 10                        # Conv1d kernel_size
PAD_L = (K - 1) // 2          # 4 left (PyTorch 'same' for even kernel)
PAD_R = (K - 1) - PAD_L       # 5 right
HALO = 3 * (K - 1)            # stacked-stencil halo over the 3 convs
NUM_CLASSES = 12
NC_PAD = 128                  # lane-dense padded class dim


def _round_up(x, m):
    return (x + m - 1) // m * m


def _make_kernel(tile_l, seq_len, channels):
    TL, L, C = tile_l, seq_len, channels
    E0 = TL + 3 * (K - 1)     # latent rows per tile (window incl. halo)
    E1 = TL + 2 * (K - 1)     # x1 rows computed per tile
    E2 = TL + 1 * (K - 1)     # x2 rows computed per tile

    def kernel(xw_ref, w1_ref, b1_ref, w2_ref, b2_ref, wo_ref, bo_ref,
               out_ref, x1_sc, x2_sc):
        s = pl.program_id(1) * TL          # first output row (global) of tile

        # ---- x1 = latent + relu(conv1(latent)); row i <-> global s-8+i ------
        xin = xw_ref[...]                          # (E0, C) bf16, row i <-> s-12+i
        xin_f = xin.astype(jnp.float32)            # for the f32 residual slice
        acc1 = jnp.zeros((E1, C), jnp.float32)
        for k in range(K):                         # static unroll over taps
            p = jnp.dot(xin, w1_ref[k], preferred_element_type=jnp.float32)
            acc1 = acc1 + p[k:k + E1, :]           # f32 value slice = tap shift
        acc1 = acc1 + b1_ref[...]
        x1 = xin_f[PAD_L:PAD_L + E1, :] + jnp.maximum(acc1, 0.0)
        g1 = lax.broadcasted_iota(jnp.int32, (E1, 1), 0) + (s - 2 * PAD_L)
        x1 = jnp.where(jnp.logical_and(g1 >= 0, g1 < L), x1, 0.0)
        x1_sc[...] = x1.astype(x1_sc.dtype)        # aligned full store

        # ---- x2 = x1 + relu(conv2(x1)); row m <-> global s-4+m --------------
        x1b = x1_sc[...]                           # (E1, C) bf16, aligned load
        acc2 = jnp.zeros((E2, C), jnp.float32)
        for k in range(K):
            p = jnp.dot(x1b, w2_ref[k], preferred_element_type=jnp.float32)
            acc2 = acc2 + p[k:k + E2, :]
        acc2 = acc2 + b2_ref[...]
        x2 = x1[PAD_L:PAD_L + E2, :] + jnp.maximum(acc2, 0.0)
        g2 = lax.broadcasted_iota(jnp.int32, (E2, 1), 0) + (s - PAD_L)
        x2 = jnp.where(jnp.logical_and(g2 >= 0, g2 < L), x2, 0.0)
        x2_sc[...] = x2.astype(x2_sc.dtype)

        # ---- logits = out_conv(x2); rows [s, s+TL) ---------------------------
        x2b = x2_sc[...]                           # (E2, C) bf16
        acc3 = jnp.zeros((TL, NC_PAD), jnp.float32)
        for k in range(K):
            p = jnp.dot(x2b, wo_ref[k], preferred_element_type=jnp.float32)
            acc3 = acc3 + p[k:k + TL, :]
        acc3 = acc3 + bo_ref[...]
        out_ref[...] = acc3.astype(out_ref.dtype)

    return kernel


def promoter_segmenter_head(latent_ncl, params, *, tile_l=256):
    """latent_ncl: (B, base_dim, L) float32 -> logits (B, 12, L) float32."""
    B, C, L = latent_ncl.shape

    TL = max(16, (int(tile_l) // 16) * 16)        # 16-aligned tile length
    TL = min(TL, _round_up(L, 16))
    LT = -(-L // TL)                              # ceil(L / TL)
    E0 = TL + HALO

    # bf16 NLC feed, zero-padded (12 left / >=15 right) so every tile window is
    # in-bounds; then pre-materialize the overlapping per-tile halo windows
    # (static slices + stack -> cheap XLA concat) so BlockSpec auto-pipelining
    # does all the DMA.
    x_nlc = jnp.transpose(latent_ncl, (0, 2, 1)).astype(jnp.bfloat16)   # (B,L,C)
    pad_left = 3 * PAD_L
    pad_right = LT * TL + HALO - pad_left - L
    xpad = jnp.pad(x_nlc, ((0, 0), (pad_left, pad_right), (0, 0)))
    xw = jnp.stack([xpad[:, t * TL:t * TL + E0, :] for t in range(LT)], axis=1)
    # xw: (B, LT, E0, C); window row i of tile t <-> global row t*TL - 12 + i

    kernel = _make_kernel(TL, L, C)
    E1 = TL + 2 * (K - 1)
    E2 = TL + 1 * (K - 1)

    out = pl.pallas_call(
        kernel,
        out_shape=jax.ShapeDtypeStruct((B, LT * TL, NC_PAD), jnp.float32),
        grid_spec=pltpu.PrefetchScalarGridSpec(
            num_scalar_prefetch=0,
            grid=(B, LT),
            in_specs=[
                pl.BlockSpec((None, None, E0, C), lambda b, t: (b, t, 0, 0)),  # window
                pl.BlockSpec((K, C, C), lambda b, t: (0, 0, 0)),        # w1 (bf16)
                pl.BlockSpec((1, C), lambda b, t: (0, 0)),              # b1 (f32)
                pl.BlockSpec((K, C, C), lambda b, t: (0, 0, 0)),        # w2 (bf16)
                pl.BlockSpec((1, C), lambda b, t: (0, 0)),              # b2 (f32)
                pl.BlockSpec((K, C, NC_PAD), lambda b, t: (0, 0, 0)),   # wo (bf16)
                pl.BlockSpec((1, NC_PAD), lambda b, t: (0, 0)),         # bo (f32)
            ],
            out_specs=pl.BlockSpec((None, TL, NC_PAD), lambda b, t: (b, t, 0)),
            scratch_shapes=[
                pltpu.VMEM((E1, C), jnp.bfloat16),
                pltpu.VMEM((E2, C), jnp.bfloat16),
            ],
        ),
        compiler_params=pltpu.CompilerParams(
            dimension_semantics=("parallel", "parallel"),
            vmem_limit_bytes=64 * 1024 * 1024,
        ),
    )(xw, params["w1"], params["b1"], params["w2"], params["b2"],
      params["wo"], params["bo"])

    return jnp.transpose(out[:, :L, :NUM_CLASSES], (0, 2, 1))   # (B, 12, L)


# ---------------- deterministic parameter init (PyTorch Conv1d shapes) -------
def init_params(key, base_dim):
    ks = jax.random.split(key, 6)

    def conv_init(kw, kb, c_out, c_in):
        bound = 1.0 / jnp.sqrt(c_in * K)
        w = jax.random.uniform(kw, (c_out, c_in, K), jnp.float32, -bound, bound)
        b = jax.random.uniform(kb, (c_out,), jnp.float32, -bound, bound)
        # quantize weights to bf16 up front so kernel & f32 reference share them
        w = w.astype(jnp.bfloat16).astype(jnp.float32)
        return w, b

    w1_t, b1 = conv_init(ks[0], ks[1], base_dim, base_dim)       # torch (O, I, K)
    w2_t, b2 = conv_init(ks[2], ks[3], base_dim, base_dim)
    wo_t, bo = conv_init(ks[4], ks[5], NUM_CLASSES, base_dim)

    to_kernel = lambda w: jnp.transpose(w, (2, 1, 0))            # -> (K, Cin, Cout)
    wo_k = jnp.pad(to_kernel(wo_t), ((0, 0), (0, 0), (0, NC_PAD - NUM_CLASSES)))
    bo_p = jnp.pad(bo, (0, NC_PAD - NUM_CLASSES))

    params = {
        "w1": to_kernel(w1_t).astype(jnp.bfloat16), "b1": b1[None, :],
        "w2": to_kernel(w2_t).astype(jnp.bfloat16), "b2": b2[None, :],
        "wo": wo_k.astype(jnp.bfloat16),            "bo": bo_p[None, :],
    }
    torch_params = {"w1": w1_t, "b1": b1, "w2": w2_t, "b2": b2, "wo": wo_t, "bo": bo}
    return params, torch_params


# ---------------- pure-JAX reference (mirrors the PyTorch forward) -----------
def _conv1d_same(x_ncl, w_oik, b):
    y = lax.conv_general_dilated(
        x_ncl, w_oik, window_strides=(1,), padding=[(PAD_L, PAD_R)],
        dimension_numbers=("NCH", "OIH", "NCH"))
    return y + b[None, :, None]


def ref_forward(latent_ncl, tp):
    x = latent_ncl + jax.nn.relu(_conv1d_same(latent_ncl, tp["w1"], tp["b1"]))
    x = x + jax.nn.relu(_conv1d_same(x, tp["w2"], tp["b2"]))
    return _conv1d_same(x, tp["wo"], tp["bo"])


if __name__ == "__main__":
    B, BASE_DIM, L = 2, 32, 60

    key = jax.random.PRNGKey(0)
    k_lat, k_par = jax.random.split(key)
    # stand-in for the frozen base model's latent output: (B, base_dim, L),
    # quantized to bf16 exactly as the kernel consumes it.
    latent = 0.5 * jax.random.normal(k_lat, (B, BASE_DIM, L), jnp.float32)
    latent = latent.astype(jnp.bfloat16).astype(jnp.float32)

    params, torch_params = init_params(k_par, BASE_DIM)

    # tile_l=16 -> 4 L-tiles per batch row: exercises the halo windows,
    # boundary masking (L=60 is not a tile multiple) and multi-tile writeback.
    logits = promoter_segmenter_head(latent, params, tile_l=16)
    logits = jax.block_until_ready(logits)

    ref = jax.block_until_ready(ref_forward(latent, torch_params))
    assert logits.shape == (B, NUM_CLASSES, L)
    err = float(jnp.max(jnp.abs(logits - ref)))
    assert jnp.allclose(logits, ref, atol=2e-2, rtol=2e-2), (
        f"mismatch vs reference (max abs err {err})")

    print("KERNEL_OK")
</pallas_src>

<mosaic_0001>
module attributes {stable_mosaic.version = 11 : i64} {
  func.func @kernel(%arg0: i32, %arg1: i32, %arg2: memref<1x1x43x32xbf16, #tpu.memory_space<vmem>>, %arg3: memref<10x32x32xbf16, #tpu.memory_space<vmem>>, %arg4: memref<1x32xf32, #tpu.memory_space<vmem>>, %arg5: memref<10x32x32xbf16, #tpu.memory_space<vmem>>, %arg6: memref<1x32xf32, #tpu.memory_space<vmem>>, %arg7: memref<10x32x128xbf16, #tpu.memory_space<vmem>>, %arg8: memref<1x128xf32, #tpu.memory_space<vmem>>, %arg9: memref<1x16x128xf32, #tpu.memory_space<vmem>>, %arg10: memref<34x32xbf16, #tpu.memory_space<vmem>>, %arg11: memref<25x32xbf16, #tpu.memory_space<vmem>>) attributes {dimension_semantics = [#tpu.dimension_semantics<parallel>, #tpu.dimension_semantics<parallel>], iteration_bounds = array<i64: 2, 4>, scalar_prefetch = 0 : i64, scratch_operands = 2 : i64, tpu.core_type = #tpu.core_type<tc>, window_params = [{transform_indices = @transform_0, window_bounds = array<i64: 1, 1, 43, 32>}, {pipeline_mode = #tpu.pipeline_mode<synchronous>, transform_indices = @transform_1, window_bounds = array<i64: 10, 32, 32>}, {pipeline_mode = #tpu.pipeline_mode<synchronous>, transform_indices = @transform_2, window_bounds = array<i64: 1, 32>}, {pipeline_mode = #tpu.pipeline_mode<synchronous>, transform_indices = @transform_3, window_bounds = array<i64: 10, 32, 32>}, {pipeline_mode = #tpu.pipeline_mode<synchronous>, transform_indices = @transform_4, window_bounds = array<i64: 1, 32>}, {pipeline_mode = #tpu.pipeline_mode<synchronous>, transform_indices = @transform_5, window_bounds = array<i64: 10, 32, 128>}, {pipeline_mode = #tpu.pipeline_mode<synchronous>, transform_indices = @transform_6, window_bounds = array<i64: 1, 128>}, {transform_indices = @transform_7, window_bounds = array<i64: 1, 16, 128>}]} {
    %c16_i32 = arith.constant 16 : i32
    %0 = arith.muli %arg1, %c16_i32 : i32
    %c0 = arith.constant 0 : index
    %c0_0 = arith.constant 0 : index
    %c0_1 = arith.constant 0 : index
    %c0_2 = arith.constant 0 : index
    %1 = vector.load %arg2[%c0, %c0_0, %c0_1, %c0_2] : memref<1x1x43x32xbf16, #tpu.memory_space<vmem>>, vector<1x1x43x32xbf16>
    %2 = vector.shape_cast %1 : vector<1x1x43x32xbf16> to vector<43x32xbf16>
    %3 = arith.extf %2 : vector<43x32xbf16> to vector<43x32xf32>
    %cst = arith.constant 0.000000e+00 : f32
    %4 = vector.broadcast %cst : f32 to vector<34x32xf32>
    %c0_3 = arith.constant 0 : index
    %c0_4 = arith.constant 0 : index
    %c0_5 = arith.constant 0 : index
    %5 = vector.load %arg3[%c0_3, %c0_4, %c0_5] : memref<10x32x32xbf16, #tpu.memory_space<vmem>>, vector<1x32x32xbf16>
    %6 = vector.shape_cast %5 : vector<1x32x32xbf16> to vector<32x32xbf16>
    %cst_6 = arith.constant dense<0.000000e+00> : vector<43x32xf32>
    %7 = tpu.matmul %2, %6, %cst_6 {dimension_numbers = #tpu.dot_dimension_numbers<[1], [0], [0], [1], [0, 0, 1, 1], [], []>} : vector<43x32xbf16>, vector<32x32xbf16>, vector<43x32xf32> -> vector<43x32xf32>
    %8 = vector.extract_strided_slice %7 {offsets = [0, 0], sizes = [34, 32], strides = [1, 1]} : vector<43x32xf32> to vector<34x32xf32>
    %9 = arith.addf %4, %8 : vector<34x32xf32>
    %c1 = arith.constant 1 : index
    %c0_7 = arith.constant 0 : index
    %c0_8 = arith.constant 0 : index
    %10 = vector.load %arg3[%c1, %c0_7, %c0_8] : memref<10x32x32xbf16, #tpu.memory_space<vmem>>, vector<1x32x32xbf16>
    %11 = vector.shape_cast %10 : vector<1x32x32xbf16> to vector<32x32xbf16>
    %cst_9 = arith.constant dense<0.000000e+00> : vector<43x32xf32>
    %12 = tpu.matmul %2, %11, %cst_9 {dimension_numbers = #tpu.dot_dimension_numbers<[1], [0], [0], [1], [0, 0, 1, 1], [], []>} : vector<43x32xbf16>, vector<32x32xbf16>, vector<43x32xf32> -> vector<43x32xf32>
    %13 = vector.extract_strided_slice %12 {offsets = [1, 0], sizes = [34, 32], strides = [1, 1]} : vector<43x32xf32> to vector<34x32xf32>
    %14 = arith.addf %9, %13 : vector<34x32xf32>
    %c2 = arith.constant 2 : index
    %c0_10 = arith.constant 0 : index
    %c0_11 = arith.constant 0 : index
    %15 = vector.load %arg3[%c2, %c0_10, %c0_11] : memref<10x32x32xbf16, #tpu.memory_space<vmem>>, vector<1x32x32xbf16>
    %16 = vector.shape_cast %15 : vector<1x32x32xbf16> to vector<32x32xbf16>
    %cst_12 = arith.constant dense<0.000000e+00> : vector<43x32xf32>
    %17 = tpu.matmul %2, %16, %cst_12 {dimension_numbers = #tpu.dot_dimension_numbers<[1], [0], [0], [1], [0, 0, 1, 1], [], []>} : vector<43x32xbf16>, vector<32x32xbf16>, vector<43x32xf32> -> vector<43x32xf32>
    %18 = vector.extract_strided_slice %17 {offsets = [2, 0], sizes = [34, 32], strides = [1, 1]} : vector<43x32xf32> to vector<34x32xf32>
    %19 = arith.addf %14, %18 : vector<34x32xf32>
    %c3 = arith.constant 3 : index
    %c0_13 = arith.constant 0 : index
    %c0_14 = arith.constant 0 : index
    %20 = vector.load %arg3[%c3, %c0_13, %c0_14] : memref<10x32x32xbf16, #tpu.memory_space<vmem>>, vector<1x32x32xbf16>
    %21 = vector.shape_cast %20 : vector<1x32x32xbf16> to vector<32x32xbf16>
    %cst_15 = arith.constant dense<0.000000e+00> : vector<43x32xf32>
    %22 = tpu.matmul %2, %21, %cst_15 {dimension_numbers = #tpu.dot_dimension_numbers<[1], [0], [0], [1], [0, 0, 1, 1], [], []>} : vector<43x32xbf16>, vector<32x32xbf16>, vector<43x32xf32> -> vector<43x32xf32>
    %23 = vector.extract_strided_slice %22 {offsets = [3, 0], sizes = [34, 32], strides = [1, 1]} : vector<43x32xf32> to vector<34x32xf32>
    %24 = arith.addf %19, %23 : vector<34x32xf32>
    %c4 = arith.constant 4 : index
    %c0_16 = arith.constant 0 : index
    %c0_17 = arith.constant 0 : index
    %25 = vector.load %arg3[%c4, %c0_16, %c0_17] : memref<10x32x32xbf16, #tpu.memory_space<vmem>>, vector<1x32x32xbf16>
    %26 = vector.shape_cast %25 : vector<1x32x32xbf16> to vector<32x32xbf16>
    %cst_18 = arith.constant dense<0.000000e+00> : vector<43x32xf32>
    %27 = tpu.matmul %2, %26, %cst_18 {dimension_numbers = #tpu.dot_dimension_numbers<[1], [0], [0], [1], [0, 0, 1, 1], [], []>} : vector<43x32xbf16>, vector<32x32xbf16>, vector<43x32xf32> -> vector<43x32xf32>
    %28 = vector.extract_strided_slice %27 {offsets = [4, 0], sizes = [34, 32], strides = [1, 1]} : vector<43x32xf32> to vector<34x32xf32>
    %29 = arith.addf %24, %28 : vector<34x32xf32>
    %c5 = arith.constant 5 : index
    %c0_19 = arith.constant 0 : index
    %c0_20 = arith.constant 0 : index
    %30 = vector.load %arg3[%c5, %c0_19, %c0_20] : memref<10x32x32xbf16, #tpu.memory_space<vmem>>, vector<1x32x32xbf16>
    %31 = vector.shape_cast %30 : vector<1x32x32xbf16> to vector<32x32xbf16>
    %cst_21 = arith.constant dense<0.000000e+00> : vector<43x32xf32>
    %32 = tpu.matmul %2, %31, %cst_21 {dimension_numbers = #tpu.dot_dimension_numbers<[1], [0], [0], [1], [0, 0, 1, 1], [], []>} : vector<43x32xbf16>, vector<32x32xbf16>, vector<43x32xf32> -> vector<43x32xf32>
    %33 = vector.extract_strided_slice %32 {offsets = [5, 0], sizes = [34, 32], strides = [1, 1]} : vector<43x32xf32> to vector<34x32xf32>
    %34 = arith.addf %29, %33 : vector<34x32xf32>
    %c6 = arith.constant 6 : index
    %c0_22 = arith.constant 0 : index
    %c0_23 = arith.constant 0 : index
    %35 = vector.load %arg3[%c6, %c0_22, %c0_23] : memref<10x32x32xbf16, #tpu.memory_space<vmem>>, vector<1x32x32xbf16>
    %36 = vector.shape_cast %35 : vector<1x32x32xbf16> to vector<32x32xbf16>
    %cst_24 = arith.constant dense<0.000000e+00> : vector<43x32xf32>
    %37 = tpu.matmul %2, %36, %cst_24 {dimension_numbers = #tpu.dot_dimension_numbers<[1], [0], [0], [1], [0, 0, 1, 1], [], []>} : vector<43x32xbf16>, vector<32x32xbf16>, vector<43x32xf32> -> vector<43x32xf32>
    %38 = vector.extract_strided_slice %37 {offsets = [6, 0], sizes = [34, 32], strides = [1, 1]} : vector<43x32xf32> to vector<34x32xf32>
    %39 = arith.addf %34, %38 : vector<34x32xf32>
    %c7 = arith.constant 7 : index
    %c0_25 = arith.constant 0 : index
    %c0_26 = arith.constant 0 : index
    %40 = vector.load %arg3[%c7, %c0_25, %c0_26] : memref<10x32x32xbf16, #tpu.memory_space<vmem>>, vector<1x32x32xbf16>
    %41 = vector.shape_cast %40 : vector<1x32x32xbf16> to vector<32x32xbf16>
    %cst_27 = arith.constant dense<0.000000e+00> : vector<43x32xf32>
    %42 = tpu.matmul %2, %41, %cst_27 {dimension_numbers = #tpu.dot_dimension_numbers<[1], [0], [0], [1], [0, 0, 1, 1], [], []>} : vector<43x32xbf16>, vector<32x32xbf16>, vector<43x32xf32> -> vector<43x32xf32>
    %43 = vector.extract_strided_slice %42 {offsets = [7, 0], sizes = [34, 32], strides = [1, 1]} : vector<43x32xf32> to vector<34x32xf32>
    %44 = arith.addf %39, %43 : vector<34x32xf32>
    %c8 = arith.constant 8 : index
    %c0_28 = arith.constant 0 : index
    %c0_29 = arith.constant 0 : index
    %45 = vector.load %arg3[%c8, %c0_28, %c0_29] : memref<10x32x32xbf16, #tpu.memory_space<vmem>>, vector<1x32x32xbf16>
    %46 = vector.shape_cast %45 : vector<1x32x32xbf16> to vector<32x32xbf16>
    %cst_30 = arith.constant dense<0.000000e+00> : vector<43x32xf32>
    %47 = tpu.matmul %2, %46, %cst_30 {dimension_numbers = #tpu.dot_dimension_numbers<[1], [0], [0], [1], [0, 0, 1, 1], [], []>} : vector<43x32xbf16>, vector<32x32xbf16>, vector<43x32xf32> -> vector<43x32xf32>
    %48 = vector.extract_strided_slice %47 {offsets = [8, 0], sizes = [34, 32], strides = [1, 1]} : vector<43x32xf32> to vector<34x32xf32>
    %49 = arith.addf %44, %48 : vector<34x32xf32>
    %c9 = arith.constant 9 : index
    %c0_31 = arith.constant 0 : index
    %c0_32 = arith.constant 0 : index
    %50 = vector.load %arg3[%c9, %c0_31, %c0_32] : memref<10x32x32xbf16, #tpu.memory_space<vmem>>, vector<1x32x32xbf16>
    %51 = vector.shape_cast %50 : vector<1x32x32xbf16> to vector<32x32xbf16>
    %cst_33 = arith.constant dense<0.000000e+00> : vector<43x32xf32>
    %52 = tpu.matmul %2, %51, %cst_33 {dimension_numbers = #tpu.dot_dimension_numbers<[1], [0], [0], [1], [0, 0, 1, 1], [], []>} : vector<43x32xbf16>, vector<32x32xbf16>, vector<43x32xf32> -> vector<43x32xf32>
    %53 = vector.extract_strided_slice %52 {offsets = [9, 0], sizes = [34, 32], strides = [1, 1]} : vector<43x32xf32> to vector<34x32xf32>
    %54 = arith.addf %49, %53 : vector<34x32xf32>
    %c0_34 = arith.constant 0 : index
    %c0_35 = arith.constant 0 : index
    %55 = vector.load %arg4[%c0_34, %c0_35] : memref<1x32xf32, #tpu.memory_space<vmem>>, vector<1x32xf32>
    %56 = vector.broadcast %55 : vector<1x32xf32> to vector<34x32xf32>
    %57 = arith.addf %54, %56 : vector<34x32xf32>
    %58 = vector.extract_strided_slice %3 {offsets = [4, 0], sizes = [34, 32], strides = [1, 1]} : vector<43x32xf32> to vector<34x32xf32>
    %cst_36 = arith.constant 0.000000e+00 : f32
    %59 = vector.broadcast %cst_36 : f32 to vector<34x32xf32>
    %60 = arith.maximumf %57, %59 : vector<34x32xf32>
    %61 = arith.addf %58, %60 : vector<34x32xf32>
    %62 = tpu.iota {dimensions = array<i32: 0>} : vector<34x1xi32>
    %c8_i32 = arith.constant 8 : i32
    %63 = arith.subi %0, %c8_i32 : i32
    %64 = vector.broadcast %63 : i32 to vector<34x1xi32>
    %65 = arith.addi %62, %64 : vector<34x1xi32>
    %c0_i32 = arith.constant 0 : i32
    %66 = vector.broadcast %c0_i32 : i32 to vector<34x1xi32>
    %67 = arith.cmpi sge, %65, %66 : vector<34x1xi32>
    %c60_i32 = arith.constant 60 : i32
    %68 = vector.broadcast %c60_i32 : i32 to vector<34x1xi32>
    %69 = arith.cmpi slt, %65, %68 : vector<34x1xi32>
    %70 = arith.andi %67, %69 : vector<34x1xi1>
    %cst_37 = arith.constant 0.000000e+00 : f32
    %71 = vector.shape_cast %70 : vector<34x1xi1> to vector<34x1xi1>
    %72 = vector.broadcast %71 : vector<34x1xi1> to vector<34x32xi1>
    %73 = vector.broadcast %cst_37 : f32 to vector<34x32xf32>
    %74 = arith.select %72, %61, %73 : vector<34x32xi1>, vector<34x32xf32>
    %75 = arith.truncf %74 : vector<34x32xf32> to vector<34x32xbf16>
    %c0_38 = arith.constant 0 : index
    %c0_39 = arith.constant 0 : index
    %76 = vector.load %arg10[%c0_38, %c0_39] : memref<34x32xbf16, #tpu.memory_space<vmem>>, vector<34x32xbf16>
    tpu.vector_store %arg10[%c0_38, %c0_39], %75 {strides = array<i32>} : memref<34x32xbf16, #tpu.memory_space<vmem>>, vector<34x32xbf16>,
    %c0_40 = arith.constant 0 : index
    %c0_41 = arith.constant 0 : index
    %77 = vector.load %arg10[%c0_40, %c0_41] : memref<34x32xbf16, #tpu.memory_space<vmem>>, vector<34x32xbf16>
    %cst_42 = arith.constant 0.000000e+00 : f32
    %78 = vector.broadcast %cst_42 : f32 to vector<25x32xf32>
    %c0_43 = arith.constant 0 : index
    %c0_44 = arith.constant 0 : index
    %c0_45 = arith.constant 0 : index
    %79 = vector.load %arg5[%c0_43, %c0_44, %c0_45] : memref<10x32x32xbf16, #tpu.memory_space<vmem>>, vector<1x32x32xbf16>
    %80 = vector.shape_cast %79 : vector<1x32x32xbf16> to vector<32x32xbf16>
    %cst_46 = arith.constant dense<0.000000e+00> : vector<34x32xf32>
    %81 = tpu.matmul %77, %80, %cst_46 {dimension_numbers = #tpu.dot_dimension_numbers<[1], [0], [0], [1], [0, 0, 1, 1], [], []>} : vector<34x32xbf16>, vector<32x32xbf16>, vector<34x32xf32> -> vector<34x32xf32>
    %82 = vector.extract_strided_slice %81 {offsets = [0, 0], sizes = [25, 32], strides = [1, 1]} : vector<34x32xf32> to vector<25x32xf32>
    %83 = arith.addf %78, %82 : vector<25x32xf32>
    %c1_47 = arith.constant 1 : index
    %c0_48 = arith.constant 0 : index
    %c0_49 = arith.constant 0 : index
    %84 = vector.load %arg5[%c1_47, %c0_48, %c0_49] : memref<10x32x32xbf16, #tpu.memory_space<vmem>>, vector<1x32x32xbf16>
    %85 = vector.shape_cast %84 : vector<1x32x32xbf16> to vector<32x32xbf16>
    %cst_50 = arith.constant dense<0.000000e+00> : vector<34x32xf32>
    %86 = tpu.matmul %77, %85, %cst_50 {dimension_numbers = #tpu.dot_dimension_numbers<[1], [0], [0], [1], [0, 0, 1, 1], [], []>} : vector<34x32xbf16>, vector<32x32xbf16>, vector<34x32xf32> -> vector<34x32xf32>
    %87 = vector.extract_strided_slice %86 {offsets = [1, 0], sizes = [25, 32], strides = [1, 1]} : vector<34x32xf32> to vector<25x32xf32>
    %88 = arith.addf %83, %87 : vector<25x32xf32>
    %c2_51 = arith.constant 2 : index
    %c0_52 = arith.constant 0 : index
    %c0_53 = arith.constant 0 : index
    %89 = vector.load %arg5[%c2_51, %c0_52, %c0_53] : memref<10x32x32xbf16, #tpu.memory_space<vmem>>, vector<1x32x32xbf16>
    %90 = vector.shape_cast %89 : vector<1x32x32xbf16> to vector<32x32xbf16>
    %cst_54 = arith.constant dense<0.000000e+00> : vector<34x32xf32>
    %91 = tpu.matmul %77, %90, %cst_54 {dimension_numbers = #tpu.dot_dimension_numbers<[1], [0], [0], [1], [0, 0, 1, 1], [], []>} : vector<34x32xbf16>, vector<32x32xbf16>, vector<34x32xf32> -> vector<34x32xf32>
    %92 = vector.extract_strided_slice %91 {offsets = [2, 0], sizes = [25, 32], strides = [1, 1]} : vector<34x32xf32> to vector<25x32xf32>
    %93 = arith.addf %88, %92 : vector<25x32xf32>
    %c3_55 = arith.constant 3 : index
    %c0_56 = arith.constant 0 : index
    %c0_57 = arith.constant 0 : index
    %94 = vector.load %arg5[%c3_55, %c0_56, %c0_57] : memref<10x32x32xbf16, #tpu.memory_space<vmem>>, vector<1x32x32xbf16>
    %95 = vector.shape_cast %94 : vector<1x32x32xbf16> to vector<32x32xbf16>
    %cst_58 = arith.constant dense<0.000000e+00> : vector<34x32xf32>
    %96 = tpu.matmul %77, %95, %cst_58 {dimension_numbers = #tpu.dot_dimension_numbers<[1], [0], [0], [1], [0, 0, 1, 1], [], []>} : vector<34x32xbf16>, vector<32x32xbf16>, vector<34x32xf32> -> vector<34x32xf32>
    %97 = vector.extract_strided_slice %96 {offsets = [3, 0], sizes = [25, 32], strides = [1, 1]} : vector<34x32xf32> to vector<25x32xf32>
    %98 = arith.addf %93, %97 : vector<25x32xf32>
    %c4_59 = arith.constant 4 : index
    %c0_60 = arith.constant 0 : index
    %c0_61 = arith.constant 0 : index
    %99 = vector.load %arg5[%c4_59, %c0_60, %c0_61] : memref<10x32x32xbf16, #tpu.memory_space<vmem>>, vector<1x32x32xbf16>
    %100 = vector.shape_cast %99 : vector<1x32x32xbf16> to vector<32x32xbf16>
    %cst_62 = arith.constant dense<0.000000e+00> : vector<34x32xf32>
    %101 = tpu.matmul %77, %100, %cst_62 {dimension_numbers = #tpu.dot_dimension_numbers<[1], [0], [0], [1], [0, 0, 1, 1], [], []>} : vector<34x32xbf16>, vector<32x32xbf16>, vector<34x32xf32> -> vector<34x32xf32>
    %102 = vector.extract_strided_slice %101 {offsets = [4, 0], sizes = [25, 32], strides = [1, 1]} : vector<34x32xf32> to vector<25x32xf32>
    %103 = arith.addf %98, %102 : vector<25x32xf32>
    %c5_63 = arith.constant 5 : index
    %c0_64 = arith.constant 0 : index
    %c0_65 = arith.constant 0 : index
    %104 = vector.load %arg5[%c5_63, %c0_64, %c0_65] : memref<10x32x32xbf16, #tpu.memory_space<vmem>>, vector<1x32x32xbf16>
    %105 = vector.shape_cast %104 : vector<1x32x32xbf16> to vector<32x32xbf16>
    %cst_66 = arith.constant dense<0.000000e+00> : vector<34x32xf32>
    %106 = tpu.matmul %77, %105, %cst_66 {dimension_numbers = #tpu.dot_dimension_numbers<[1], [0], [0], [1], [0, 0, 1, 1], [], []>} : vector<34x32xbf16>, vector<32x32xbf16>, vector<34x32xf32> -> vector<34x32xf32>
    %107 = vector.extract_strided_slice %106 {offsets = [5, 0], sizes = [25, 32], strides = [1, 1]} : vector<34x32xf32> to vector<25x32xf32>
    %108 = arith.addf %103, %107 : vector<25x32xf32>
    %c6_67 = arith.constant 6 : index
    %c0_68 = arith.constant 0 : index
    %c0_69 = arith.constant 0 : index
    %109 = vector.load %arg5[%c6_67, %c0_68, %c0_69] : memref<10x32x32xbf16, #tpu.memory_space<vmem>>, vector<1x32x32xbf16>
    %110 = vector.shape_cast %109 : vector<1x32x32xbf16> to vector<32x32xbf16>
    %cst_70 = arith.constant dense<0.000000e+00> : vector<34x32xf32>
    %111 = tpu.matmul %77, %110, %cst_70 {dimension_numbers = #tpu.dot_dimension_numbers<[1], [0], [0], [1], [0, 0, 1, 1], [], []>} : vector<34x32xbf16>, vector<32x32xbf16>, vector<34x32xf32> -> vector<34x32xf32>
    %112 = vector.extract_strided_slice %111 {offsets = [6, 0], sizes = [25, 32], strides = [1, 1]} : vector<34x32xf32> to vector<25x32xf32>
    %113 = arith.addf %108, %112 : vector<25x32xf32>
    %c7_71 = arith.constant 7 : index
    %c0_72 = arith.constant 0 : index
    %c0_73 = arith.constant 0 : index
    %114 = vector.load %arg5[%c7_71, %c0_72, %c0_73] : memref<10x32x32xbf16, #tpu.memory_space<vmem>>, vector<1x32x32xbf16>
    %115 = vector.shape_cast %114 : vector<1x32x32xbf16> to vector<32x32xbf16>
    %cst_74 = arith.constant dense<0.000000e+00> : vector<34x32xf32>
    %116 = tpu.matmul %77, %115, %cst_74 {dimension_numbers = #tpu.dot_dimension_numbers<[1], [0], [0], [1], [0, 0, 1, 1], [], []>} : vector<34x32xbf16>, vector<32x32xbf16>, vector<34x32xf32> -> vector<34x32xf32>
    %117 = vector.extract_strided_slice %116 {offsets = [7, 0], sizes = [25, 32], strides = [1, 1]} : vector<34x32xf32> to vector<25x32xf32>
    %118 = arith.addf %113, %117 : vector<25x32xf32>
    %c8_75 = arith.constant 8 : index
    %c0_76 = arith.constant 0 : index
    %c0_77 = arith.constant 0 : index
    %119 = vector.load %arg5[%c8_75, %c0_76, %c0_77] : memref<10x32x32xbf16, #tpu.memory_space<vmem>>, vector<1x32x32xbf16>
    %120 = vector.shape_cast %119 : vector<1x32x32xbf16> to vector<32x32xbf16>
    %cst_78 = arith.constant dense<0.000000e+00> : vector<34x32xf32>
    %121 = tpu.matmul %77, %120, %cst_78 {dimension_numbers = #tpu.dot_dimension_numbers<[1], [0], [0], [1], [0, 0, 1, 1], [], []>} : vector<34x32xbf16>, vector<32x32xbf16>, vector<34x32xf32> -> vector<34x32xf32>
    %122 = vector.extract_strided_slice %121 {offsets = [8, 0], sizes = [25, 32], strides = [1, 1]} : vector<34x32xf32> to vector<25x32xf32>
    %123 = arith.addf %118, %122 : vector<25x32xf32>
    %c9_79 = arith.constant 9 : index
    %c0_80 = arith.constant 0 : index
    %c0_81 = arith.constant 0 : index
    %124 = vector.load %arg5[%c9_79, %c0_80, %c0_81] : memref<10x32x32xbf16, #tpu.memory_space<vmem>>, vector<1x32x32xbf16>
    %125 = vector.shape_cast %124 : vector<1x32x32xbf16> to vector<32x32xbf16>
    %cst_82 = arith.constant dense<0.000000e+00> : vector<34x32xf32>
    %126 = tpu.matmul %77, %125, %cst_82 {dimension_numbers = #tpu.dot_dimension_numbers<[1], [0], [0], [1], [0, 0, 1, 1], [], []>} : vector<34x32xbf16>, vector<32x32xbf16>, vector<34x32xf32> -> vector<34x32xf32>
    %127 = vector.extract_strided_slice %126 {offsets = [9, 0], sizes = [25, 32], strides = [1, 1]} : vector<34x32xf32> to vector<25x32xf32>
    %128 = arith.addf %123, %127 : vector<25x32xf32>
    %c0_83 = arith.constant 0 : index
    %c0_84 = arith.constant 0 : index
    %129 = vector.load %arg6[%c0_83, %c0_84] : memref<1x32xf32, #tpu.memory_space<vmem>>, vector<1x32xf32>
    %130 = vector.broadcast %129 : vector<1x32xf32> to vector<25x32xf32>
    %131 = arith.addf %128, %130 : vector<25x32xf32>
    %132 = vector.extract_strided_slice %74 {offsets = [4, 0], sizes = [25, 32], strides = [1, 1]} : vector<34x32xf32> to vector<25x32xf32>
    %cst_85 = arith.constant 0.000000e+00 : f32
    %133 = vector.broadcast %cst_85 : f32 to vector<25x32xf32>
    %134 = arith.maximumf %131, %133 : vector<25x32xf32>
    %135 = arith.addf %132, %134 : vector<25x32xf32>
    %136 = tpu.iota {dimensions = array<i32: 0>} : vector<25x1xi32>
    %c4_i32 = arith.constant 4 : i32
    %137 = arith.subi %0, %c4_i32 : i32
    %138 = vector.broadcast %137 : i32 to vector<25x1xi32>
    %139 = arith.addi %136, %138 : vector<25x1xi32>
    %c0_i32_86 = arith.constant 0 : i32
    %140 = vector.broadcast %c0_i32_86 : i32 to vector<25x1xi32>
    %141 = arith.cmpi sge, %139, %140 : vector<25x1xi32>
    %c60_i32_87 = arith.constant 60 : i32
    %142 = vector.broadcast %c60_i32_87 : i32 to vector<25x1xi32>
    %143 = arith.cmpi slt, %139, %142 : vector<25x1xi32>
    %144 = arith.andi %141, %143 : vector<25x1xi1>
    %cst_88 = arith.constant 0.000000e+00 : f32
    %145 = vector.shape_cast %144 : vector<25x1xi1> to vector<25x1xi1>
    %146 = vector.broadcast %145 : vector<25x1xi1> to vector<25x32xi1>
    %147 = vector.broadcast %cst_88 : f32 to vector<25x32xf32>
    %148 = arith.select %146, %135, %147 : vector<25x32xi1>, vector<25x32xf32>
    %149 = arith.truncf %148 : vector<25x32xf32> to vector<25x32xbf16>
    %c0_89 = arith.constant 0 : index
    %c0_90 = arith.constant 0 : index
    %150 = vector.load %arg11[%c0_89, %c0_90] : memref<25x32xbf16, #tpu.memory_space<vmem>>, vector<25x32xbf16>
    tpu.vector_store %arg11[%c0_89, %c0_90], %149 {strides = array<i32>} : memref<25x32xbf16, #tpu.memory_space<vmem>>, vector<25x32xbf16>,
    %c0_91 = arith.constant 0 : index
    %c0_92 = arith.constant 0 : index
    %151 = vector.load %arg11[%c0_91, %c0_92] : memref<25x32xbf16, #tpu.memory_space<vmem>>, vector<25x32xbf16>
    %cst_93 = arith.constant 0.000000e+00 : f32
    %152 = vector.broadcast %cst_93 : f32 to vector<16x128xf32>
    %c0_94 = arith.constant 0 : index
    %c0_95 = arith.constant 0 : index
    %c0_96 = arith.constant 0 : index
    %153 = vector.load %arg7[%c0_94, %c0_95, %c0_96] : memref<10x32x128xbf16, #tpu.memory_space<vmem>>, vector<1x32x128xbf16>
    %154 = vector.shape_cast %153 : vector<1x32x128xbf16> to vector<32x128xbf16>
    %cst_97 = arith.constant dense<0.000000e+00> : vector<25x128xf32>
    %155 = tpu.matmul %151, %154, %cst_97 {dimension_numbers = #tpu.dot_dimension_numbers<[1], [0], [0], [1], [0, 0, 1, 1], [], []>} : vector<25x32xbf16>, vector<32x128xbf16>, vector<25x128xf32> -> vector<25x128xf32>
    %156 = vector.extract_strided_slice %155 {offsets = [0, 0], sizes = [16, 128], strides = [1, 1]} : vector<25x128xf32> to vector<16x128xf32>
    %157 = arith.addf %152, %156 : vector<16x128xf32>
    %c1_98 = arith.constant 1 : index
    %c0_99 = arith.constant 0 : index
    %c0_100 = arith.constant 0 : index
    %158 = vector.load %arg7[%c1_98, %c0_99, %c0_100] : memref<10x32x128xbf16, #tpu.memory_space<vmem>>, vector<1x32x128xbf16>
    %159 = vector.shape_cast %158 : vector<1x32x128xbf16> to vector<32x128xbf16>
    %cst_101 = arith.constant dense<0.000000e+00> : vector<25x128xf32>
    %160 = tpu.matmul %151, %159, %cst_101 {dimension_numbers = #tpu.dot_dimension_numbers<[1], [0], [0], [1], [0, 0, 1, 1], [], []>} : vector<25x32xbf16>, vector<32x128xbf16>, vector<25x128xf32> -> vector<25x128xf32>
    %161 = vector.extract_strided_slice %160 {offsets = [1, 0], sizes = [16, 128], strides = [1, 1]} : vector<25x128xf32> to vector<16x128xf32>
    %162 = arith.addf %157, %161 : vector<16x128xf32>
    %c2_102 = arith.constant 2 : index
    %c0_103 = arith.constant 0 : index
    %c0_104 = arith.constant 0 : index
    %163 = vector.load %arg7[%c2_102, %c0_103, %c0_104] : memref<10x32x128xbf16, #tpu.memory_space<vmem>>, vector<1x32x128xbf16>
    %164 = vector.shape_cast %163 : vector<1x32x128xbf16> to vector<32x128xbf16>
    %cst_105 = arith.constant dense<0.000000e+00> : vector<25x128xf32>
    %165 = tpu.matmul %151, %164, %cst_105 {dimension_numbers = #tpu.dot_dimension_numbers<[1], [0], [0], [1], [0, 0, 1, 1], [], []>} : vector<25x32xbf16>, vector<32x128xbf16>, vector<25x128xf32> -> vector<25x128xf32>
    %166 = vector.extract_strided_slice %165 {offsets = [2, 0], sizes = [16, 128], strides = [1, 1]} : vector<25x128xf32> to vector<16x128xf32>
    %167 = arith.addf %162, %166 : vector<16x128xf32>
    %c3_106 = arith.constant 3 : index
    %c0_107 = arith.constant 0 : index
    %c0_108 = arith.constant 0 : index
    %168 = vector.load %arg7[%c3_106, %c0_107, %c0_108] : memref<10x32x128xbf16, #tpu.memory_space<vmem>>, vector<1x32x128xbf16>
    %169 = vector.shape_cast %168 : vector<1x32x128xbf16> to vector<32x128xbf16>
    %cst_109 = arith.constant dense<0.000000e+00> : vector<25x128xf32>
    %170 = tpu.matmul %151, %169, %cst_109 {dimension_numbers = #tpu.dot_dimension_numbers<[1], [0], [0], [1], [0, 0, 1, 1], [], []>} : vector<25x32xbf16>, vector<32x128xbf16>, vector<25x128xf32> -> vector<25x128xf32>
    %171 = vector.extract_strided_slice %170 {offsets = [3, 0], sizes = [16, 128], strides = [1, 1]} : vector<25x128xf32> to vector<16x128xf32>
    %172 = arith.addf %167, %171 : vector<16x128xf32>
    %c4_110 = arith.constant 4 : index
    %c0_111 = arith.constant 0 : index
    %c0_112 = arith.constant 0 : index
    %173 = vector.load %arg7[%c4_110, %c0_111, %c0_112] : memref<10x32x128xbf16, #tpu.memory_space<vmem>>, vector<1x32x128xbf16>
    %174 = vector.shape_cast %173 : vector<1x32x128xbf16> to vector<32x128xbf16>
    %cst_113 = arith.constant dense<0.000000e+00> : vector<25x128xf32>
    %175 = tpu.matmul %151, %174, %cst_113 {dimension_numbers = #tpu.dot_dimension_numbers<[1], [0], [0], [1], [0, 0, 1, 1], [], []>} : vector<25x32xbf16>, vector<32x128xbf16>, vector<25x128xf32> -> vector<25x128xf32>
    %176 = vector.extract_strided_slice %175 {offsets = [4, 0], sizes = [16, 128], strides = [1, 1]} : vector<25x128xf32> to vector<16x128xf32>
    %177 = arith.addf %172, %176 : vector<16x128xf32>
    %c5_114 = arith.constant 5 : index
    %c0_115 = arith.constant 0 : index
    %c0_116 = arith.constant 0 : index
    %178 = vector.load %arg7[%c5_114, %c0_115, %c0_116] : memref<10x32x128xbf16, #tpu.memory_space<vmem>>, vector<1x32x128xbf16>
    %179 = vector.shape_cast %178 : vector<1x32x128xbf16> to vector<32x128xbf16>
    %cst_117 = arith.constant dense<0.000000e+00> : vector<25x128xf32>
    %180 = tpu.matmul %151, %179, %cst_117 {dimension_numbers = #tpu.dot_dimension_numbers<[1], [0], [0], [1], [0, 0, 1, 1], [], []>} : vector<25x32xbf16>, vector<32x128xbf16>, vector<25x128xf32> -> vector<25x128xf32>
    %181 = vector.extract_strided_slice %180 {offsets = [5, 0], sizes = [16, 128], strides = [1, 1]} : vector<25x128xf32> to vector<16x128xf32>
    %182 = arith.addf %177, %181 : vector<16x128xf32>
    %c6_118 = arith.constant 6 : index
    %c0_119 = arith.constant 0 : index
    %c0_120 = arith.constant 0 : index
    %183 = vector.load %arg7[%c6_118, %c0_119, %c0_120] : memref<10x32x128xbf16, #tpu.memory_space<vmem>>, vector<1x32x128xbf16>
    %184 = vector.shape_cast %183 : vector<1x32x128xbf16> to vector<32x128xbf16>
    %cst_121 = arith.constant dense<0.000000e+00> : vector<25x128xf32>
    %185 = tpu.matmul %151, %184, %cst_121 {dimension_numbers = #tpu.dot_dimension_numbers<[1], [0], [0], [1], [0, 0, 1, 1], [], []>} : vector<25x32xbf16>, vector<32x128xbf16>, vector<25x128xf32> -> vector<25x128xf32>
    %186 = vector.extract_strided_slice %185 {offsets = [6, 0], sizes = [16, 128], strides = [1, 1]} : vector<25x128xf32> to vector<16x128xf32>
    %187 = arith.addf %182, %186 : vector<16x128xf32>
    %c7_122 = arith.constant 7 : index
    %c0_123 = arith.constant 0 : index
    %c0_124 = arith.constant 0 : index
    %188 = vector.load %arg7[%c7_122, %c0_123, %c0_124] : memref<10x32x128xbf16, #tpu.memory_space<vmem>>, vector<1x32x128xbf16>
    %189 = vector.shape_cast %188 : vector<1x32x128xbf16> to vector<32x128xbf16>
    %cst_125 = arith.constant dense<0.000000e+00> : vector<25x128xf32>
    %190 = tpu.matmul %151, %189, %cst_125 {dimension_numbers = #tpu.dot_dimension_numbers<[1], [0], [0], [1], [0, 0, 1, 1], [], []>} : vector<25x32xbf16>, vector<32x128xbf16>, vector<25x128xf32> -> vector<25x128xf32>
    %191 = vector.extract_strided_slice %190 {offsets = [7, 0], sizes = [16, 128], strides = [1, 1]} : vector<25x128xf32> to vector<16x128xf32>
    %192 = arith.addf %187, %191 : vector<16x128xf32>
    %c8_126 = arith.constant 8 : index
    %c0_127 = arith.constant 0 : index
    %c0_128 = arith.constant 0 : index
    %193 = vector.load %arg7[%c8_126, %c0_127, %c0_128] : memref<10x32x128xbf16, #tpu.memory_space<vmem>>, vector<1x32x128xbf16>
    %194 = vector.shape_cast %193 : vector<1x32x128xbf16> to vector<32x128xbf16>
    %cst_129 = arith.constant dense<0.000000e+00> : vector<25x128xf32>
    %195 = tpu.matmul %151, %194, %cst_129 {dimension_numbers = #tpu.dot_dimension_numbers<[1], [0], [0], [1], [0, 0, 1, 1], [], []>} : vector<25x32xbf16>, vector<32x128xbf16>, vector<25x128xf32> -> vector<25x128xf32>
    %196 = vector.extract_strided_slice %195 {offsets = [8, 0], sizes = [16, 128], strides = [1, 1]} : vector<25x128xf32> to vector<16x128xf32>
    %197 = arith.addf %192, %196 : vector<16x128xf32>
    %c9_130 = arith.constant 9 : index
    %c0_131 = arith.constant 0 : index
    %c0_132 = arith.constant 0 : index
    %198 = vector.load %arg7[%c9_130, %c0_131, %c0_132] : memref<10x32x128xbf16, #tpu.memory_space<vmem>>, vector<1x32x128xbf16>
    %199 = vector.shape_cast %198 : vector<1x32x128xbf16> to vector<32x128xbf16>
    %cst_133 = arith.constant dense<0.000000e+00> : vector<25x128xf32>
    %200 = tpu.matmul %151, %199, %cst_133 {dimension_numbers = #tpu.dot_dimension_numbers<[1], [0], [0], [1], [0, 0, 1, 1], [], []>} : vector<25x32xbf16>, vector<32x128xbf16>, vector<25x128xf32> -> vector<25x128xf32>
    %201 = vector.extract_strided_slice %200 {offsets = [9, 0], sizes = [16, 128], strides = [1, 1]} : vector<25x128xf32> to vector<16x128xf32>
    %202 = arith.addf %197, %201 : vector<16x128xf32>
    %c0_134 = arith.constant 0 : index
    %c0_135 = arith.constant 0 : index
    %203 = vector.load %arg8[%c0_134, %c0_135] : memref<1x128xf32, #tpu.memory_space<vmem>>, vector<1x128xf32>
    %204 = vector.broadcast %203 : vector<1x128xf32> to vector<16x128xf32>
    %205 = arith.addf %202, %204 : vector<16x128xf32>
    %c0_136 = arith.constant 0 : index
    %c0_137 = arith.constant 0 : index
    %c0_138 = arith.constant 0 : index
    %206 = vector.load %arg9[%c0_136, %c0_137, %c0_138] : memref<1x16x128xf32, #tpu.memory_space<vmem>>, vector<1x16x128xf32>
    %207 = vector.shape_cast %206 : vector<1x16x128xf32> to vector<16x128xf32>
    %208 = vector.shape_cast %205 : vector<16x128xf32> to vector<1x16x128xf32>
    tpu.vector_store %arg9[%c0_136, %c0_137, %c0_138], %208 {strides = array<i32>} : memref<1x16x128xf32, #tpu.memory_space<vmem>>, vector<1x16x128xf32>,
    return
  }
  func.func @transform_0(%arg0: i32, %arg1: i32) -> (i32, i32, i32, i32) {
    %c0_i32 = arith.constant 0 : i32
    %c0_i32_0 = arith.constant 0 : i32
    %c0_i32_1 = arith.constant 0 : i32
    return %arg0, %arg1, %c0_i32, %c0_i32_0 : i32, i32, i32, i32
  }
  func.func @transform_1(%arg0: i32, %arg1: i32) -> (i32, i32, i32) {
    %c0_i32 = arith.constant 0 : i32
    %c0_i32_0 = arith.constant 0 : i32
    %c0_i32_1 = arith.constant 0 : i32
    %c0_i32_2 = arith.constant 0 : i32
    return %c0_i32, %c0_i32_0, %c0_i32_1 : i32, i32, i32
  }
  func.func @transform_2(%arg0: i32, %arg1: i32) -> (i32, i32) {
    %c0_i32 = arith.constant 0 : i32
    %c0_i32_0 = arith.constant 0 : i32
    %c0_i32_1 = arith.constant 0 : i32
    return %c0_i32, %c0_i32_0 : i32, i32
  }
  func.func @transform_3(%arg0: i32, %arg1: i32) -> (i32, i32, i32) {
    %c0_i32 = arith.constant 0 : i32
    %c0_i32_0 = arith.constant 0 : i32
    %c0_i32_1 = arith.constant 0 : i32
    %c0_i32_2 = arith.constant 0 : i32
    return %c0_i32, %c0_i32_0, %c0_i32_1 : i32, i32, i32
  }
  func.func @transform_4(%arg0: i32, %arg1: i32) -> (i32, i32) {
    %c0_i32 = arith.constant 0 : i32
    %c0_i32_0 = arith.constant 0 : i32
    %c0_i32_1 = arith.constant 0 : i32
    return %c0_i32, %c0_i32_0 : i32, i32
  }
  func.func @transform_5(%arg0: i32, %arg1: i32) -> (i32, i32, i32) {
    %c0_i32 = arith.constant 0 : i32
    %c0_i32_0 = arith.constant 0 : i32
    %c0_i32_1 = arith.constant 0 : i32
    %c0_i32_2 = arith.constant 0 : i32
    return %c0_i32, %c0_i32_0, %c0_i32_1 : i32, i32, i32
  }
  func.func @transform_6(%arg0: i32, %arg1: i32) -> (i32, i32) {
    %c0_i32 = arith.constant 0 : i32
    %c0_i32_0 = arith.constant 0 : i32
    %c0_i32_1 = arith.constant 0 : i32
    return %c0_i32, %c0_i32_0 : i32, i32
  }
  func.func @transform_7(%arg0: i32, %arg1: i32) -> (i32, i32, i32) {
    %c0_i32 = arith.constant 0 : i32
    %c0_i32_0 = arith.constant 0 : i32
    return %arg0, %arg1, %c0_i32 : i32, i32, i32
  }
}

</mosaic_0001>

<llo_original>
// kernel: tpu_custom_call.1
$region0: #{tpu_custom_call.1}
  #allocation0 [shape = 'u32[]', space=smem, size = 0x4, offset = 0x4, fixed_abs, tag = 'smem constant byte address 0x4 - core index']
  #allocation1 [shape = 'u32[144,128]{1,0:T(1,128)}', space=vmem, size = 0x12000, scoped, tag = 'internal scratch']
  #allocation2 [shape = 'bf16[34,32]{1,0:T(8,128)(2,1)}', space=vmem, size = 0x2800, scoped, tag = 'scratch operand']
  #allocation3 [shape = 'bf16[25,32]{1,0:T(8,128)(2,1)}', space=vmem, size = 0x2000, scoped, tag = 'scratch operand']
  %s0 = inlined_call_operand.vmem [shape: bf16[2,4,43,32], index: 0, kind: input, shape index: {}]
  %s1 = inlined_call_operand.vmem [shape: bf16[10,32,32], index: 1, kind: input, shape index: {}]
  %s2 = inlined_call_operand.vmem [shape: f32[1,32], index: 2, kind: input, shape index: {}]
  %s3 = inlined_call_operand.vmem [shape: bf16[10,32,32], index: 3, kind: input, shape index: {}]
  %s4 = inlined_call_operand.vmem [shape: f32[1,32], index: 4, kind: input, shape index: {}]
  %s5 = inlined_call_operand.hbm [shape: bf16[10,32,128], index: 5, kind: input, shape index: {}]
  %s6 = inlined_call_operand.vmem [shape: f32[1,128], index: 6, kind: input, shape index: {}]
  %s7 = inlined_call_operand.hbm [shape: f32[2,64,128], index: 7, kind: output, shape index: {}]
  %s8 = sld [smem:[#allocation0]]
  $region65: #{tpu_custom_call.1} parent=0
    _
  %s10 = ssub.s32 1, %s8
  %s11 = scalar_select 0, %s10, %s8
  $region1: #{tpu_custom_call.1} parent=0
    #allocation4 [shape = 'u8[81920]{0}', space=vmem, size = 0x14000, scoped, tag = 'input window, operand 5, single buffered']
    #allocation5 [shape = 's32[2]{0}', space=sflag, size = 0x8, scoped, tag = 'scoped memory for tpu_custom_call.1']
    #allocation6 [shape = 's32[2]{0}', space=sflag, size = 0x8, scoped, tag = 'scoped memory for tpu_custom_call.1']
    #allocation7 [shape = 'u8[16384]{0}', space=vmem, size = 0x4000, scoped, tag = 'output window, operand 0']
    %12 = vsyncpa [#allocation5], 0
    %13 = vsyncpa [#allocation6], 0
    %s14 = scalar_lea.sflag [#allocation6], 1
    %15 = vsyncpa %s14, 0
    loop: start=0, step=1, limit=10
    $region2: #{tpu_custom_call.1} parent=1 // loop_pre_header
      _
    $region3: #{tpu_custom_call.1} parent=1 // loop_header
      %s17 = sphi 0, %s21
      %p18 = scmp.ge.s32.totalorder %s17, 10
      %s24 = sphi 0, %s36
      %s25 = sphi 0, %s32
      %s26 = sphi 0, %s24
      %s27 = sphi 0, %s25
      %s28 = sphi 0, %s26
      %s29 = sphi 0, %s27
      %s41 = sphi 0, %s43
      %s44 = sphi 0, %s41
      %s45 = sphi 0, %s44
      %s61 = sphi 0, %s45
      %s65 = sphi 0, %s65
      %s67 = sphi 0, %s65
      %s68 = sphi 0, %s67
      %s82 = sphi 0, %s68
      %s86 = sphi 0, %s86
      %s88 = sphi 0, %s86
      %s89 = sphi 0, %s88
      %s103 = sphi 0, %s89
      %s107 = sphi 0, %s107
      %s109 = sphi 0, %s107
      %s110 = sphi 0, %s109
      %s124 = sphi 0, %s110
      %s128 = sphi 0, %s128
      %s130 = sphi 0, %s128
      %s131 = sphi 0, %s130
      %s145 = sphi 0, %s131
      %s149 = sphi 0, %s149
      %s151 = sphi 0, %s149
      %s152 = sphi 0, %s151
      %s166 = sphi 0, %s152
      %s170 = sphi 0, %s170
      %s172 = sphi 0, %s170
      %s173 = sphi 0, %s172
      %s187 = sphi 0, %s173
      %s195 = sphi 0, %s197
      %s198 = sphi 0, %s195
      %s199 = sphi 0, %s198
      %s215 = sphi 0, %s199
    $region4: #{tpu_custom_call.1} parent=1 // loop_header_branch
      %20 = sbr.rel (%p18) target = $region8
    $region5: #{tpu_custom_call.1} parent=1 // loop_body
      %s22 = ssub.s32 %s17, 1
      %s23 = ssub.s32 %s17, 2
      %s30 = sadd.s32 1, %s25
      %p31 = scmp.ge.s32.totalorder %s30, 4
      %s32 = scalar_select %p31, 0, %s30
      %s33 = sadd.s32 1, %s24
      %s34 = scalar_select %p31, %s33, %s24
      %p35 = scmp.ge.s32.totalorder %s34, 2
      %s36 = scalar_select %p35, 0, %s34
      %s37 = ssub.s32 %s24, %s36
      %s38 = ssub.s32 %s25, %s32
      %s39 = sor.u32 %s37, %s38
      %p40 = scmp.eq.s32.totalorder %s39, 0
      %s42 = sadd.s32 %s41, 1
      %s43 = scalar_select %p40, %s41, %s42
      %p46 = pneg %p40
      %p47 = scmp.eq.s32.totalorder %s17, 7
      %p48 = por %p46, %p47
      %p49 = scmp.ne.s32.totalorder %s41, %s44
      %p50 = scmp.eq.s32.totalorder %s17, 0
      %p51 = por %p49, %p50
      %p52 = scmp.ne.s32.totalorder %s41, %s44
      %p53 = scmp.eq.s32.totalorder %s22, 7
      %p54 = por %p52, %p53
      %p55 = scmp.ne.s32.totalorder %s44, %s45
      %p56 = scmp.eq.s32.totalorder %s22, 0
      %p57 = por %p55, %p56
      %p58 = scmp.ne.s32.totalorder %s44, %s45
      %p59 = scmp.eq.s32.totalorder %s23, 7
      %p60 = por %p58, %p59
      %p62 = scmp.ne.s32.totalorder %s45, %s61
      %p63 = scmp.eq.s32.totalorder %s23, 0
      %p64 = por %p62, %p63
      %s66 = sadd.s32 %s65, 1
      %p69 = scmp.eq.s32.totalorder %s17, 7
      %p70 = scmp.ne.s32.totalorder %s65, %s67
      %p71 = scmp.eq.s32.totalorder %s17, 0
      %p72 = por %p70, %p71
      %p73 = scmp.ne.s32.totalorder %s65, %s67
      %p74 = scmp.eq.s32.totalorder %s22, 7
      %p75 = por %p73, %p74
      %p76 = scmp.ne.s32.totalorder %s67, %s68
      %p77 = scmp.eq.s32.totalorder %s22, 0
      %p78 = por %p76, %p77
      %p79 = scmp.ne.s32.totalorder %s67, %s68
      %p80 = scmp.eq.s32.totalorder %s23, 7
      %p81 = por %p79, %p80
      %p83 = scmp.ne.s32.totalorder %s68, %s82
      %p84 = scmp.eq.s32.totalorder %s23, 0
      %p85 = por %p83, %p84
      %s87 = sadd.s32 %s86, 1
      %p90 = scmp.eq.s32.totalorder %s17, 7
      %p91 = scmp.ne.s32.totalorder %s86, %s88
      %p92 = scmp.eq.s32.totalorder %s17, 0
      %p93 = por %p91, %p92
      %p94 = scmp.ne.s32.totalorder %s86, %s88
      %p95 = scmp.eq.s32.totalorder %s22, 7
      %p96 = por %p94, %p95
      %p97 = scmp.ne.s32.totalorder %s88, %s89
      %p98 = scmp.eq.s32.totalorder %s22, 0
      %p99 = por %p97, %p98
      %p100 = scmp.ne.s32.totalorder %s88, %s89
      %p101 = scmp.eq.s32.totalorder %s23, 7
      %p102 = por %p100, %p101
      %p104 = scmp.ne.s32.totalorder %s89, %s103
      %p105 = scmp.eq.s32.totalorder %s23, 0
      %p106 = por %p104, %p105
      %s108 = sadd.s32 %s107, 1
      %p111 = scmp.eq.s32.totalorder %s17, 7
      %p112 = scmp.ne.s32.totalorder %s107, %s109
      %p113 = scmp.eq.s32.totalorder %s17, 0
      %p114 = por %p112, %p113
      %p115 = scmp.ne.s32.totalorder %s107, %s109
      %p116 = scmp.eq.s32.totalorder %s22, 7
      %p117 = por %p115, %p116
      %p118 = scmp.ne.s32.totalorder %s109, %s110
      %p119 = scmp.eq.s32.totalorder %s22, 0
      %p120 = por %p118, %p119
      %p121 = scmp.ne.s32.totalorder %s109, %s110
      %p122 = scmp.eq.s32.totalorder %s23, 7
      %p123 = por %p121, %p122
      %p125 = scmp.ne.s32.totalorder %s110, %s124
      %p126 = scmp.eq.s32.totalorder %s23, 0
      %p127 = por %p125, %p126
      %s129 = sadd.s32 %s128, 1
      %p132 = scmp.eq.s32.totalorder %s17, 7
      %p133 = scmp.ne.s32.totalorder %s128, %s130
      %p134 = scmp.eq.s32.totalorder %s17, 0
      %p135 = por %p133, %p134
      %p136 = scmp.ne.s32.totalorder %s128, %s130
      %p137 = scmp.eq.s32.totalorder %s22, 7
      %p138 = por %p136, %p137
      %p139 = scmp.ne.s32.totalorder %s130, %s131
      %p140 = scmp.eq.s32.totalorder %s22, 0
      %p141 = por %p139, %p140
      %p142 = scmp.ne.s32.totalorder %s130, %s131
      %p143 = scmp.eq.s32.totalorder %s23, 7
      %p144 = por %p142, %p143
      %p146 = scmp.ne.s32.totalorder %s131, %s145
      %p147 = scmp.eq.s32.totalorder %s23, 0
      %p148 = por %p146, %p147
      %s150 = sadd.s32 %s149, 1
      %p153 = scmp.eq.s32.totalorder %s17, 7
      %p154 = scmp.ne.s32.totalorder %s149, %s151
      %p155 = scmp.eq.s32.totalorder %s17, 0
      %p156 = por %p154, %p155
      %p157 = scmp.ne.s32.totalorder %s149, %s151
      %p158 = scmp.eq.s32.totalorder %s22, 7
      %p159 = por %p157, %p158
      %p160 = scmp.ne.s32.totalorder %s151, %s152
      %p161 = scmp.eq.s32.totalorder %s22, 0
      %p162 = por %p160, %p161
      %p163 = scmp.ne.s32.totalorder %s151, %s152
      %p164 = scmp.eq.s32.totalorder %s23, 7
      %p165 = por %p163, %p164
      %p167 = scmp.ne.s32.totalorder %s152, %s166
      %p168 = scmp.eq.s32.totalorder %s23, 0
      %p169 = por %p167, %p168
      %s171 = sadd.s32 %s170, 1
      %p174 = scmp.eq.s32.totalorder %s17, 7
      %p175 = scmp.ne.s32.totalorder %s170, %s172
      %p176 = scmp.eq.s32.totalorder %s17, 0
      %p177 = por %p175, %p176
      %p178 = scmp.ne.s32.totalorder %s170, %s172
      %p179 = scmp.eq.s32.totalorder %s22, 7
      %p180 = por %p178, %p179
      %p181 = scmp.ne.s32.totalorder %s172, %s173
      %p182 = scmp.eq.s32.totalorder %s22, 0
      %p183 = por %p181, %p182
      %p184 = scmp.ne.s32.totalorder %s172, %s173
      %p185 = scmp.eq.s32.totalorder %s23, 7
      %p186 = por %p184, %p185
      %p188 = scmp.ne.s32.totalorder %s173, %s187
      %p189 = scmp.eq.s32.totalorder %s23, 0
      %p190 = por %p188, %p189
      %s191 = ssub.s32 %s24, %s36
      %s192 = ssub.s32 %s25, %s32
      %s193 = sor.u32 %s191, %s192
      %p194 = scmp.eq.s32.totalorder %s193, 0
      %s196 = sadd.s32 %s195, 1
      %s197 = scalar_select %p194, %s195, %s196
      %p200 = pneg %p194
      %p201 = scmp.eq.s32.totalorder %s17, 7
      %p202 = por %p200, %p201
      %p203 = scmp.ne.s32.totalorder %s195, %s198
      %p204 = scmp.eq.s32.totalorder %s17, 0
      %p205 = por %p203, %p204
      %p206 = scmp.ne.s32.totalorder %s195, %s198
      %p207 = scmp.eq.s32.totalorder %s22, 7
      %p208 = por %p206, %p207
      %p209 = scmp.ne.s32.totalorder %s198, %s199
      %p210 = scmp.eq.s32.totalorder %s22, 0
      %p211 = por %p209, %p210
      %p212 = scmp.ne.s32.totalorder %s198, %s199
      %p213 = scmp.eq.s32.totalorder %s23, 7
      %p214 = por %p212, %p213
      %p216 = scmp.ne.s32.totalorder %s199, %s215
      %p217 = scmp.eq.s32.totalorder %s23, 0
      %p218 = por %p216, %p217
      %p219 = scmp.le.s32.totalorder 1, %s17
      %p220 = scmp.lt.s32.totalorder %s17, 9
      %p221 = pnand %p219, %p220
      %p222 = pneg %p221
      // Predicated region
      $region9: #{tpu_custom_call.1} parent=5 // pred_check
        _
      $region10: #{tpu_custom_call.1} parent=5 // pred_check_branch
        %224 = sbr.rel (%p221) target = $region12
      $region11: #{tpu_custom_call.1} parent=5 // pred_region
        %s225 = ssub.s32 %s17, 1
        // Predicated region
        $region13: #{tpu_custom_call.1} parent=11 // pred_check
          %p226 = pneg %p78
        $region14: #{tpu_custom_call.1} parent=11 // pred_check_branch
          %228 = sbr.rel (%p226) target = $region16
        $region15: #{tpu_custom_call.1} parent=11 // pred_region
          _
        $region16: #{tpu_custom_call.1} parent=11 // pred_fallthru
          _
        // Predicated region
        $region17: #{tpu_custom_call.1} parent=11 // pred_check
          %p229 = pneg %p99
        $region18: #{tpu_custom_call.1} parent=11 // pred_check_branch
          %231 = sbr.rel (%p229) target = $region20
        $region19: #{tpu_custom_call.1} parent=11 // pred_region
          _
        $region20: #{tpu_custom_call.1} parent=11 // pred_fallthru
          _
        // Predicated region
        $region21: #{tpu_custom_call.1} parent=11 // pred_check
          %p232 = pneg %p120
        $region22: #{tpu_custom_call.1} parent=11 // pred_check_branch
          %234 = sbr.rel (%p232) target = $region24
        $region23: #{tpu_custom_call.1} parent=11 // pred_region
          _
        $region24: #{tpu_custom_call.1} parent=11 // pred_fallthru
          _
        // Predicated region
        $region25: #{tpu_custom_call.1} parent=11 // pred_check
          %p235 = pneg %p141
        $region26: #{tpu_custom_call.1} parent=11 // pred_check_branch
          %237 = sbr.rel (%p235) target = $region28
        $region27: #{tpu_custom_call.1} parent=11 // pred_region
          _
        $region28: #{tpu_custom_call.1} parent=11 // pred_fallthru
          _
        // Predicated region
        $region29: #{tpu_custom_call.1} parent=11 // pred_check
          %p238 = pneg %p162
        $region30: #{tpu_custom_call.1} parent=11 // pred_check_branch
          %240 = sbr.rel (%p238) target = $region32
        $region31: #{tpu_custom_call.1} parent=11 // pred_region
          %s242 = ssub.s32 2560, 2560
          %243 = vsyncadd [#allocation5], %s242
          %s244 = sshll.u32 [#allocation4], 4
          %s245 = int_to_ptr.vmem [resolvable:$true] %s244
          %250 = dma.hbm_to_vmem [thread:$0]  %s5, 2560, %s245, [#allocation5], 64, 64, 4
        $region32: #{tpu_custom_call.1} parent=11 // pred_fallthru
          _
        // Predicated region
        $region33: #{tpu_custom_call.1} parent=11 // pred_check
          %p251 = pneg %p183
        $region34: #{tpu_custom_call.1} parent=11 // pred_check_branch
          %253 = sbr.rel (%p251) target = $region36
        $region35: #{tpu_custom_call.1} parent=11 // pred_region
          _
        $region36: #{tpu_custom_call.1} parent=11 // pred_fallthru
          _
      $region12: #{tpu_custom_call.1} parent=5 // pred_fallthru
        _
      %p254 = scmp.lt.s32.totalorder %s17, 8
      // Predicated region
      $region37: #{tpu_custom_call.1} parent=5 // pred_check
        %p255 = pneg %p254
      $region38: #{tpu_custom_call.1} parent=5 // pred_check_branch
        %257 = sbr.rel (%p255) target = $region40
      $region39: #{tpu_custom_call.1} parent=5 // pred_region
        // Predicated region
        $region41: #{tpu_custom_call.1} parent=39 // pred_check
          %p258 = pneg %p51
        $region42: #{tpu_custom_call.1} parent=39 // pred_check_branch
          %260 = sbr.rel (%p258) target = $region44
        $region43: #{tpu_custom_call.1} parent=39 // pred_region
          %p261 = scmp.lt.s32.totalorder %s24, 1
          %s262 = scalar_select %p261, %s24, 1
          %p263 = scmp.lt.s32.totalorder %s25, 3
          %s264 = scalar_select %p263, %s25, 3
          %s265 = smul.addr %s264, 6
          %s266 = smul.addr %s262, 24
          %s267 = sadd.s32 %s265, %s266
          %s268 = smul.addr %s267, 4
          %s269 = scalar_lea.vmem %s0, %s268
        $region44: #{tpu_custom_call.1} parent=39 // pred_fallthru
          _
      $region40: #{tpu_custom_call.1} parent=5 // pred_fallthru
        _
      %p270 = scmp.le.s32.totalorder 1, %s17
      %p271 = scmp.lt.s32.totalorder %s17, 9
      %p272 = pnand %p270, %p271
      %p273 = pneg %p272
      // Predicated region
      $region45: #{tpu_custom_call.1} parent=5 // pred_check
        _
      $region46: #{tpu_custom_call.1} parent=5 // pred_check_branch
        %275 = sbr.rel (%p272) target = $region48
      $region47: #{tpu_custom_call.1} parent=5 // pred_region
        %s276 = ssub.s32 %s17, 1
        // Predicated region
        $region49: #{tpu_custom_call.1} parent=47 // pred_check
          %p277 = pneg %p162
        $region50: #{tpu_custom_call.1} parent=47 // pred_check_branch
          %279 = sbr.rel (%p277) target = $region52
        $region51: #{tpu_custom_call.1} parent=47 // pred_region
          %280 = dma.done [#allocation5], 2560
        $region52: #{tpu_custom_call.1} parent=47 // pred_fallthru
          _
        %p281 = scmp.lt.s32.totalorder %s26, 1
        %s282 = scalar_select %p281, %s26, 1
        %p283 = scmp.lt.s32.totalorder %s27, 3
        %s284 = scalar_select %p283, %s27, 3
        %s285 = smul.addr %s284, 6
        %s286 = smul.addr %s282, 24
        %s287 = sadd.s32 %s285, %s286
        %s288 = smul.addr %s287, 4
        %s289 = scalar_lea.vmem %s0, %s288
        %p290 = pneg %p57
        %p291 = pneg %p54
        %p292 = pneg %p78
        %p293 = pneg %p75
        %p294 = pneg %p99
        %p295 = pneg %p96
        %p296 = pneg %p120
        %p297 = pneg %p117
        %p298 = pneg %p141
        %p299 = pneg %p138
        %p300 = pneg %p162
        %p301 = pneg %p159
        %p302 = pneg %p183
        %p303 = pneg %p180
        %p304 = pneg %p211
        %p305 = pneg %p208
        %s306 = sand.u32 %s198, 1
        %s307 = scalar_lea.sflag [#allocation6], %s306
        %s308 = sand.u32 %s198, 1
        %s309 = smul.addr %s308, 16
        %s310 = scalar_lea.vmem [#allocation7], %s309
        %p311 = scmp.lt.s32.totalorder %s26, 1
        %s312 = scalar_select %p311, %s26, 1
        %p313 = scmp.lt.s32.totalorder %s27, 3
        %s314 = scalar_select %p313, %s27, 3
        %s315 = smul.addr %s314, 6
        %s316 = smul.addr %s312, 24
        %s317 = sadd.s32 %s315, %s316
        %s318 = smul.addr %s317, 4
        %s319 = scalar_lea.vmem %s0, %s318
        %s320 = smul.u32 2, %s27
        %s322 = smul.u32 %s27, 16
        %v323 = vld [vmem:[%s319] sm:$0xf]
        %v324 = vld [vmem:[%s319 + $0x4] sm:$0xf]
        %v325 = vld [vmem:[%s319 + $0x8] sm:$0xf]
        %v326 = vld [vmem:[%s319 + $0xc] sm:$0xf]
        %v327 = vld [vmem:[%s319 + $0x10] sm:$0xf]
        %v328 = vld [vmem:[%s319 + $0x14] sm:$0x3]
        %v329 = vunpack.c.l.bf16 %v323
        %v330 = vunpack.c.l.bf16 %v324
        %v331 = vunpack.c.l.bf16 %v325
        %v332 = vunpack.c.l.bf16 %v326
        %v333 = vunpack.c.l.bf16 %v327
        %v334 = vld [vmem:[%s1] sm:$0xf]
        %v335 = vld [vmem:[%s1 + $0x4] sm:$0xf]
        %v336 = vld [vmem:[%s1 + $0x8] sm:$0xf]
        %v337 = vld [vmem:[%s1 + $0xc] sm:$0xf]
        %v344 = vunpack.c.l.b16 %v323
        %v345 = vunpack.c.l.b16 %v324
        %v346 = vunpack.c.l.b16 %v325
        %v347 = vunpack.c.l.b16 %v326
        %v348 = vunpack.c.l.b16 %v327
        %v349 = vunpack.c.l.b16 %v328
        %v350 = vpack.c.b16 %v345, %v344
        %v351 = vpack.c.b16 %v347, %v346
        %v352 = vpack.c.b16 %v349, %v348
        %v357 = vunpack.c.l.b16 %v334
        %v358 = vunpack.c.l.b16 %v335
        %v359 = vunpack.c.l.b16 %v336
        %v360 = vunpack.c.l.b16 %v337
        %v361 = vpack.c.b16 %v358, %v357
        %v362 = vpack.c.b16 %v360, %v359
        %vm365 = vcmask 261120
        %v367 = vsel %vm365, %v350, 0
        %v370 = vsel %vm365, %v351, 0
        %v373 = vsel %vm365, %v352, 0
        %375 = vmatprep.subr.bf16.mxu0 0
        %376 = vmatpush1.bf16.msra.mxu0 0
        %377 = vmatprep.subr.bf16.mxu0 0
        %378 = vmatpush1.bf16.msra.mxu0 0
        %379 = vmatprep.subr.bf16.mxu0 0
        %380 = vmatpush1.bf16.msra.mxu0 0
        %381 = vmatprep.subr.bf16.mxu0 0
        %382 = vmatpush1.bf16.msra.mxu0 0
        %383 = vmatprep.subr.bf16.mxu0 0
        %384 = vmatpush1.bf16.msra.mxu0 0
        %385 = vmatprep.subr.bf16.mxu0 0
        %386 = vmatpush1.bf16.msra.mxu0 0
        %387 = vmatprep.subr.bf16.mxu0 0
        %388 = vmatpush1.bf16.msra.mxu0 %v362
        %389 = vmatprep.subr.bf16.mxu0 0
        %390 = vmatpush1.bf16.msra.mxu0 %v361
        %391 = vmatprep.subr.bf16.mxu0 0
        %392 = vmatpush2.bf16.msra.mxu0 0
        %393 = vmatprep.subr.bf16.mxu0 0
        %394 = vmatpush2.bf16.msra.mxu0 0
        %395 = vmatprep.subr.bf16.mxu0 0
        %396 = vmatpush2.bf16.msra.mxu0 0
        %397 = vmatprep.subr.bf16.mxu0 0
        %398 = vmatpush2.bf16.msra.mxu0 0
        %399 = vmatprep.subr.bf16.mxu0 0
        %400 = vmatpush2.bf16.msra.mxu0 0
        %401 = vmatprep.subr.bf16.mxu0 0
        %402 = vmatpush2.bf16.msra.mxu0 0
        %403 = vmatprep.subr.bf16.mxu0 0
        %404 = vmatpush2.bf16.msra.mxu0 0
        %405 = vmatprep.subr.bf16.mxu0 0
        %406 = vmatpush2.bf16.msra.mxu0 0
        %407 = vmatprep.mubr.bf16.mxu0 0
        %408 = vmatmul.mubr.bf16.gmra.mxu0 %v367
        %v409 = vpop.f32.mrf.mxu0
        %v410 = vadd.f32 0.0, %v409
        %v411 = vpop.f32.mrf.mxu0
        %v412 = vpop.f32.mrf.mxu0
        %v413 = vadd.f32 0.0, %v412
        %v414 = vpop.f32.mrf.mxu0
        %415 = vmatprep.mubr.bf16.mxu0 0
        %416 = vmatmul.mubr.bf16.gmra.mxu0 %v370
        %v417 = vpop.f32.mrf.mxu0
        %v418 = vadd.f32 0.0, %v417
        %v419 = vpop.f32.mrf.mxu0
        %v420 = vpop.f32.mrf.mxu0
        %v421 = vadd.f32 0.0, %v420
        %v422 = vpop.f32.mrf.mxu0
        %423 = vmatprep.mubr.bf16.mxu0 0
        %424 = vmatmul.mubr.bf16.gmra.mxu0 %v373
        %v425 = vpop.f32.mrf.mxu0
        %v426 = vadd.f32 0.0, %v425
        %v427 = vpop.f32.mrf.mxu0
        %v428 = vpop.f32.mrf.mxu0
        %v429 = vpop.f32.mrf.mxu0
        %430 = vdwg.mxu0
        %v431 = vadd.f32 %v410, 0.0
        %v432 = vadd.f32 %v413, 0.0
        %v433 = vadd.f32 %v418, 0.0
        %v434 = vadd.f32 %v421, 0.0
        %v435 = vadd.f32 %v426, 0.0
        %s436 = scalar_lea.vmem %s1, 16
        %v437 = vld [vmem:[%s436] sm:$0xf]
        %v438 = vld [vmem:[%s436 + $0x4] sm:$0xf]
        %v439 = vld [vmem:[%s436 + $0x8] sm:$0xf]
        %v440 = vld [vmem:[%s436 + $0xc] sm:$0xf]
        %v445 = vunpack.c.l.b16 %v437
        %v446 = vunpack.c.l.b16 %v438
        %v447 = vunpack.c.l.b16 %v439
        %v448 = vunpack.c.l.b16 %v440
        %v449 = vpack.c.b16 %v446, %v445
        %v450 = vpack.c.b16 %v448, %v447
        %453 = vmatprep.subr.bf16.mxu0 0
        %454 = vmatpush1.bf16.msra.mxu0 0
        %455 = vmatprep.subr.bf16.mxu0 0
        %456 = vmatpush1.bf16.msra.mxu0 0
        %457 = vmatprep.subr.bf16.mxu0 0
        %458 = vmatpush1.bf16.msra.mxu0 0
        %459 = vmatprep.subr.bf16.mxu0 0
        %460 = vmatpush1.bf16.msra.mxu0 0
        %461 = vmatprep.subr.bf16.mxu0 0
        %462 = vmatpush1.bf16.msra.mxu0 0
        %463 = vmatprep.subr.bf16.mxu0 0
        %464 = vmatpush1.bf16.msra.mxu0 0
        %465 = vmatprep.subr.bf16.mxu0 0
        %466 = vmatpush1.bf16.msra.mxu0 %v450
        %467 = vmatprep.subr.bf16.mxu0 0
        %468 = vmatpush1.bf16.msra.mxu0 %v449
        %469 = vmatprep.subr.bf16.mxu0 0
        %470 = vmatpush2.bf16.msra.mxu0 0
        %471 = vmatprep.subr.bf16.mxu0 0
        %472 = vmatpush2.bf16.msra.mxu0 0
        %473 = vmatprep.subr.bf16.mxu0 0
        %474 = vmatpush2.bf16.msra.mxu0 0
        %475 = vmatprep.subr.bf16.mxu0 0
        %476 = vmatpush2.bf16.msra.mxu0 0
        %477 = vmatprep.subr.bf16.mxu0 0
        %478 = vmatpush2.bf16.msra.mxu0 0
        %479 = vmatprep.subr.bf16.mxu0 0
        %480 = vmatpush2.bf16.msra.mxu0 0
        %481 = vmatprep.subr.bf16.mxu0 0
        %482 = vmatpush2.bf16.msra.mxu0 0
        %483 = vmatprep.subr.bf16.mxu0 0
        %484 = vmatpush2.bf16.msra.mxu0 0
        %485 = vmatprep.mubr.bf16.mxu0 0
        %486 = vmatmul.mubr.bf16.gmra.mxu0 %v367
        %v487 = vpop.f32.mrf.mxu0
        %v488 = vadd.f32 0.0, %v487
        %v489 = vpop.f32.mrf.mxu0
        %v490 = vpop.f32.mrf.mxu0
        %v491 = vadd.f32 0.0, %v490
        %v492 = vpop.f32.mrf.mxu0
        %493 = vmatprep.mubr.bf16.mxu0 0
        %494 = vmatmul.mubr.bf16.gmra.mxu0 %v370
        %v495 = vpop.f32.mrf.mxu0
        %v496 = vadd.f32 0.0, %v495
        %v497 = vpop.f32.mrf.mxu0
        %v498 = vpop.f32.mrf.mxu0
        %v499 = vadd.f32 0.0, %v498
        %v500 = vpop.f32.mrf.mxu0
        %501 = vmatprep.mubr.bf16.mxu0 0
        %502 = vmatmul.mubr.bf16.gmra.mxu0 %v373
        %v503 = vpop.f32.mrf.mxu0
        %v504 = vadd.f32 0.0, %v503
        %v505 = vpop.f32.mrf.mxu0
        %v506 = vpop.f32.mrf.mxu0
        %v507 = vpop.f32.mrf.mxu0
        %508 = vdwg.mxu0
        %vm514 = vcmask 1046528
        %v515 = vrot.slane %v488, 1
        %v516 = vrot.slane %v491, 1
        %v517 = vsel %vm514, %v515, %v516
        %v518 = vrot.slane %v496, 1
        %v519 = vsel %vm514, %v516, %v518
        %v520 = vrot.slane %v499, 1
        %v521 = vsel %vm514, %v518, %v520
        %v522 = vrot.slane %v504, 1
        %v523 = vsel %vm514, %v520, %v522
        %v529 = vadd.f32 %v431, %v517
        %v530 = vadd.f32 %v432, %v519
        %v531 = vadd.f32 %v433, %v521
        %v532 = vadd.f32 %v434, %v523
        %v533 = vadd.f32 %v435, %v522
        %s534 = scalar_lea.vmem %s1, 32
        %v535 = vld [vmem:[%s534] sm:$0xf]
        %v536 = vld [vmem:[%s534 + $0x4] sm:$0xf]
        %v537 = vld [vmem:[%s534 + $0x8] sm:$0xf]
        %v538 = vld [vmem:[%s534 + $0xc] sm:$0xf]
        %v543 = vunpack.c.l.b16 %v535
        %v544 = vunpack.c.l.b16 %v536
        %v545 = vunpack.c.l.b16 %v537
        %v546 = vunpack.c.l.b16 %v538
        %v547 = vpack.c.b16 %v544, %v543
        %v548 = vpack.c.b16 %v546, %v545
        %551 = vmatprep.subr.bf16.mxu0 0
        %552 = vmatpush1.bf16.msra.mxu0 0
        %553 = vmatprep.subr.bf16.mxu0 0
        %554 = vmatpush1.bf16.msra.mxu0 0
        %555 = vmatprep.subr.bf16.mxu0 0
        %556 = vmatpush1.bf16.msra.mxu0 0
        %557 = vmatprep.subr.bf16.mxu0 0
        %558 = vmatpush1.bf16.msra.mxu0 0
        %559 = vmatprep.subr.bf16.mxu0 0
        %560 = vmatpush1.bf16.msra.mxu0 0
        %561 = vmatprep.subr.bf16.mxu0 0
        %562 = vmatpush1.bf16.msra.mxu0 0
        %563 = vmatprep.subr.bf16.mxu0 0
        %564 = vmatpush1.bf16.msra.mxu0 %v548
        %565 = vmatprep.subr.bf16.mxu0 0
        %566 = vmatpush1.bf16.msra.mxu0 %v547
        %567 = vmatprep.subr.bf16.mxu0 0
        %568 = vmatpush2.bf16.msra.mxu0 0
        %569 = vmatprep.subr.bf16.mxu0 0
        %570 = vmatpush2.bf16.msra.mxu0 0
        %571 = vmatprep.subr.bf16.mxu0 0
        %572 = vmatpush2.bf16.msra.mxu0 0
        %573 = vmatprep.subr.bf16.mxu0 0
        %574 = vmatpush2.bf16.msra.mxu0 0
        %575 = vmatprep.subr.bf16.mxu0 0
        %576 = vmatpush2.bf16.msra.mxu0 0
        %577 = vmatprep.subr.bf16.mxu0 0
        %578 = vmatpush2.bf16.msra.mxu0 0
        %579 = vmatprep.subr.bf16.mxu0 0
        %580 = vmatpush2.bf16.msra.mxu0 0
        %581 = vmatprep.subr.bf16.mxu0 0
        %582 = vmatpush2.bf16.msra.mxu0 0
        %583 = vmatprep.mubr.bf16.mxu0 0
        %584 = vmatmul.mubr.bf16.gmra.mxu0 %v367
        %v585 = vpop.f32.mrf.mxu0
        %v586 = vadd.f32 0.0, %v585
        %v587 = vpop.f32.mrf.mxu0
        %v588 = vpop.f32.mrf.mxu0
        %v589 = vadd.f32 0.0, %v588
        %v590 = vpop.f32.mrf.mxu0
        %591 = vmatprep.mubr.bf16.mxu0 0
        %592 = vmatmul.mubr.bf16.gmra.mxu0 %v370
        %v593 = vpop.f32.mrf.mxu0
        %v594 = vadd.f32 0.0, %v593
        %v595 = vpop.f32.mrf.mxu0
        %v596 = vpop.f32.mrf.mxu0
        %v597 = vadd.f32 0.0, %v596
        %v598 = vpop.f32.mrf.mxu0
        %599 = vmatprep.mubr.bf16.mxu0 0
        %600 = vmatmul.mubr.bf16.gmra.mxu0 %v373
        %v601 = vpop.f32.mrf.mxu0
        %v602 = vadd.f32 0.0, %v601
        %v603 = vpop.f32.mrf.mxu0
        %v604 = vpop.f32.mrf.mxu0
        %v605 = vpop.f32.mrf.mxu0
        %606 = vdwg.mxu0
        %vm612 = vcmask 1045504
        %v613 = vrot.slane %v586, 2
        %v614 = vrot.slane %v589, 2
        %v615 = vsel %vm612, %v613, %v614
        %v616 = vrot.slane %v594, 2
        %v617 = vsel %vm612, %v614, %v616
        %v618 = vrot.slane %v597, 2
        %v619 = vsel %vm612, %v616, %v618
        %v620 = vrot.slane %v602, 2
        %v621 = vsel %vm612, %v618, %v620
        %v627 = vadd.f32 %v529, %v615
        %v628 = vadd.f32 %v530, %v617
        %v629 = vadd.f32 %v531, %v619
        %v630 = vadd.f32 %v532, %v621
        %v631 = vadd.f32 %v533, %v620
        %s632 = scalar_lea.vmem %s1, 48
        %v633 = vld [vmem:[%s632] sm:$0xf]
        %v634 = vld [vmem:[%s632 + $0x4] sm:$0xf]
        %v635 = vld [vmem:[%s632 + $0x8] sm:$0xf]
        %v636 = vld [vmem:[%s632 + $0xc] sm:$0xf]
        %v641 = vunpack.c.l.b16 %v633
        %v642 = vunpack.c.l.b16 %v634
        %v643 = vunpack.c.l.b16 %v635
        %v644 = vunpack.c.l.b16 %v636
        %v645 = vpack.c.b16 %v642, %v641
        %v646 = vpack.c.b16 %v644, %v643
        %649 = vmatprep.subr.bf16.mxu0 0
        %650 = vmatpush1.bf16.msra.mxu0 0
        %651 = vmatprep.subr.bf16.mxu0 0
        %652 = vmatpush1.bf16.msra.mxu0 0
        %653 = vmatprep.subr.bf16.mxu0 0
        %654 = vmatpush1.bf16.msra.mxu0 0
        %655 = vmatprep.subr.bf16.mxu0 0
        %656 = vmatpush1.bf16.msra.mxu0 0
        %657 = vmatprep.subr.bf16.mxu0 0
        %658 = vmatpush1.bf16.msra.mxu0 0
        %659 = vmatprep.subr.bf16.mxu0 0
        %660 = vmatpush1.bf16.msra.mxu0 0
        %661 = vmatprep.subr.bf16.mxu0 0
        %662 = vmatpush1.bf16.msra.mxu0 %v646
        %663 = vmatprep.subr.bf16.mxu0 0
        %664 = vmatpush1.bf16.msra.mxu0 %v645
        %665 = vmatprep.subr.bf16.mxu0 0
        %666 = vmatpush2.bf16.msra.mxu0 0
        %667 = vmatprep.subr.bf16.mxu0 0
        %668 = vmatpush2.bf16.msra.mxu0 0
        %669 = vmatprep.subr.bf16.mxu0 0
        %670 = vmatpush2.bf16.msra.mxu0 0
        %671 = vmatprep.subr.bf16.mxu0 0
        %672 = vmatpush2.bf16.msra.mxu0 0
        %673 = vmatprep.subr.bf16.mxu0 0
        %674 = vmatpush2.bf16.msra.mxu0 0
        %675 = vmatprep.subr.bf16.mxu0 0
        %676 = vmatpush2.bf16.msra.mxu0 0
        %677 = vmatprep.subr.bf16.mxu0 0
        %678 = vmatpush2.bf16.msra.mxu0 0
        %679 = vmatprep.subr.bf16.mxu0 0
        %680 = vmatpush2.bf16.msra.mxu0 0
        %681 = vmatprep.mubr.bf16.mxu0 0
        %682 = vmatmul.mubr.bf16.gmra.mxu0 %v367
        %v683 = vpop.f32.mrf.mxu0
        %v684 = vadd.f32 0.0, %v683
        %v685 = vpop.f32.mrf.mxu0
        %v686 = vpop.f32.mrf.mxu0
        %v687 = vadd.f32 0.0, %v686
        %v688 = vpop.f32.mrf.mxu0
        %689 = vmatprep.mubr.bf16.mxu0 0
        %690 = vmatmul.mubr.bf16.gmra.mxu0 %v370
        %v691 = vpop.f32.mrf.mxu0
        %v692 = vadd.f32 0.0, %v691
        %v693 = vpop.f32.mrf.mxu0
        %v694 = vpop.f32.mrf.mxu0
        %v695 = vadd.f32 0.0, %v694
        %v696 = vpop.f32.mrf.mxu0
        %697 = vmatprep.mubr.bf16.mxu0 0
        %698 = vmatmul.mubr.bf16.gmra.mxu0 %v373
        %v699 = vpop.f32.mrf.mxu0
        %v700 = vadd.f32 0.0, %v699
        %v701 = vpop.f32.mrf.mxu0
        %v702 = vpop.f32.mrf.mxu0
        %v703 = vpop.f32.mrf.mxu0
        %704 = vdwg.mxu0
        %vm710 = vcmask 1044480
        %v711 = vrot.slane %v684, 3
        %v712 = vrot.slane %v687, 3
        %v713 = vsel %vm710, %v711, %v712
        %v714 = vrot.slane %v692, 3
        %v715 = vsel %vm710, %v712, %v714
        %v716 = vrot.slane %v695, 3
        %v717 = vsel %vm710, %v714, %v716
        %v718 = vrot.slane %v700, 3
        %v719 = vsel %vm710, %v716, %v718
        %v725 = vadd.f32 %v627, %v713
        %v726 = vadd.f32 %v628, %v715
        %v727 = vadd.f32 %v629, %v717
        %v728 = vadd.f32 %v630, %v719
        %v729 = vadd.f32 %v631, %v718
        %s730 = scalar_lea.vmem %s1, 64
        %v731 = vld [vmem:[%s730] sm:$0xf]
        %v732 = vld [vmem:[%s730 + $0x4] sm:$0xf]
        %v733 = vld [vmem:[%s730 + $0x8] sm:$0xf]
        %v734 = vld [vmem:[%s730 + $0xc] sm:$0xf]
        %v739 = vunpack.c.l.b16 %v731
        %v740 = vunpack.c.l.b16 %v732
        %v741 = vunpack.c.l.b16 %v733
        %v742 = vunpack.c.l.b16 %v734
        %v743 = vpack.c.b16 %v740, %v739
        %v744 = vpack.c.b16 %v742, %v741
        %747 = vmatprep.subr.bf16.mxu0 0
        %748 = vmatpush1.bf16.msra.mxu0 0
        %749 = vmatprep.subr.bf16.mxu0 0
        %750 = vmatpush1.bf16.msra.mxu0 0
        %751 = vmatprep.subr.bf16.mxu0 0
        %752 = vmatpush1.bf16.msra.mxu0 0
        %753 = vmatprep.subr.bf16.mxu0 0
        %754 = vmatpush1.bf16.msra.mxu0 0
        %755 = vmatprep.subr.bf16.mxu0 0
        %756 = vmatpush1.bf16.msra.mxu0 0
        %757 = vmatprep.subr.bf16.mxu0 0
        %758 = vmatpush1.bf16.msra.mxu0 0
        %759 = vmatprep.subr.bf16.mxu0 0
        %760 = vmatpush1.bf16.msra.mxu0 %v744
        %761 = vmatprep.subr.bf16.mxu0 0
        %762 = vmatpush1.bf16.msra.mxu0 %v743
        %763 = vmatprep.subr.bf16.mxu0 0
        %764 = vmatpush2.bf16.msra.mxu0 0
        %765 = vmatprep.subr.bf16.mxu0 0
        %766 = vmatpush2.bf16.msra.mxu0 0
        %767 = vmatprep.subr.bf16.mxu0 0
        %768 = vmatpush2.bf16.msra.mxu0 0
        %769 = vmatprep.subr.bf16.mxu0 0
        %770 = vmatpush2.bf16.msra.mxu0 0
        %771 = vmatprep.subr.bf16.mxu0 0
        %772 = vmatpush2.bf16.msra.mxu0 0
        %773 = vmatprep.subr.bf16.mxu0 0
        %774 = vmatpush2.bf16.msra.mxu0 0
        %775 = vmatprep.subr.bf16.mxu0 0
        %776 = vmatpush2.bf16.msra.mxu0 0
        %777 = vmatprep.subr.bf16.mxu0 0
        %778 = vmatpush2.bf16.msra.mxu0 0
        %779 = vmatprep.mubr.bf16.mxu0 0
        %780 = vmatmul.mubr.bf16.gmra.mxu0 %v367
        %v781 = vpop.f32.mrf.mxu0
        %v782 = vadd.f32 0.0, %v781
        %v783 = vpop.f32.mrf.mxu0
        %v784 = vpop.f32.mrf.mxu0
        %v785 = vadd.f32 0.0, %v784
        %v786 = vpop.f32.mrf.mxu0
        %787 = vmatprep.mubr.bf16.mxu0 0
        %788 = vmatmul.mubr.bf16.gmra.mxu0 %v370
        %v789 = vpop.f32.mrf.mxu0
        %v790 = vadd.f32 0.0, %v789
        %v791 = vpop.f32.mrf.mxu0
        %v792 = vpop.f32.mrf.mxu0
        %v793 = vadd.f32 0.0, %v792
        %v794 = vpop.f32.mrf.mxu0
        %795 = vmatprep.mubr.bf16.mxu0 0
        %796 = vmatmul.mubr.bf16.gmra.mxu0 %v373
        %v797 = vpop.f32.mrf.mxu0
        %v798 = vadd.f32 0.0, %v797
        %v799 = vpop.f32.mrf.mxu0
        %v800 = vpop.f32.mrf.mxu0
        %v801 = vpop.f32.mrf.mxu0
        %802 = vdwg.mxu0
        %vm808 = vcmask 1043456
        %v809 = vrot.slane %v782, 4
        %v810 = vrot.slane %v785, 4
        %v811 = vsel %vm808, %v809, %v810
        %v812 = vrot.slane %v790, 4
        %v813 = vsel %vm808, %v810, %v812
        %v814 = vrot.slane %v793, 4
        %v815 = vsel %vm808, %v812, %v814
        %v816 = vrot.slane %v798, 4
        %v817 = vsel %vm808, %v814, %v816
        %v823 = vadd.f32 %v725, %v811
        %v824 = vadd.f32 %v726, %v813
        %v825 = vadd.f32 %v727, %v815
        %v826 = vadd.f32 %v728, %v817
        %v827 = vadd.f32 %v729, %v816
        %s828 = scalar_lea.vmem %s1, 80
        %v829 = vld [vmem:[%s828] sm:$0xf]
        %v830 = vld [vmem:[%s828 + $0x4] sm:$0xf]
        %v831 = vld [vmem:[%s828 + $0x8] sm:$0xf]
        %v832 = vld [vmem:[%s828 + $0xc] sm:$0xf]
        %v837 = vunpack.c.l.b16 %v829
        %v838 = vunpack.c.l.b16 %v830
        %v839 = vunpack.c.l.b16 %v831
        %v840 = vunpack.c.l.b16 %v832
        %v841 = vpack.c.b16 %v838, %v837
        %v842 = vpack.c.b16 %v840, %v839
        %845 = vmatprep.subr.bf16.mxu0 0
        %846 = vmatpush1.bf16.msra.mxu0 0
        %847 = vmatprep.subr.bf16.mxu0 0
        %848 = vmatpush1.bf16.msra.mxu0 0
        %849 = vmatprep.subr.bf16.mxu0 0
        %850 = vmatpush1.bf16.msra.mxu0 0
        %851 = vmatprep.subr.bf16.mxu0 0
        %852 = vmatpush1.bf16.msra.mxu0 0
        %853 = vmatprep.subr.bf16.mxu0 0
        %854 = vmatpush1.bf16.msra.mxu0 0
        %855 = vmatprep.subr.bf16.mxu0 0
        %856 = vmatpush1.bf16.msra.mxu0 0
        %857 = vmatprep.subr.bf16.mxu0 0
        %858 = vmatpush1.bf16.msra.mxu0 %v842
        %859 = vmatprep.subr.bf16.mxu0 0
        %860 = vmatpush1.bf16.msra.mxu0 %v841
        %861 = vmatprep.subr.bf16.mxu0 0
        %862 = vmatpush2.bf16.msra.mxu0 0
        %863 = vmatprep.subr.bf16.mxu0 0
        %864 = vmatpush2.bf16.msra.mxu0 0
        %865 = vmatprep.subr.bf16.mxu0 0
        %866 = vmatpush2.bf16.msra.mxu0 0
        %867 = vmatprep.subr.bf16.mxu0 0
        %868 = vmatpush2.bf16.msra.mxu0 0
        %869 = vmatprep.subr.bf16.mxu0 0
        %870 = vmatpush2.bf16.msra.mxu0 0
        %871 = vmatprep.subr.bf16.mxu0 0
        %872 = vmatpush2.bf16.msra.mxu0 0
        %873 = vmatprep.subr.bf16.mxu0 0
        %874 = vmatpush2.bf16.msra.mxu0 0
        %875 = vmatprep.subr.bf16.mxu0 0
        %876 = vmatpush2.bf16.msra.mxu0 0
        %877 = vmatprep.mubr.bf16.mxu0 0
        %878 = vmatmul.mubr.bf16.gmra.mxu0 %v367
        %v879 = vpop.f32.mrf.mxu0
        %v880 = vadd.f32 0.0, %v879
        %v881 = vpop.f32.mrf.mxu0
        %v882 = vpop.f32.mrf.mxu0
        %v883 = vadd.f32 0.0, %v882
        %v884 = vpop.f32.mrf.mxu0
        %885 = vmatprep.mubr.bf16.mxu0 0
        %886 = vmatmul.mubr.bf16.gmra.mxu0 %v370
        %v887 = vpop.f32.mrf.mxu0
        %v888 = vadd.f32 0.0, %v887
        %v889 = vpop.f32.mrf.mxu0
        %v890 = vpop.f32.mrf.mxu0
        %v891 = vadd.f32 0.0, %v890
        %v892 = vpop.f32.mrf.mxu0
        %893 = vmatprep.mubr.bf16.mxu0 0
        %894 = vmatmul.mubr.bf16.gmra.mxu0 %v373
        %v895 = vpop.f32.mrf.mxu0
        %v896 = vadd.f32 0.0, %v895
        %v897 = vpop.f32.mrf.mxu0
        %v898 = vpop.f32.mrf.mxu0
        %v899 = vpop.f32.mrf.mxu0
        %900 = vdwg.mxu0
        %vm906 = vcmask 1042432
        %v907 = vrot.slane %v880, 5
        %v908 = vrot.slane %v883, 5
        %v909 = vsel %vm906, %v907, %v908
        %v910 = vrot.slane %v888, 5
        %v911 = vsel %vm906, %v908, %v910
        %v912 = vrot.slane %v891, 5
        %v913 = vsel %vm906, %v910, %v912
        %v914 = vrot.slane %v896, 5
        %v915 = vsel %vm906, %v912, %v914
        %v921 = vadd.f32 %v823, %v909
        %v922 = vadd.f32 %v824, %v911
        %v923 = vadd.f32 %v825, %v913
        %v924 = vadd.f32 %v826, %v915
        %v925 = vadd.f32 %v827, %v914
        %s926 = scalar_lea.vmem %s1, 96
        %v927 = vld [vmem:[%s926] sm:$0xf]
        %v928 = vld [vmem:[%s926 + $0x4] sm:$0xf]
        %v929 = vld [vmem:[%s926 + $0x8] sm:$0xf]
        %v930 = vld [vmem:[%s926 + $0xc] sm:$0xf]
        %v935 = vunpack.c.l.b16 %v927
        %v936 = vunpack.c.l.b16 %v928
        %v937 = vunpack.c.l.b16 %v929
        %v938 = vunpack.c.l.b16 %v930
        %v939 = vpack.c.b16 %v936, %v935
        %v940 = vpack.c.b16 %v938, %v937
        %943 = vmatprep.subr.bf16.mxu0 0
        %944 = vmatpush1.bf16.msra.mxu0 0
        %945 = vmatprep.subr.bf16.mxu0 0
        %946 = vmatpush1.bf16.msra.mxu0 0
        %947 = vmatprep.subr.bf16.mxu0 0
        %948 = vmatpush1.bf16.msra.mxu0 0
        %949 = vmatprep.subr.bf16.mxu0 0
        %950 = vmatpush1.bf16.msra.mxu0 0
        %951 = vmatprep.subr.bf16.mxu0 0
        %952 = vmatpush1.bf16.msra.mxu0 0
        %953 = vmatprep.subr.bf16.mxu0 0
        %954 = vmatpush1.bf16.msra.mxu0 0
        %955 = vmatprep.subr.bf16.mxu0 0
        %956 = vmatpush1.bf16.msra.mxu0 %v940
        %957 = vmatprep.subr.bf16.mxu0 0
        %958 = vmatpush1.bf16.msra.mxu0 %v939
        %959 = vmatprep.subr.bf16.mxu0 0
        %960 = vmatpush2.bf16.msra.mxu0 0
        %961 = vmatprep.subr.bf16.mxu0 0
        %962 = vmatpush2.bf16.msra.mxu0 0
        %963 = vmatprep.subr.bf16.mxu0 0
        %964 = vmatpush2.bf16.msra.mxu0 0
        %965 = vmatprep.subr.bf16.mxu0 0
        %966 = vmatpush2.bf16.msra.mxu0 0
        %967 = vmatprep.subr.bf16.mxu0 0
        %968 = vmatpush2.bf16.msra.mxu0 0
        %969 = vmatprep.subr.bf16.mxu0 0
        %970 = vmatpush2.bf16.msra.mxu0 0
        %971 = vmatprep.subr.bf16.mxu0 0
        %972 = vmatpush2.bf16.msra.mxu0 0
        %973 = vmatprep.subr.bf16.mxu0 0
        %974 = vmatpush2.bf16.msra.mxu0 0
        %975 = vmatprep.mubr.bf16.mxu0 0
        %976 = vmatmul.mubr.bf16.gmra.mxu0 %v367
        %v977 = vpop.f32.mrf.mxu0
        %v978 = vadd.f32 0.0, %v977
        %v979 = vpop.f32.mrf.mxu0
        %v980 = vpop.f32.mrf.mxu0
        %v981 = vadd.f32 0.0, %v980
        %v982 = vpop.f32.mrf.mxu0
        %983 = vmatprep.mubr.bf16.mxu0 0
        %984 = vmatmul.mubr.bf16.gmra.mxu0 %v370
        %v985 = vpop.f32.mrf.mxu0
        %v986 = vadd.f32 0.0, %v985
        %v987 = vpop.f32.mrf.mxu0
        %v988 = vpop.f32.mrf.mxu0
        %v989 = vadd.f32 0.0, %v988
        %v990 = vpop.f32.mrf.mxu0
        %991 = vmatprep.mubr.bf16.mxu0 0
        %992 = vmatmul.mubr.bf16.gmra.mxu0 %v373
        %v993 = vpop.f32.mrf.mxu0
        %v994 = vadd.f32 0.0, %v993
        %v995 = vpop.f32.mrf.mxu0
        %v996 = vpop.f32.mrf.mxu0
        %v997 = vpop.f32.mrf.mxu0
        %998 = vdwg.mxu0
        %vm1004 = vcmask 1041408
        %v1005 = vrot.slane %v978, 6
        %v1006 = vrot.slane %v981, 6
        %v1007 = vsel %vm1004, %v1005, %v1006
        %v1008 = vrot.slane %v986, 6
        %v1009 = vsel %vm1004, %v1006, %v1008
        %v1010 = vrot.slane %v989, 6
        %v1011 = vsel %vm1004, %v1008, %v1010
        %v1012 = vrot.slane %v994, 6
        %v1013 = vsel %vm1004, %v1010, %v1012
        %v1019 = vadd.f32 %v921, %v1007
        %v1020 = vadd.f32 %v922, %v1009
        %v1021 = vadd.f32 %v923, %v1011
        %v1022 = vadd.f32 %v924, %v1013
        %v1023 = vadd.f32 %v925, %v1012
        %s1024 = scalar_lea.vmem %s1, 112
        %v1025 = vld [vmem:[%s1024] sm:$0xf]
        %v1026 = vld [vmem:[%s1024 + $0x4] sm:$0xf]
        %v1027 = vld [vmem:[%s1024 + $0x8] sm:$0xf]
        %v1028 = vld [vmem:[%s1024 + $0xc] sm:$0xf]
        %v1033 = vunpack.c.l.b16 %v1025
        %v1034 = vunpack.c.l.b16 %v1026
        %v1035 = vunpack.c.l.b16 %v1027
        %v1036 = vunpack.c.l.b16 %v1028
        %v1037 = vpack.c.b16 %v1034, %v1033
        %v1038 = vpack.c.b16 %v1036, %v1035
        %1041 = vmatprep.subr.bf16.mxu0 0
        %1042 = vmatpush1.bf16.msra.mxu0 0
        %1043 = vmatprep.subr.bf16.mxu0 0
        %1044 = vmatpush1.bf16.msra.mxu0 0
        %1045 = vmatprep.subr.bf16.mxu0 0
        %1046 = vmatpush1.bf16.msra.mxu0 0
        %1047 = vmatprep.subr.bf16.mxu0 0
        %1048 = vmatpush1.bf16.msra.mxu0 0
        %1049 = vmatprep.subr.bf16.mxu0 0
        %1050 = vmatpush1.bf16.msra.mxu0 0
        %1051 = vmatprep.subr.bf16.mxu0 0
        %1052 = vmatpush1.bf16.msra.mxu0 0
        %1053 = vmatprep.subr.bf16.mxu0 0
        %1054 = vmatpush1.bf16.msra.mxu0 %v1038
        %1055 = vmatprep.subr.bf16.mxu0 0
        %1056 = vmatpush1.bf16.msra.mxu0 %v1037
        %1057 = vmatprep.subr.bf16.mxu0 0
        %1058 = vmatpush2.bf16.msra.mxu0 0
        %1059 = vmatprep.subr.bf16.mxu0 0
        %1060 = vmatpush2.bf16.msra.mxu0 0
        %1061 = vmatprep.subr.bf16.mxu0 0
        %1062 = vmatpush2.bf16.msra.mxu0 0
        %1063 = vmatprep.subr.bf16.mxu0 0
        %1064 = vmatpush2.bf16.msra.mxu0 0
        %1065 = vmatprep.subr.bf16.mxu0 0
        %1066 = vmatpush2.bf16.msra.mxu0 0
        %1067 = vmatprep.subr.bf16.mxu0 0
        %1068 = vmatpush2.bf16.msra.mxu0 0
        %1069 = vmatprep.subr.bf16.mxu0 0
        %1070 = vmatpush2.bf16.msra.mxu0 0
        %1071 = vmatprep.subr.bf16.mxu0 0
        %1072 = vmatpush2.bf16.msra.mxu0 0
        %1073 = vmatprep.mubr.bf16.mxu0 0
        %1074 = vmatmul.mubr.bf16.gmra.mxu0 %v367
        %v1075 = vpop.f32.mrf.mxu0
        %v1076 = vadd.f32 0.0, %v1075
        %v1077 = vpop.f32.mrf.mxu0
        %v1078 = vpop.f32.mrf.mxu0
        %v1079 = vadd.f32 0.0, %v1078
        %v1080 = vpop.f32.mrf.mxu0
        %1081 = vmatprep.mubr.bf16.mxu0 0
        %1082 = vmatmul.mubr.bf16.gmra.mxu0 %v370
        %v1083 = vpop.f32.mrf.mxu0
        %v1084 = vadd.f32 0.0, %v1083
        %v1085 = vpop.f32.mrf.mxu0
        %v1086 = vpop.f32.mrf.mxu0
        %v1087 = vadd.f32 0.0, %v1086
        %v1088 = vpop.f32.mrf.mxu0
        %1089 = vmatprep.mubr.bf16.mxu0 0
        %1090 = vmatmul.mubr.bf16.gmra.mxu0 %v373
        %v1091 = vpop.f32.mrf.mxu0
        %v1092 = vadd.f32 0.0, %v1091
        %v1093 = vpop.f32.mrf.mxu0
        %v1094 = vpop.f32.mrf.mxu0
        %v1095 = vadd.f32 0.0, %v1094
        %v1096 = vpop.f32.mrf.mxu0
        %1097 = vdwg.mxu0
        %vm1104 = vcmask 1040384
        %v1105 = vrot.slane %v1076, 7
        %v1106 = vrot.slane %v1079, 7
        %v1107 = vsel %vm1104, %v1105, %v1106
        %v1108 = vrot.slane %v1084, 7
        %v1109 = vsel %vm1104, %v1106, %v1108
        %v1110 = vrot.slane %v1087, 7
        %v1111 = vsel %vm1104, %v1108, %v1110
        %v1112 = vrot.slane %v1092, 7
        %v1113 = vsel %vm1104, %v1110, %v1112
        %v1114 = vrot.slane %v1095, 7
        %v1115 = vsel %vm1104, %v1112, %v1114
        %v1121 = vadd.f32 %v1019, %v1107
        %v1122 = vadd.f32 %v1020, %v1109
        %v1123 = vadd.f32 %v1021, %v1111
        %v1124 = vadd.f32 %v1022, %v1113
        %v1125 = vadd.f32 %v1023, %v1115
        %s1126 = scalar_lea.vmem %s1, 128
        %v1127 = vld [vmem:[%s1126] sm:$0xf]
        %v1128 = vld [vmem:[%s1126 + $0x4] sm:$0xf]
        %v1129 = vld [vmem:[%s1126 + $0x8] sm:$0xf]
        %v1130 = vld [vmem:[%s1126 + $0xc] sm:$0xf]
        %v1135 = vunpack.c.l.b16 %v1127
        %v1136 = vunpack.c.l.b16 %v1128
        %v1137 = vunpack.c.l.b16 %v1129
        %v1138 = vunpack.c.l.b16 %v1130
        %v1139 = vpack.c.b16 %v1136, %v1135
        %v1140 = vpack.c.b16 %v1138, %v1137
        %1143 = vmatprep.subr.bf16.mxu0 0
        %1144 = vmatpush1.bf16.msra.mxu0 0
        %1145 = vmatprep.subr.bf16.mxu0 0
        %1146 = vmatpush1.bf16.msra.mxu0 0
        %1147 = vmatprep.subr.bf16.mxu0 0
        %1148 = vmatpush1.bf16.msra.mxu0 0
        %1149 = vmatprep.subr.bf16.mxu0 0
        %1150 = vmatpush1.bf16.msra.mxu0 0
        %1151 = vmatprep.subr.bf16.mxu0 0
        %1152 = vmatpush1.bf16.msra.mxu0 0
        %1153 = vmatprep.subr.bf16.mxu0 0
        %1154 = vmatpush1.bf16.msra.mxu0 0
        %1155 = vmatprep.subr.bf16.mxu0 0
        %1156 = vmatpush1.bf16.msra.mxu0 %v1140
        %1157 = vmatprep.subr.bf16.mxu0 0
        %1158 = vmatpush1.bf16.msra.mxu0 %v1139
        %1159 = vmatprep.subr.bf16.mxu0 0
        %1160 = vmatpush2.bf16.msra.mxu0 0
        %1161 = vmatprep.subr.bf16.mxu0 0
        %1162 = vmatpush2.bf16.msra.mxu0 0
        %1163 = vmatprep.subr.bf16.mxu0 0
        %1164 = vmatpush2.bf16.msra.mxu0 0
        %1165 = vmatprep.subr.bf16.mxu0 0
        %1166 = vmatpush2.bf16.msra.mxu0 0
        %1167 = vmatprep.subr.bf16.mxu0 0
        %1168 = vmatpush2.bf16.msra.mxu0 0
        %1169 = vmatprep.subr.bf16.mxu0 0
        %1170 = vmatpush2.bf16.msra.mxu0 0
        %1171 = vmatprep.subr.bf16.mxu0 0
        %1172 = vmatpush2.bf16.msra.mxu0 0
        %1173 = vmatprep.subr.bf16.mxu0 0
        %1174 = vmatpush2.bf16.msra.mxu0 0
        %1175 = vmatprep.mubr.bf16.mxu0 0
        %1176 = vmatmul.mubr.bf16.gmra.mxu0 %v367
        %v1177 = vpop.f32.mrf.mxu0
        %v1178 = vpop.f32.mrf.mxu0
        %v1179 = vpop.f32.mrf.mxu0
        %v1180 = vadd.f32 0.0, %v1179
        %v1181 = vpop.f32.mrf.mxu0
        %1182 = vmatprep.mubr.bf16.mxu0 0
        %1183 = vmatmul.mubr.bf16.gmra.mxu0 %v370
        %v1184 = vpop.f32.mrf.mxu0
        %v1185 = vadd.f32 0.0, %v1184
        %v1186 = vpop.f32.mrf.mxu0
        %v1187 = vpop.f32.mrf.mxu0
        %v1188 = vadd.f32 0.0, %v1187
        %v1189 = vpop.f32.mrf.mxu0
        %1190 = vmatprep.mubr.bf16.mxu0 0
        %1191 = vmatmul.mubr.bf16.gmra.mxu0 %v373
        %v1192 = vpop.f32.mrf.mxu0
        %v1193 = vadd.f32 0.0, %v1192
        %v1194 = vpop.f32.mrf.mxu0
        %v1195 = vpop.f32.mrf.mxu0
        %v1196 = vadd.f32 0.0, %v1195
        %v1197 = vpop.f32.mrf.mxu0
        %1198 = vdwg.mxu0
        %v1199 = vadd.f32 %v1121, %v1180
        %v1200 = vadd.f32 %v1122, %v1185
        %v1201 = vadd.f32 %v1123, %v1188
        %v1202 = vadd.f32 %v1124, %v1193
        %v1203 = vadd.f32 %v1125, %v1196
        %s1204 = scalar_lea.vmem %s1, 144
        %v1205 = vld [vmem:[%s1204] sm:$0xf]
        %v1206 = vld [vmem:[%s1204 + $0x4] sm:$0xf]
        %v1207 = vld [vmem:[%s1204 + $0x8] sm:$0xf]
        %v1208 = vld [vmem:[%s1204 + $0xc] sm:$0xf]
        %v1213 = vunpack.c.l.b16 %v1205
        %v1214 = vunpack.c.l.b16 %v1206
        %v1215 = vunpack.c.l.b16 %v1207
        %v1216 = vunpack.c.l.b16 %v1208
        %v1217 = vpack.c.b16 %v1214, %v1213
        %v1218 = vpack.c.b16 %v1216, %v1215
        %1221 = vmatprep.subr.bf16.mxu0 0
        %1222 = vmatpush1.bf16.msra.mxu0 0
        %1223 = vmatprep.subr.bf16.mxu0 0
        %1224 = vmatpush1.bf16.msra.mxu0 0
        %1225 = vmatprep.subr.bf16.mxu0 0
        %1226 = vmatpush1.bf16.msra.mxu0 0
        %1227 = vmatprep.subr.bf16.mxu0 0
        %1228 = vmatpush1.bf16.msra.mxu0 0
        %1229 = vmatprep.subr.bf16.mxu0 0
        %1230 = vmatpush1.bf16.msra.mxu0 0
        %1231 = vmatprep.subr.bf16.mxu0 0
        %1232 = vmatpush1.bf16.msra.mxu0 0
        %1233 = vmatprep.subr.bf16.mxu0 0
        %1234 = vmatpush1.bf16.msra.mxu0 %v1218
        %1235 = vmatprep.subr.bf16.mxu0 0
        %1236 = vmatpush1.bf16.msra.mxu0 %v1217
        %1237 = vmatprep.subr.bf16.mxu0 0
        %1238 = vmatpush2.bf16.msra.mxu0 0
        %1239 = vmatprep.subr.bf16.mxu0 0
        %1240 = vmatpush2.bf16.msra.mxu0 0
        %1241 = vmatprep.subr.bf16.mxu0 0
        %1242 = vmatpush2.bf16.msra.mxu0 0
        %1243 = vmatprep.subr.bf16.mxu0 0
        %1244 = vmatpush2.bf16.msra.mxu0 0
        %1245 = vmatprep.subr.bf16.mxu0 0
        %1246 = vmatpush2.bf16.msra.mxu0 0
        %1247 = vmatprep.subr.bf16.mxu0 0
        %1248 = vmatpush2.bf16.msra.mxu0 0
        %1249 = vmatprep.subr.bf16.mxu0 0
        %1250 = vmatpush2.bf16.msra.mxu0 0
        %1251 = vmatprep.subr.bf16.mxu0 0
        %1252 = vmatpush2.bf16.msra.mxu0 0
        %1253 = vmatprep.mubr.bf16.mxu0 0
        %1254 = vmatmul.mubr.bf16.gmra.mxu0 %v367
        %v1255 = vpop.f32.mrf.mxu0
        %v1256 = vpop.f32.mrf.mxu0
        %v1257 = vpop.f32.mrf.mxu0
        %v1258 = vadd.f32 0.0, %v1257
        %v1259 = vpop.f32.mrf.mxu0
        %1260 = vmatprep.mubr.bf16.mxu0 0
        %1261 = vmatmul.mubr.bf16.gmra.mxu0 %v370
        %v1262 = vpop.f32.mrf.mxu0
        %v1263 = vadd.f32 0.0, %v1262
        %v1264 = vpop.f32.mrf.mxu0
        %v1265 = vpop.f32.mrf.mxu0
        %v1266 = vadd.f32 0.0, %v1265
        %v1267 = vpop.f32.mrf.mxu0
        %1268 = vmatprep.mubr.bf16.mxu0 0
        %1269 = vmatmul.mubr.bf16.gmra.mxu0 %v373
        %v1270 = vpop.f32.mrf.mxu0
        %v1271 = vadd.f32 0.0, %v1270
        %v1272 = vpop.f32.mrf.mxu0
        %v1273 = vpop.f32.mrf.mxu0
        %v1274 = vadd.f32 0.0, %v1273
        %v1275 = vpop.f32.mrf.mxu0
        %1276 = vdwg.mxu0
        %v1282 = vrot.slane %v1258, 1
        %v1283 = vrot.slane %v1263, 1
        %v1284 = vsel %vm514, %v1282, %v1283
        %v1285 = vrot.slane %v1266, 1
        %v1286 = vsel %vm514, %v1283, %v1285
        %v1287 = vrot.slane %v1271, 1
        %v1288 = vsel %vm514, %v1285, %v1287
        %v1289 = vrot.slane %v1274, 1
        %v1290 = vsel %vm514, %v1287, %v1289
        %v1296 = vadd.f32 %v1199, %v1284
        %v1297 = vadd.f32 %v1200, %v1286
        %v1298 = vadd.f32 %v1201, %v1288
        %v1299 = vadd.f32 %v1202, %v1290
        %v1300 = vadd.f32 %v1203, %v1289
        %v1301 = vld [vmem:[%s2] sm:$0x1]
        %v1303 = vlaneseq
        %v1304 = vshrl.u32 %v1303, 7
        %v1305 = vsub.s32 0, %v1304
        %v1306 = vrot.slane %v1301, %v1305
        %v1308 = vadd.f32 %v1296, %v1306
        %v1309 = vadd.f32 %v1297, %v1306
        %v1310 = vadd.f32 %v1298, %v1306
        %v1311 = vadd.f32 %v1299, %v1306
        %v1312 = vadd.f32 %v1300, %v1306
        %v1313 = vmax.f32 %v1308, 0.0
        %v1314 = vmax.f32 %v1309, 0.0
        %v1315 = vmax.f32 %v1310, 0.0
        %v1316 = vmax.f32 %v1311, 0.0
        %v1317 = vmax.f32 %v1312, 0.0
        %v1323 = vrot.slane %v1313, 4
        %v1324 = vrot.slane %v1314, 4
        %v1325 = vsel %vm808, %v1323, %v1324
        %v1326 = vrot.slane %v1315, 4
        %v1327 = vsel %vm808, %v1324, %v1326
        %v1328 = vrot.slane %v1316, 4
        %v1329 = vsel %vm808, %v1326, %v1328
        %v1330 = vrot.slane %v1317, 4
        %v1331 = vsel %vm808, %v1328, %v1330
        %v1337 = vadd.f32 %v329, %v1323
        %v1338 = vadd.f32 %v330, %v1325
        %v1339 = vadd.f32 %v331, %v1327
        %v1340 = vadd.f32 %v332, %v1329
        %v1341 = vadd.f32 %v333, %v1331
        %v1342 = vlaneseq
        %v1343 = vshrl.u32 %v1342, 7
        %v1344 = vadd.s32 %v1343, 8
        %v1345 = vadd.s32 %v1343, 16
        %v1346 = vadd.s32 %v1343, 24
        %v1347 = vadd.s32 %v1343, 32
        %s1348 = ssub.s32 %s322, 8
        %v1349 = vstv %s1348
        %v1350 = vadd.s32 %v1343, %v1349
        %v1351 = vadd.s32 %v1344, %v1349
        %v1352 = vadd.s32 %v1345, %v1349
        %v1353 = vadd.s32 %v1346, %v1349
        %v1354 = vadd.s32 %v1347, %v1349
        %vm1355 = vcmp.ge.s32.totalorder %v1350, 0
        %vm1356 = vcmp.ge.s32.totalorder %v1351, 0
        %vm1357 = vcmp.ge.s32.totalorder %v1352, 0
        %vm1358 = vcmp.ge.s32.totalorder %v1353, 0
        %vm1359 = vcmp.ge.s32.totalorder %v1354, 0
        %vm1360 = vcmp.lt.s32.totalorder %v1350, 60
        %vm1361 = vcmp.lt.s32.totalorder %v1351, 60
        %vm1362 = vcmp.lt.s32.totalorder %v1352, 60
        %vm1363 = vcmp.lt.s32.totalorder %v1353, 60
        %vm1364 = vcmp.lt.s32.totalorder %v1354, 60
        %vm1365 = vmand %vm1355, %vm1360
        %vm1366 = vmand %vm1356, %vm1361
        %vm1367 = vmand %vm1357, %vm1362
        %vm1368 = vmand %vm1358, %vm1363
        %vm1369 = vmand %vm1359, %vm1364
        %v1370 = vsel %vm1365, 1, 0
        %v1371 = vsel %vm1366, 1, 0
        %v1372 = vsel %vm1367, 1, 0
        %v1373 = vsel %vm1368, 1, 0
        %v1374 = vsel %vm1369, 1, 0
        %vm1375 = vcmp.eq.s32.totalorder %v1370, 1
        %vm1376 = vcmp.eq.s32.totalorder %v1371, 1
        %vm1377 = vcmp.eq.s32.totalorder %v1372, 1
        %vm1378 = vcmp.eq.s32.totalorder %v1373, 1
        %vm1379 = vcmp.eq.s32.totalorder %v1374, 1
        %v1385 = vrot.slane %v1337, 4
        %v1386 = vrot.slane %v1338, 4
        %v1387 = vsel %vm808, %v1385, %v1386
        %v1388 = vrot.slane %v1339, 4
        %v1389 = vsel %vm808, %v1386, %v1388
        %v1390 = vrot.slane %v1340, 4
        %v1391 = vsel %vm808, %v1388, %v1390
        %v1392 = vrot.slane %v1341, 4
        %v1393 = vsel %vm808, %v1390, %v1392
        %v1399 = vsel %vm1375, %v1387, 0.0
        %v1400 = vsel %vm1376, %v1389, 0.0
        %v1401 = vsel %vm1377, %v1391, 0.0
        %v1402 = vsel %vm1378, %v1393, 0.0
        %v1403 = vsel %vm1379, %v1392, 0.0
        %v1404 = vpack.c.bf16 %v1400, %v1399
        %v1405 = vpack.c.bf16 %v1402, %v1401
        %v1406 = vpack.c.bf16 %v1403, %v1403
        %v1410 = vunpack.c.l.b16 %v1404
        %v1411 = vunpack.c.h.b16 %v1404
        %v1412 = vunpack.c.l.b16 %v1405
        %v1413 = vunpack.c.h.b16 %v1405
        %v1414 = vunpack.c.l.b16 %v1406
        %v1415 = vpack.c.b16 %v1410, %v1410
        %v1416 = vpack.c.b16 %v1411, %v1411
        %v1417 = vpack.c.b16 %v1412, %v1412
        %v1418 = vpack.c.b16 %v1413, %v1413
        %v1419 = vpack.c.b16 %v1414, %v1414
        %vm1425 = vcmask 257024
        %1426 = vst.msk [vmem:[#allocation2] sm:$0xf] %vm1425, %v1415
        %1427 = vst.msk [vmem:[#allocation2 + $0x4] sm:$0xf] %vm1425, %v1416
        %1428 = vst.msk [vmem:[#allocation2 + $0x8] sm:$0xf] %vm1425, %v1417
        %1429 = vst.msk [vmem:[#allocation2 + $0xc] sm:$0xf] %vm1425, %v1418
        %vm1430 = vcmask 253952
        %1431 = vst.msk [vmem:[#allocation2 + $0x10] sm:$0x1] %vm1430, %v1419
        %v1432 = vld [vmem:[#allocation2] sm:$0xf]
        %v1433 = vld [vmem:[#allocation2 + $0x4] sm:$0xf]
        %v1434 = vld [vmem:[#allocation2 + $0x8] sm:$0xf]
        %v1435 = vld [vmem:[#allocation2 + $0xc] sm:$0xf]
        %v1436 = vld [vmem:[#allocation2 + $0x10] sm:$0x1]
        %v1437 = vld [vmem:[%s3] sm:$0xf]
        %v1438 = vld [vmem:[%s3 + $0x4] sm:$0xf]
        %v1439 = vld [vmem:[%s3 + $0x8] sm:$0xf]
        %v1440 = vld [vmem:[%s3 + $0xc] sm:$0xf]
        %v1446 = vunpack.c.l.b16 %v1432
        %v1447 = vunpack.c.l.b16 %v1433
        %v1448 = vunpack.c.l.b16 %v1434
        %v1449 = vunpack.c.l.b16 %v1435
        %v1450 = vunpack.c.l.b16 %v1436
        %v1451 = vpack.c.b16 %v1447, %v1446
        %v1452 = vpack.c.b16 %v1449, %v1448
        %v1453 = vpack.c.b16 %v1450, %v1450
        %v1458 = vunpack.c.l.b16 %v1437
        %v1459 = vunpack.c.l.b16 %v1438
        %v1460 = vunpack.c.l.b16 %v1439
        %v1461 = vunpack.c.l.b16 %v1440
        %v1462 = vpack.c.b16 %v1459, %v1458
        %v1463 = vpack.c.b16 %v1461, %v1460
        %v1467 = vsel %vm365, %v1451, 0
        %v1470 = vsel %vm365, %v1452, 0
        %v1473 = vsel %vm365, %v1453, 0
        %1475 = vmatprep.subr.bf16.mxu0 0
        %1476 = vmatpush1.bf16.msra.mxu0 0
        %1477 = vmatprep.subr.bf16.mxu0 0
        %1478 = vmatpush1.bf16.msra.mxu0 0
        %1479 = vmatprep.subr.bf16.mxu0 0
        %1480 = vmatpush1.bf16.msra.mxu0 0
        %1481 = vmatprep.subr.bf16.mxu0 0
        %1482 = vmatpush1.bf16.msra.mxu0 0
        %1483 = vmatprep.subr.bf16.mxu0 0
        %1484 = vmatpush1.bf16.msra.mxu0 0
        %1485 = vmatprep.subr.bf16.mxu0 0
        %1486 = vmatpush1.bf16.msra.mxu0 0
        %1487 = vmatprep.subr.bf16.mxu0 0
        %1488 = vmatpush1.bf16.msra.mxu0 %v1463
        %1489 = vmatprep.subr.bf16.mxu0 0
        %1490 = vmatpush1.bf16.msra.mxu0 %v1462
        %1491 = vmatprep.subr.bf16.mxu0 0
        %1492 = vmatpush2.bf16.msra.mxu0 0
        %1493 = vmatprep.subr.bf16.mxu0 0
        %1494 = vmatpush2.bf16.msra.mxu0 0
        %1495 = vmatprep.subr.bf16.mxu0 0
        %1496 = vmatpush2.bf16.msra.mxu0 0
        %1497 = vmatprep.subr.bf16.mxu0 0
        %1498 = vmatpush2.bf16.msra.mxu0 0
        %1499 = vmatprep.subr.bf16.mxu0 0
        %1500 = vmatpush2.bf16.msra.mxu0 0
        %1501 = vmatprep.subr.bf16.mxu0 0
        %1502 = vmatpush2.bf16.msra.mxu0 0
        %1503 = vmatprep.subr.bf16.mxu0 0
        %1504 = vmatpush2.bf16.msra.mxu0 0
        %1505 = vmatprep.subr.bf16.mxu0 0
        %1506 = vmatpush2.bf16.msra.mxu0 0
        %1507 = vmatprep.mubr.bf16.mxu0 0
        %1508 = vmatmul.mubr.bf16.gmra.mxu0 %v1467
        %v1509 = vpop.f32.mrf.mxu0
        %v1510 = vadd.f32 0.0, %v1509
        %v1511 = vpop.f32.mrf.mxu0
        %v1512 = vpop.f32.mrf.mxu0
        %v1513 = vadd.f32 0.0, %v1512
        %v1514 = vpop.f32.mrf.mxu0
        %1515 = vmatprep.mubr.bf16.mxu0 0
        %1516 = vmatmul.mubr.bf16.gmra.mxu0 %v1470
        %v1517 = vpop.f32.mrf.mxu0
        %v1518 = vadd.f32 0.0, %v1517
        %v1519 = vpop.f32.mrf.mxu0
        %v1520 = vpop.f32.mrf.mxu0
        %v1521 = vadd.f32 0.0, %v1520
        %v1522 = vpop.f32.mrf.mxu0
        %1523 = vmatprep.mubr.bf16.mxu0 0
        %1524 = vmatmul.mubr.bf16.gmra.mxu0 %v1473
        %v1525 = vpop.f32.mrf.mxu0
        %v1526 = vpop.f32.mrf.mxu0
        %v1527 = vpop.f32.mrf.mxu0
        %v1528 = vpop.f32.mrf.mxu0
        %1529 = vdwg.mxu0
        %v1530 = vadd.f32 %v1510, 0.0
        %v1531 = vadd.f32 %v1513, 0.0
        %v1532 = vadd.f32 %v1518, 0.0
        %v1533 = vadd.f32 %v1521, 0.0
        %s1534 = scalar_lea.vmem %s3, 16
        %v1535 = vld [vmem:[%s1534] sm:$0xf]
        %v1536 = vld [vmem:[%s1534 + $0x4] sm:$0xf]
        %v1537 = vld [vmem:[%s1534 + $0x8] sm:$0xf]
        %v1538 = vld [vmem:[%s1534 + $0xc] sm:$0xf]
        %v1543 = vunpack.c.l.b16 %v1535
        %v1544 = vunpack.c.l.b16 %v1536
        %v1545 = vunpack.c.l.b16 %v1537
        %v1546 = vunpack.c.l.b16 %v1538
        %v1547 = vpack.c.b16 %v1544, %v1543
        %v1548 = vpack.c.b16 %v1546, %v1545
        %1551 = vmatprep.subr.bf16.mxu0 0
        %1552 = vmatpush1.bf16.msra.mxu0 0
        %1553 = vmatprep.subr.bf16.mxu0 0
        %1554 = vmatpush1.bf16.msra.mxu0 0
        %1555 = vmatprep.subr.bf16.mxu0 0
        %1556 = vmatpush1.bf16.msra.mxu0 0
        %1557 = vmatprep.subr.bf16.mxu0 0
        %1558 = vmatpush1.bf16.msra.mxu0 0
        %1559 = vmatprep.subr.bf16.mxu0 0
        %1560 = vmatpush1.bf16.msra.mxu0 0
        %1561 = vmatprep.subr.bf16.mxu0 0
        %1562 = vmatpush1.bf16.msra.mxu0 0
        %1563 = vmatprep.subr.bf16.mxu0 0
        %1564 = vmatpush1.bf16.msra.mxu0 %v1548
        %1565 = vmatprep.subr.bf16.mxu0 0
        %1566 = vmatpush1.bf16.msra.mxu0 %v1547
        %1567 = vmatprep.subr.bf16.mxu0 0
        %1568 = vmatpush2.bf16.msra.mxu0 0
        %1569 = vmatprep.subr.bf16.mxu0 0
        %1570 = vmatpush2.bf16.msra.mxu0 0
        %1571 = vmatprep.subr.bf16.mxu0 0
        %1572 = vmatpush2.bf16.msra.mxu0 0
        %1573 = vmatprep.subr.bf16.mxu0 0
        %1574 = vmatpush2.bf16.msra.mxu0 0
        %1575 = vmatprep.subr.bf16.mxu0 0
        %1576 = vmatpush2.bf16.msra.mxu0 0
        %1577 = vmatprep.subr.bf16.mxu0 0
        %1578 = vmatpush2.bf16.msra.mxu0 0
        %1579 = vmatprep.subr.bf16.mxu0 0
        %1580 = vmatpush2.bf16.msra.mxu0 0
        %1581 = vmatprep.subr.bf16.mxu0 0
        %1582 = vmatpush2.bf16.msra.mxu0 0
        %1583 = vmatprep.mubr.bf16.mxu0 0
        %1584 = vmatmul.mubr.bf16.gmra.mxu0 %v1467
        %v1585 = vpop.f32.mrf.mxu0
        %v1586 = vadd.f32 0.0, %v1585
        %v1587 = vpop.f32.mrf.mxu0
        %v1588 = vpop.f32.mrf.mxu0
        %v1589 = vadd.f32 0.0, %v1588
        %v1590 = vpop.f32.mrf.mxu0
        %1591 = vmatprep.mubr.bf16.mxu0 0
        %1592 = vmatmul.mubr.bf16.gmra.mxu0 %v1470
        %v1593 = vpop.f32.mrf.mxu0
        %v1594 = vadd.f32 0.0, %v1593
        %v1595 = vpop.f32.mrf.mxu0
        %v1596 = vpop.f32.mrf.mxu0
        %v1597 = vadd.f32 0.0, %v1596
        %v1598 = vpop.f32.mrf.mxu0
        %1599 = vmatprep.mubr.bf16.mxu0 0
        %1600 = vmatmul.mubr.bf16.gmra.mxu0 %v1473
        %v1601 = vpop.f32.mrf.mxu0
        %v1602 = vpop.f32.mrf.mxu0
        %v1603 = vpop.f32.mrf.mxu0
        %v1604 = vpop.f32.mrf.mxu0
        %1605 = vdwg.mxu0
        %v1610 = vrot.slane %v1586, 1
        %v1611 = vrot.slane %v1589, 1
        %v1612 = vsel %vm514, %v1610, %v1611
        %v1613 = vrot.slane %v1594, 1
        %v1614 = vsel %vm514, %v1611, %v1613
        %v1615 = vrot.slane %v1597, 1
        %v1616 = vsel %vm514, %v1613, %v1615
        %v1621 = vadd.f32 %v1530, %v1612
        %v1622 = vadd.f32 %v1531, %v1614
        %v1623 = vadd.f32 %v1532, %v1616
        %v1624 = vadd.f32 %v1533, %v1615
        %s1625 = scalar_lea.vmem %s3, 32
        %v1626 = vld [vmem:[%s1625] sm:$0xf]
        %v1627 = vld [vmem:[%s1625 + $0x4] sm:$0xf]
        %v1628 = vld [vmem:[%s1625 + $0x8] sm:$0xf]
        %v1629 = vld [vmem:[%s1625 + $0xc] sm:$0xf]
        %v1634 = vunpack.c.l.b16 %v1626
        %v1635 = vunpack.c.l.b16 %v1627
        %v1636 = vunpack.c.l.b16 %v1628
        %v1637 = vunpack.c.l.b16 %v1629
        %v1638 = vpack.c.b16 %v1635, %v1634
        %v1639 = vpack.c.b16 %v1637, %v1636
        %1642 = vmatprep.subr.bf16.mxu0 0
        %1643 = vmatpush1.bf16.msra.mxu0 0
        %1644 = vmatprep.subr.bf16.mxu0 0
        %1645 = vmatpush1.bf16.msra.mxu0 0
        %1646 = vmatprep.subr.bf16.mxu0 0
        %1647 = vmatpush1.bf16.msra.mxu0 0
        %1648 = vmatprep.subr.bf16.mxu0 0
        %1649 = vmatpush1.bf16.msra.mxu0 0
        %1650 = vmatprep.subr.bf16.mxu0 0
        %1651 = vmatpush1.bf16.msra.mxu0 0
        %1652 = vmatprep.subr.bf16.mxu0 0
        %1653 = vmatpush1.bf16.msra.mxu0 0
        %1654 = vmatprep.subr.bf16.mxu0 0
        %1655 = vmatpush1.bf16.msra.mxu0 %v1639
        %1656 = vmatprep.subr.bf16.mxu0 0
        %1657 = vmatpush1.bf16.msra.mxu0 %v1638
        %1658 = vmatprep.subr.bf16.mxu0 0
        %1659 = vmatpush2.bf16.msra.mxu0 0
        %1660 = vmatprep.subr.bf16.mxu0 0
        %1661 = vmatpush2.bf16.msra.mxu0 0
        %1662 = vmatprep.subr.bf16.mxu0 0
        %1663 = vmatpush2.bf16.msra.mxu0 0
        %1664 = vmatprep.subr.bf16.mxu0 0
        %1665 = vmatpush2.bf16.msra.mxu0 0
        %1666 = vmatprep.subr.bf16.mxu0 0
        %1667 = vmatpush2.bf16.msra.mxu0 0
        %1668 = vmatprep.subr.bf16.mxu0 0
        %1669 = vmatpush2.bf16.msra.mxu0 0
        %1670 = vmatprep.subr.bf16.mxu0 0
        %1671 = vmatpush2.bf16.msra.mxu0 0
        %1672 = vmatprep.subr.bf16.mxu0 0
        %1673 = vmatpush2.bf16.msra.mxu0 0
        %1674 = vmatprep.mubr.bf16.mxu0 0
        %1675 = vmatmul.mubr.bf16.gmra.mxu0 %v1467
        %v1676 = vpop.f32.mrf.mxu0
        %v1677 = vadd.f32 0.0, %v1676
        %v1678 = vpop.f32.mrf.mxu0
        %v1679 = vpop.f32.mrf.mxu0
        %v1680 = vadd.f32 0.0, %v1679
        %v1681 = vpop.f32.mrf.mxu0
        %1682 = vmatprep.mubr.bf16.mxu0 0
        %1683 = vmatmul.mubr.bf16.gmra.mxu0 %v1470
        %v1684 = vpop.f32.mrf.mxu0
        %v1685 = vadd.f32 0.0, %v1684
        %v1686 = vpop.f32.mrf.mxu0
        %v1687 = vpop.f32.mrf.mxu0
        %v1688 = vadd.f32 0.0, %v1687
        %v1689 = vpop.f32.mrf.mxu0
        %1690 = vmatprep.mubr.bf16.mxu0 0
        %1691 = vmatmul.mubr.bf16.gmra.mxu0 %v1473
        %v1692 = vpop.f32.mrf.mxu0
        %v1693 = vpop.f32.mrf.mxu0
        %v1694 = vpop.f32.mrf.mxu0
        %v1695 = vpop.f32.mrf.mxu0
        %1696 = vdwg.mxu0
        %v1701 = vrot.slane %v1677, 2
        %v1702 = vrot.slane %v1680, 2
        %v1703 = vsel %vm612, %v1701, %v1702
        %v1704 = vrot.slane %v1685, 2
        %v1705 = vsel %vm612, %v1702, %v1704
        %v1706 = vrot.slane %v1688, 2
        %v1707 = vsel %vm612, %v1704, %v1706
        %v1712 = vadd.f32 %v1621, %v1703
        %v1713 = vadd.f32 %v1622, %v1705
        %v1714 = vadd.f32 %v1623, %v1707
        %v1715 = vadd.f32 %v1624, %v1706
        %s1716 = scalar_lea.vmem %s3, 48
        %v1717 = vld [vmem:[%s1716] sm:$0xf]
        %v1718 = vld [vmem:[%s1716 + $0x4] sm:$0xf]
        %v1719 = vld [vmem:[%s1716 + $0x8] sm:$0xf]
        %v1720 = vld [vmem:[%s1716 + $0xc] sm:$0xf]
        %v1725 = vunpack.c.l.b16 %v1717
        %v1726 = vunpack.c.l.b16 %v1718
        %v1727 = vunpack.c.l.b16 %v1719
        %v1728 = vunpack.c.l.b16 %v1720
        %v1729 = vpack.c.b16 %v1726, %v1725
        %v1730 = vpack.c.b16 %v1728, %v1727
        %1733 = vmatprep.subr.bf16.mxu0 0
        %1734 = vmatpush1.bf16.msra.mxu0 0
        %1735 = vmatprep.subr.bf16.mxu0 0
        %1736 = vmatpush1.bf16.msra.mxu0 0
        %1737 = vmatprep.subr.bf16.mxu0 0
        %1738 = vmatpush1.bf16.msra.mxu0 0
        %1739 = vmatprep.subr.bf16.mxu0 0
        %1740 = vmatpush1.bf16.msra.mxu0 0
        %1741 = vmatprep.subr.bf16.mxu0 0
        %1742 = vmatpush1.bf16.msra.mxu0 0
        %1743 = vmatprep.subr.bf16.mxu0 0
        %1744 = vmatpush1.bf16.msra.mxu0 0
        %1745 = vmatprep.subr.bf16.mxu0 0
        %1746 = vmatpush1.bf16.msra.mxu0 %v1730
        %1747 = vmatprep.subr.bf16.mxu0 0
        %1748 = vmatpush1.bf16.msra.mxu0 %v1729
        %1749 = vmatprep.subr.bf16.mxu0 0
        %1750 = vmatpush2.bf16.msra.mxu0 0
        %1751 = vmatprep.subr.bf16.mxu0 0
        %1752 = vmatpush2.bf16.msra.mxu0 0
        %1753 = vmatprep.subr.bf16.mxu0 0
        %1754 = vmatpush2.bf16.msra.mxu0 0
        %1755 = vmatprep.subr.bf16.mxu0 0
        %1756 = vmatpush2.bf16.msra.mxu0 0
        %1757 = vmatprep.subr.bf16.mxu0 0
        %1758 = vmatpush2.bf16.msra.mxu0 0
        %1759 = vmatprep.subr.bf16.mxu0 0
        %1760 = vmatpush2.bf16.msra.mxu0 0
        %1761 = vmatprep.subr.bf16.mxu0 0
        %1762 = vmatpush2.bf16.msra.mxu0 0
        %1763 = vmatprep.subr.bf16.mxu0 0
        %1764 = vmatpush2.bf16.msra.mxu0 0
        %1765 = vmatprep.mubr.bf16.mxu0 0
        %1766 = vmatmul.mubr.bf16.gmra.mxu0 %v1467
        %v1767 = vpop.f32.mrf.mxu0
        %v1768 = vadd.f32 0.0, %v1767
        %v1769 = vpop.f32.mrf.mxu0
        %v1770 = vpop.f32.mrf.mxu0
        %v1771 = vadd.f32 0.0, %v1770
        %v1772 = vpop.f32.mrf.mxu0
        %1773 = vmatprep.mubr.bf16.mxu0 0
        %1774 = vmatmul.mubr.bf16.gmra.mxu0 %v1470
        %v1775 = vpop.f32.mrf.mxu0
        %v1776 = vadd.f32 0.0, %v1775
        %v1777 = vpop.f32.mrf.mxu0
        %v1778 = vpop.f32.mrf.mxu0
        %v1779 = vadd.f32 0.0, %v1778
        %v1780 = vpop.f32.mrf.mxu0
        %1781 = vmatprep.mubr.bf16.mxu0 0
        %1782 = vmatmul.mubr.bf16.gmra.mxu0 %v1473
        %v1783 = vpop.f32.mrf.mxu0
        %v1784 = vpop.f32.mrf.mxu0
        %v1785 = vpop.f32.mrf.mxu0
        %v1786 = vpop.f32.mrf.mxu0
        %1787 = vdwg.mxu0
        %v1792 = vrot.slane %v1768, 3
        %v1793 = vrot.slane %v1771, 3
        %v1794 = vsel %vm710, %v1792, %v1793
        %v1795 = vrot.slane %v1776, 3
        %v1796 = vsel %vm710, %v1793, %v1795
        %v1797 = vrot.slane %v1779, 3
        %v1798 = vsel %vm710, %v1795, %v1797
        %v1803 = vadd.f32 %v1712, %v1794
        %v1804 = vadd.f32 %v1713, %v1796
        %v1805 = vadd.f32 %v1714, %v1798
        %v1806 = vadd.f32 %v1715, %v1797
        %s1807 = scalar_lea.vmem %s3, 64
        %v1808 = vld [vmem:[%s1807] sm:$0xf]
        %v1809 = vld [vmem:[%s1807 + $0x4] sm:$0xf]
        %v1810 = vld [vmem:[%s1807 + $0x8] sm:$0xf]
        %v1811 = vld [vmem:[%s1807 + $0xc] sm:$0xf]
        %v1816 = vunpack.c.l.b16 %v1808
        %v1817 = vunpack.c.l.b16 %v1809
        %v1818 = vunpack.c.l.b16 %v1810
        %v1819 = vunpack.c.l.b16 %v1811
        %v1820 = vpack.c.b16 %v1817, %v1816
        %v1821 = vpack.c.b16 %v1819, %v1818
        %1824 = vmatprep.subr.bf16.mxu0 0
        %1825 = vmatpush1.bf16.msra.mxu0 0
        %1826 = vmatprep.subr.bf16.mxu0 0
        %1827 = vmatpush1.bf16.msra.mxu0 0
        %1828 = vmatprep.subr.bf16.mxu0 0
        %1829 = vmatpush1.bf16.msra.mxu0 0
        %1830 = vmatprep.subr.bf16.mxu0 0
        %1831 = vmatpush1.bf16.msra.mxu0 0
        %1832 = vmatprep.subr.bf16.mxu0 0
        %1833 = vmatpush1.bf16.msra.mxu0 0
        %1834 = vmatprep.subr.bf16.mxu0 0
        %1835 = vmatpush1.bf16.msra.mxu0 0
        %1836 = vmatprep.subr.bf16.mxu0 0
        %1837 = vmatpush1.bf16.msra.mxu0 %v1821
        %1838 = vmatprep.subr.bf16.mxu0 0
        %1839 = vmatpush1.bf16.msra.mxu0 %v1820
        %1840 = vmatprep.subr.bf16.mxu0 0
        %1841 = vmatpush2.bf16.msra.mxu0 0
        %1842 = vmatprep.subr.bf16.mxu0 0
        %1843 = vmatpush2.bf16.msra.mxu0 0
        %1844 = vmatprep.subr.bf16.mxu0 0
        %1845 = vmatpush2.bf16.msra.mxu0 0
        %1846 = vmatprep.subr.bf16.mxu0 0
        %1847 = vmatpush2.bf16.msra.mxu0 0
        %1848 = vmatprep.subr.bf16.mxu0 0
        %1849 = vmatpush2.bf16.msra.mxu0 0
        %1850 = vmatprep.subr.bf16.mxu0 0
        %1851 = vmatpush2.bf16.msra.mxu0 0
        %1852 = vmatprep.subr.bf16.mxu0 0
        %1853 = vmatpush2.bf16.msra.mxu0 0
        %1854 = vmatprep.subr.bf16.mxu0 0
        %1855 = vmatpush2.bf16.msra.mxu0 0
        %1856 = vmatprep.mubr.bf16.mxu0 0
        %1857 = vmatmul.mubr.bf16.gmra.mxu0 %v1467
        %v1858 = vpop.f32.mrf.mxu0
        %v1859 = vadd.f32 0.0, %v1858
        %v1860 = vpop.f32.mrf.mxu0
        %v1861 = vpop.f32.mrf.mxu0
        %v1862 = vadd.f32 0.0, %v1861
        %v1863 = vpop.f32.mrf.mxu0
        %1864 = vmatprep.mubr.bf16.mxu0 0
        %1865 = vmatmul.mubr.bf16.gmra.mxu0 %v1470
        %v1866 = vpop.f32.mrf.mxu0
        %v1867 = vadd.f32 0.0, %v1866
        %v1868 = vpop.f32.mrf.mxu0
        %v1869 = vpop.f32.mrf.mxu0
        %v1870 = vadd.f32 0.0, %v1869
        %v1871 = vpop.f32.mrf.mxu0
        %1872 = vmatprep.mubr.bf16.mxu0 0
        %1873 = vmatmul.mubr.bf16.gmra.mxu0 %v1473
        %v1874 = vpop.f32.mrf.mxu0
        %v1875 = vpop.f32.mrf.mxu0
        %v1876 = vpop.f32.mrf.mxu0
        %v1877 = vpop.f32.mrf.mxu0
        %1878 = vdwg.mxu0
        %v1883 = vrot.slane %v1859, 4
        %v1884 = vrot.slane %v1862, 4
        %v1885 = vsel %vm808, %v1883, %v1884
        %v1886 = vrot.slane %v1867, 4
        %v1887 = vsel %vm808, %v1884, %v1886
        %v1888 = vrot.slane %v1870, 4
        %v1889 = vsel %vm808, %v1886, %v1888
        %v1894 = vadd.f32 %v1803, %v1885
        %v1895 = vadd.f32 %v1804, %v1887
        %v1896 = vadd.f32 %v1805, %v1889
        %v1897 = vadd.f32 %v1806, %v1888
        %s1898 = scalar_lea.vmem %s3, 80
        %v1899 = vld [vmem:[%s1898] sm:$0xf]
        %v1900 = vld [vmem:[%s1898 + $0x4] sm:$0xf]
        %v1901 = vld [vmem:[%s1898 + $0x8] sm:$0xf]
        %v1902 = vld [vmem:[%s1898 + $0xc] sm:$0xf]
        %v1907 = vunpack.c.l.b16 %v1899
        %v1908 = vunpack.c.l.b16 %v1900
        %v1909 = vunpack.c.l.b16 %v1901
        %v1910 = vunpack.c.l.b16 %v1902
        %v1911 = vpack.c.b16 %v1908, %v1907
        %v1912 = vpack.c.b16 %v1910, %v1909
        %1915 = vmatprep.subr.bf16.mxu0 0
        %1916 = vmatpush1.bf16.msra.mxu0 0
        %1917 = vmatprep.subr.bf16.mxu0 0
        %1918 = vmatpush1.bf16.msra.mxu0 0
        %1919 = vmatprep.subr.bf16.mxu0 0
        %1920 = vmatpush1.bf16.msra.mxu0 0
        %1921 = vmatprep.subr.bf16.mxu0 0
        %1922 = vmatpush1.bf16.msra.mxu0 0
        %1923 = vmatprep.subr.bf16.mxu0 0
        %1924 = vmatpush1.bf16.msra.mxu0 0
        %1925 = vmatprep.subr.bf16.mxu0 0
        %1926 = vmatpush1.bf16.msra.mxu0 0
        %1927 = vmatprep.subr.bf16.mxu0 0
        %1928 = vmatpush1.bf16.msra.mxu0 %v1912
        %1929 = vmatprep.subr.bf16.mxu0 0
        %1930 = vmatpush1.bf16.msra.mxu0 %v1911
        %1931 = vmatprep.subr.bf16.mxu0 0
        %1932 = vmatpush2.bf16.msra.mxu0 0
        %1933 = vmatprep.subr.bf16.mxu0 0
        %1934 = vmatpush2.bf16.msra.mxu0 0
        %1935 = vmatprep.subr.bf16.mxu0 0
        %1936 = vmatpush2.bf16.msra.mxu0 0
        %1937 = vmatprep.subr.bf16.mxu0 0
        %1938 = vmatpush2.bf16.msra.mxu0 0
        %1939 = vmatprep.subr.bf16.mxu0 0
        %1940 = vmatpush2.bf16.msra.mxu0 0
        %1941 = vmatprep.subr.bf16.mxu0 0
        %1942 = vmatpush2.bf16.msra.mxu0 0
        %1943 = vmatprep.subr.bf16.mxu0 0
        %1944 = vmatpush2.bf16.msra.mxu0 0
        %1945 = vmatprep.subr.bf16.mxu0 0
        %1946 = vmatpush2.bf16.msra.mxu0 0
        %1947 = vmatprep.mubr.bf16.mxu0 0
        %1948 = vmatmul.mubr.bf16.gmra.mxu0 %v1467
        %v1949 = vpop.f32.mrf.mxu0
        %v1950 = vadd.f32 0.0, %v1949
        %v1951 = vpop.f32.mrf.mxu0
        %v1952 = vpop.f32.mrf.mxu0
        %v1953 = vadd.f32 0.0, %v1952
        %v1954 = vpop.f32.mrf.mxu0
        %1955 = vmatprep.mubr.bf16.mxu0 0
        %1956 = vmatmul.mubr.bf16.gmra.mxu0 %v1470
        %v1957 = vpop.f32.mrf.mxu0
        %v1958 = vadd.f32 0.0, %v1957
        %v1959 = vpop.f32.mrf.mxu0
        %v1960 = vpop.f32.mrf.mxu0
        %v1961 = vadd.f32 0.0, %v1960
        %v1962 = vpop.f32.mrf.mxu0
        %1963 = vmatprep.mubr.bf16.mxu0 0
        %1964 = vmatmul.mubr.bf16.gmra.mxu0 %v1473
        %v1965 = vpop.f32.mrf.mxu0
        %v1966 = vpop.f32.mrf.mxu0
        %v1967 = vpop.f32.mrf.mxu0
        %v1968 = vpop.f32.mrf.mxu0
        %1969 = vdwg.mxu0
        %v1974 = vrot.slane %v1950, 5
        %v1975 = vrot.slane %v1953, 5
        %v1976 = vsel %vm906, %v1974, %v1975
        %v1977 = vrot.slane %v1958, 5
        %v1978 = vsel %vm906, %v1975, %v1977
        %v1979 = vrot.slane %v1961, 5
        %v1980 = vsel %vm906, %v1977, %v1979
        %v1985 = vadd.f32 %v1894, %v1976
        %v1986 = vadd.f32 %v1895, %v1978
        %v1987 = vadd.f32 %v1896, %v1980
        %v1988 = vadd.f32 %v1897, %v1979
        %s1989 = scalar_lea.vmem %s3, 96
        %v1990 = vld [vmem:[%s1989] sm:$0xf]
        %v1991 = vld [vmem:[%s1989 + $0x4] sm:$0xf]
        %v1992 = vld [vmem:[%s1989 + $0x8] sm:$0xf]
        %v1993 = vld [vmem:[%s1989 + $0xc] sm:$0xf]
        %v1998 = vunpack.c.l.b16 %v1990
        %v1999 = vunpack.c.l.b16 %v1991
        %v2000 = vunpack.c.l.b16 %v1992
        %v2001 = vunpack.c.l.b16 %v1993
        %v2002 = vpack.c.b16 %v1999, %v1998
        %v2003 = vpack.c.b16 %v2001, %v2000
        %2006 = vmatprep.subr.bf16.mxu0 0
        %2007 = vmatpush1.bf16.msra.mxu0 0
        %2008 = vmatprep.subr.bf16.mxu0 0
        %2009 = vmatpush1.bf16.msra.mxu0 0
        %2010 = vmatprep.subr.bf16.mxu0 0
        %2011 = vmatpush1.bf16.msra.mxu0 0
        %2012 = vmatprep.subr.bf16.mxu0 0
        %2013 = vmatpush1.bf16.msra.mxu0 0
        %2014 = vmatprep.subr.bf16.mxu0 0
        %2015 = vmatpush1.bf16.msra.mxu0 0
        %2016 = vmatprep.subr.bf16.mxu0 0
        %2017 = vmatpush1.bf16.msra.mxu0 0
        %2018 = vmatprep.subr.bf16.mxu0 0
        %2019 = vmatpush1.bf16.msra.mxu0 %v2003
        %2020 = vmatprep.subr.bf16.mxu0 0
        %2021 = vmatpush1.bf16.msra.mxu0 %v2002
        %2022 = vmatprep.subr.bf16.mxu0 0
        %2023 = vmatpush2.bf16.msra.mxu0 0
        %2024 = vmatprep.subr.bf16.mxu0 0
        %2025 = vmatpush2.bf16.msra.mxu0 0
        %2026 = vmatprep.subr.bf16.mxu0 0
        %2027 = vmatpush2.bf16.msra.mxu0 0
        %2028 = vmatprep.subr.bf16.mxu0 0
        %2029 = vmatpush2.bf16.msra.mxu0 0
        %2030 = vmatprep.subr.bf16.mxu0 0
        %2031 = vmatpush2.bf16.msra.mxu0 0
        %2032 = vmatprep.subr.bf16.mxu0 0
        %2033 = vmatpush2.bf16.msra.mxu0 0
        %2034 = vmatprep.subr.bf16.mxu0 0
        %2035 = vmatpush2.bf16.msra.mxu0 0
        %2036 = vmatprep.subr.bf16.mxu0 0
        %2037 = vmatpush2.bf16.msra.mxu0 0
        %2038 = vmatprep.mubr.bf16.mxu0 0
        %2039 = vmatmul.mubr.bf16.gmra.mxu0 %v1467
        %v2040 = vpop.f32.mrf.mxu0
        %v2041 = vadd.f32 0.0, %v2040
        %v2042 = vpop.f32.mrf.mxu0
        %v2043 = vpop.f32.mrf.mxu0
        %v2044 = vadd.f32 0.0, %v2043
        %v2045 = vpop.f32.mrf.mxu0
        %2046 = vmatprep.mubr.bf16.mxu0 0
        %2047 = vmatmul.mubr.bf16.gmra.mxu0 %v1470
        %v2048 = vpop.f32.mrf.mxu0
        %v2049 = vadd.f32 0.0, %v2048
        %v2050 = vpop.f32.mrf.mxu0
        %v2051 = vpop.f32.mrf.mxu0
        %v2052 = vadd.f32 0.0, %v2051
        %v2053 = vpop.f32.mrf.mxu0
        %2054 = vmatprep.mubr.bf16.mxu0 0
        %2055 = vmatmul.mubr.bf16.gmra.mxu0 %v1473
        %v2056 = vpop.f32.mrf.mxu0
        %v2057 = vpop.f32.mrf.mxu0
        %v2058 = vpop.f32.mrf.mxu0
        %v2059 = vpop.f32.mrf.mxu0
        %2060 = vdwg.mxu0
        %v2065 = vrot.slane %v2041, 6
        %v2066 = vrot.slane %v2044, 6
        %v2067 = vsel %vm1004, %v2065, %v2066
        %v2068 = vrot.slane %v2049, 6
        %v2069 = vsel %vm1004, %v2066, %v2068
        %v2070 = vrot.slane %v2052, 6
        %v2071 = vsel %vm1004, %v2068, %v2070
        %v2076 = vadd.f32 %v1985, %v2067
        %v2077 = vadd.f32 %v1986, %v2069
        %v2078 = vadd.f32 %v1987, %v2071
        %v2079 = vadd.f32 %v1988, %v2070
        %s2080 = scalar_lea.vmem %s3, 112
        %v2081 = vld [vmem:[%s2080] sm:$0xf]
        %v2082 = vld [vmem:[%s2080 + $0x4] sm:$0xf]
        %v2083 = vld [vmem:[%s2080 + $0x8] sm:$0xf]
        %v2084 = vld [vmem:[%s2080 + $0xc] sm:$0xf]
        %v2089 = vunpack.c.l.b16 %v2081
        %v2090 = vunpack.c.l.b16 %v2082
        %v2091 = vunpack.c.l.b16 %v2083
        %v2092 = vunpack.c.l.b16 %v2084
        %v2093 = vpack.c.b16 %v2090, %v2089
        %v2094 = vpack.c.b16 %v2092, %v2091
        %2097 = vmatprep.subr.bf16.mxu0 0
        %2098 = vmatpush1.bf16.msra.mxu0 0
        %2099 = vmatprep.subr.bf16.mxu0 0
        %2100 = vmatpush1.bf16.msra.mxu0 0
        %2101 = vmatprep.subr.bf16.mxu0 0
        %2102 = vmatpush1.bf16.msra.mxu0 0
        %2103 = vmatprep.subr.bf16.mxu0 0
        %2104 = vmatpush1.bf16.msra.mxu0 0
        %2105 = vmatprep.subr.bf16.mxu0 0
        %2106 = vmatpush1.bf16.msra.mxu0 0
        %2107 = vmatprep.subr.bf16.mxu0 0
        %2108 = vmatpush1.bf16.msra.mxu0 0
        %2109 = vmatprep.subr.bf16.mxu0 0
        %2110 = vmatpush1.bf16.msra.mxu0 %v2094
        %2111 = vmatprep.subr.bf16.mxu0 0
        %2112 = vmatpush1.bf16.msra.mxu0 %v2093
        %2113 = vmatprep.subr.bf16.mxu0 0
        %2114 = vmatpush2.bf16.msra.mxu0 0
        %2115 = vmatprep.subr.bf16.mxu0 0
        %2116 = vmatpush2.bf16.msra.mxu0 0
        %2117 = vmatprep.subr.bf16.mxu0 0
        %2118 = vmatpush2.bf16.msra.mxu0 0
        %2119 = vmatprep.subr.bf16.mxu0 0
        %2120 = vmatpush2.bf16.msra.mxu0 0
        %2121 = vmatprep.subr.bf16.mxu0 0
        %2122 = vmatpush2.bf16.msra.mxu0 0
        %2123 = vmatprep.subr.bf16.mxu0 0
        %2124 = vmatpush2.bf16.msra.mxu0 0
        %2125 = vmatprep.subr.bf16.mxu0 0
        %2126 = vmatpush2.bf16.msra.mxu0 0
        %2127 = vmatprep.subr.bf16.mxu0 0
        %2128 = vmatpush2.bf16.msra.mxu0 0
        %2129 = vmatprep.mubr.bf16.mxu0 0
        %2130 = vmatmul.mubr.bf16.gmra.mxu0 %v1467
        %v2131 = vpop.f32.mrf.mxu0
        %v2132 = vadd.f32 0.0, %v2131
        %v2133 = vpop.f32.mrf.mxu0
        %v2134 = vpop.f32.mrf.mxu0
        %v2135 = vadd.f32 0.0, %v2134
        %v2136 = vpop.f32.mrf.mxu0
        %2137 = vmatprep.mubr.bf16.mxu0 0
        %2138 = vmatmul.mubr.bf16.gmra.mxu0 %v1470
        %v2139 = vpop.f32.mrf.mxu0
        %v2140 = vadd.f32 0.0, %v2139
        %v2141 = vpop.f32.mrf.mxu0
        %v2142 = vpop.f32.mrf.mxu0
        %v2143 = vadd.f32 0.0, %v2142
        %v2144 = vpop.f32.mrf.mxu0
        %2145 = vmatprep.mubr.bf16.mxu0 0
        %2146 = vmatmul.mubr.bf16.gmra.mxu0 %v1473
        %v2147 = vpop.f32.mrf.mxu0
        %v2148 = vpop.f32.mrf.mxu0
        %v2149 = vpop.f32.mrf.mxu0
        %v2150 = vpop.f32.mrf.mxu0
        %2151 = vdwg.mxu0
        %v2156 = vrot.slane %v2132, 7
        %v2157 = vrot.slane %v2135, 7
        %v2158 = vsel %vm1104, %v2156, %v2157
        %v2159 = vrot.slane %v2140, 7
        %v2160 = vsel %vm1104, %v2157, %v2159
        %v2161 = vrot.slane %v2143, 7
        %v2162 = vsel %vm1104, %v2159, %v2161
        %v2167 = vadd.f32 %v2076, %v2158
        %v2168 = vadd.f32 %v2077, %v2160
        %v2169 = vadd.f32 %v2078, %v2162
        %v2170 = vadd.f32 %v2079, %v2161
        %s2171 = scalar_lea.vmem %s3, 128
        %v2172 = vld [vmem:[%s2171] sm:$0xf]
        %v2173 = vld [vmem:[%s2171 + $0x4] sm:$0xf]
        %v2174 = vld [vmem:[%s2171 + $0x8] sm:$0xf]
        %v2175 = vld [vmem:[%s2171 + $0xc] sm:$0xf]
        %v2180 = vunpack.c.l.b16 %v2172
        %v2181 = vunpack.c.l.b16 %v2173
        %v2182 = vunpack.c.l.b16 %v2174
        %v2183 = vunpack.c.l.b16 %v2175
        %v2184 = vpack.c.b16 %v2181, %v2180
        %v2185 = vpack.c.b16 %v2183, %v2182
        %2188 = vmatprep.subr.bf16.mxu0 0
        %2189 = vmatpush1.bf16.msra.mxu0 0
        %2190 = vmatprep.subr.bf16.mxu0 0
        %2191 = vmatpush1.bf16.msra.mxu0 0
        %2192 = vmatprep.subr.bf16.mxu0 0
        %2193 = vmatpush1.bf16.msra.mxu0 0
        %2194 = vmatprep.subr.bf16.mxu0 0
        %2195 = vmatpush1.bf16.msra.mxu0 0
        %2196 = vmatprep.subr.bf16.mxu0 0
        %2197 = vmatpush1.bf16.msra.mxu0 0
        %2198 = vmatprep.subr.bf16.mxu0 0
        %2199 = vmatpush1.bf16.msra.mxu0 0
        %2200 = vmatprep.subr.bf16.mxu0 0
        %2201 = vmatpush1.bf16.msra.mxu0 %v2185
        %2202 = vmatprep.subr.bf16.mxu0 0
        %2203 = vmatpush1.bf16.msra.mxu0 %v2184
        %2204 = vmatprep.subr.bf16.mxu0 0
        %2205 = vmatpush2.bf16.msra.mxu0 0
        %2206 = vmatprep.subr.bf16.mxu0 0
        %2207 = vmatpush2.bf16.msra.mxu0 0
        %2208 = vmatprep.subr.bf16.mxu0 0
        %2209 = vmatpush2.bf16.msra.mxu0 0
        %2210 = vmatprep.subr.bf16.mxu0 0
        %2211 = vmatpush2.bf16.msra.mxu0 0
        %2212 = vmatprep.subr.bf16.mxu0 0
        %2213 = vmatpush2.bf16.msra.mxu0 0
        %2214 = vmatprep.subr.bf16.mxu0 0
        %2215 = vmatpush2.bf16.msra.mxu0 0
        %2216 = vmatprep.subr.bf16.mxu0 0
        %2217 = vmatpush2.bf16.msra.mxu0 0
        %2218 = vmatprep.subr.bf16.mxu0 0
        %2219 = vmatpush2.bf16.msra.mxu0 0
        %2220 = vmatprep.mubr.bf16.mxu0 0
        %2221 = vmatmul.mubr.bf16.gmra.mxu0 %v1467
        %v2222 = vpop.f32.mrf.mxu0
        %v2223 = vpop.f32.mrf.mxu0
        %v2224 = vpop.f32.mrf.mxu0
        %v2225 = vadd.f32 0.0, %v2224
        %v2226 = vpop.f32.mrf.mxu0
        %2227 = vmatprep.mubr.bf16.mxu0 0
        %2228 = vmatmul.mubr.bf16.gmra.mxu0 %v1470
        %v2229 = vpop.f32.mrf.mxu0
        %v2230 = vadd.f32 0.0, %v2229
        %v2231 = vpop.f32.mrf.mxu0
        %v2232 = vpop.f32.mrf.mxu0
        %v2233 = vadd.f32 0.0, %v2232
        %v2234 = vpop.f32.mrf.mxu0
        %2235 = vmatprep.mubr.bf16.mxu0 0
        %2236 = vmatmul.mubr.bf16.gmra.mxu0 %v1473
        %v2237 = vpop.f32.mrf.mxu0
        %v2238 = vadd.f32 0.0, %v2237
        %v2239 = vpop.f32.mrf.mxu0
        %v2240 = vpop.f32.mrf.mxu0
        %v2241 = vpop.f32.mrf.mxu0
        %2242 = vdwg.mxu0
        %v2243 = vadd.f32 %v2167, %v2225
        %v2244 = vadd.f32 %v2168, %v2230
        %v2245 = vadd.f32 %v2169, %v2233
        %v2246 = vadd.f32 %v2170, %v2238
        %s2247 = scalar_lea.vmem %s3, 144
        %v2248 = vld [vmem:[%s2247] sm:$0xf]
        %v2249 = vld [vmem:[%s2247 + $0x4] sm:$0xf]
        %v2250 = vld [vmem:[%s2247 + $0x8] sm:$0xf]
        %v2251 = vld [vmem:[%s2247 + $0xc] sm:$0xf]
        %v2256 = vunpack.c.l.b16 %v2248
        %v2257 = vunpack.c.l.b16 %v2249
        %v2258 = vunpack.c.l.b16 %v2250
        %v2259 = vunpack.c.l.b16 %v2251
        %v2260 = vpack.c.b16 %v2257, %v2256
        %v2261 = vpack.c.b16 %v2259, %v2258
        %2264 = vmatprep.subr.bf16.mxu0 0
        %2265 = vmatpush1.bf16.msra.mxu0 0
        %2266 = vmatprep.subr.bf16.mxu0 0
        %2267 = vmatpush1.bf16.msra.mxu0 0
        %2268 = vmatprep.subr.bf16.mxu0 0
        %2269 = vmatpush1.bf16.msra.mxu0 0
        %2270 = vmatprep.subr.bf16.mxu0 0
        %2271 = vmatpush1.bf16.msra.mxu0 0
        %2272 = vmatprep.subr.bf16.mxu0 0
        %2273 = vmatpush1.bf16.msra.mxu0 0
        %2274 = vmatprep.subr.bf16.mxu0 0
        %2275 = vmatpush1.bf16.msra.mxu0 0
        %2276 = vmatprep.subr.bf16.mxu0 0
        %2277 = vmatpush1.bf16.msra.mxu0 %v2261
        %2278 = vmatprep.subr.bf16.mxu0 0
        %2279 = vmatpush1.bf16.msra.mxu0 %v2260
        %2280 = vmatprep.subr.bf16.mxu0 0
        %2281 = vmatpush2.bf16.msra.mxu0 0
        %2282 = vmatprep.subr.bf16.mxu0 0
        %2283 = vmatpush2.bf16.msra.mxu0 0
        %2284 = vmatprep.subr.bf16.mxu0 0
        %2285 = vmatpush2.bf16.msra.mxu0 0
        %2286 = vmatprep.subr.bf16.mxu0 0
        %2287 = vmatpush2.bf16.msra.mxu0 0
        %2288 = vmatprep.subr.bf16.mxu0 0
        %2289 = vmatpush2.bf16.msra.mxu0 0
        %2290 = vmatprep.subr.bf16.mxu0 0
        %2291 = vmatpush2.bf16.msra.mxu0 0
        %2292 = vmatprep.subr.bf16.mxu0 0
        %2293 = vmatpush2.bf16.msra.mxu0 0
        %2294 = vmatprep.subr.bf16.mxu0 0
        %2295 = vmatpush2.bf16.msra.mxu0 0
        %2296 = vmatprep.mubr.bf16.mxu0 0
        %2297 = vmatmul.mubr.bf16.gmra.mxu0 %v1467
        %v2298 = vpop.f32.mrf.mxu0
        %v2299 = vpop.f32.mrf.mxu0
        %v2300 = vpop.f32.mrf.mxu0
        %v2301 = vadd.f32 0.0, %v2300
        %v2302 = vpop.f32.mrf.mxu0
        %2303 = vmatprep.mubr.bf16.mxu0 0
        %2304 = vmatmul.mubr.bf16.gmra.mxu0 %v1470
        %v2305 = vpop.f32.mrf.mxu0
        %v2306 = vadd.f32 0.0, %v2305
        %v2307 = vpop.f32.mrf.mxu0
        %v2308 = vpop.f32.mrf.mxu0
        %v2309 = vadd.f32 0.0, %v2308
        %v2310 = vpop.f32.mrf.mxu0
        %2311 = vmatprep.mubr.bf16.mxu0 0
        %2312 = vmatmul.mubr.bf16.gmra.mxu0 %v1473
        %v2313 = vpop.f32.mrf.mxu0
        %v2314 = vadd.f32 0.0, %v2313
        %v2315 = vpop.f32.mrf.mxu0
        %v2316 = vpop.f32.mrf.mxu0
        %v2317 = vpop.f32.mrf.mxu0
        %2318 = vdwg.mxu0
        %v2323 = vrot.slane %v2301, 1
        %v2324 = vrot.slane %v2306, 1
        %v2325 = vsel %vm514, %v2323, %v2324
        %v2326 = vrot.slane %v2309, 1
        %v2327 = vsel %vm514, %v2324, %v2326
        %v2328 = vrot.slane %v2314, 1
        %v2329 = vsel %vm514, %v2326, %v2328
        %v2334 = vadd.f32 %v2243, %v2325
        %v2335 = vadd.f32 %v2244, %v2327
        %v2336 = vadd.f32 %v2245, %v2329
        %v2337 = vadd.f32 %v2246, %v2328
        %v2338 = vld [vmem:[%s4] sm:$0x1]
        %v2340 = vlaneseq
        %v2341 = vshrl.u32 %v2340, 7
        %v2342 = vsub.s32 0, %v2341
        %v2343 = vrot.slane %v2338, %v2342
        %v2345 = vadd.f32 %v2334, %v2343
        %v2346 = vadd.f32 %v2335, %v2343
        %v2347 = vadd.f32 %v2336, %v2343
        %v2348 = vadd.f32 %v2337, %v2343
        %v2349 = vmax.f32 %v2345, 0.0
        %v2350 = vmax.f32 %v2346, 0.0
        %v2351 = vmax.f32 %v2347, 0.0
        %v2352 = vmax.f32 %v2348, 0.0
        %v2357 = vrot.slane %v2349, 4
        %v2358 = vrot.slane %v2350, 4
        %v2359 = vsel %vm808, %v2357, %v2358
        %v2360 = vrot.slane %v2351, 4
        %v2361 = vsel %vm808, %v2358, %v2360
        %v2362 = vrot.slane %v2352, 4
        %v2363 = vsel %vm808, %v2360, %v2362
        %v2368 = vadd.f32 %v1399, %v2357
        %v2369 = vadd.f32 %v1400, %v2359
        %v2370 = vadd.f32 %v1401, %v2361
        %v2371 = vadd.f32 %v1402, %v2363
        %s2372 = ssub.s32 %s322, 4
        %v2373 = vstv %s2372
        %v2374 = vadd.s32 %v1343, %v2373
        %v2375 = vadd.s32 %v1344, %v2373
        %v2376 = vadd.s32 %v1345, %v2373
        %v2377 = vadd.s32 %v1346, %v2373
        %vm2378 = vcmp.ge.s32.totalorder %v2374, 0
        %vm2379 = vcmp.ge.s32.totalorder %v2375, 0
        %vm2380 = vcmp.ge.s32.totalorder %v2376, 0
        %vm2381 = vcmp.ge.s32.totalorder %v2377, 0
        %vm2382 = vcmp.lt.s32.totalorder %v2374, 60
        %vm2383 = vcmp.lt.s32.totalorder %v2375, 60
        %vm2384 = vcmp.lt.s32.totalorder %v2376, 60
        %vm2385 = vcmp.lt.s32.totalorder %v2377, 60
        %vm2386 = vmand %vm2378, %vm2382
        %vm2387 = vmand %vm2379, %vm2383
        %vm2388 = vmand %vm2380, %vm2384
        %vm2389 = vmand %vm2381, %vm2385
        %v2390 = vsel %vm2386, 1, 0
        %v2391 = vsel %vm2387, 1, 0
        %v2392 = vsel %vm2388, 1, 0
        %v2393 = vsel %vm2389, 1, 0
        %vm2394 = vcmp.eq.s32.totalorder %v2390, 1
        %vm2395 = vcmp.eq.s32.totalorder %v2391, 1
        %vm2396 = vcmp.eq.s32.totalorder %v2392, 1
        %vm2397 = vcmp.eq.s32.totalorder %v2393, 1
        %v2402 = vrot.slane %v2368, 4
        %v2403 = vrot.slane %v2369, 4
        %v2404 = vsel %vm808, %v2402, %v2403
        %v2405 = vrot.slane %v2370, 4
        %v2406 = vsel %vm808, %v2403, %v2405
        %v2407 = vrot.slane %v2371, 4
        %v2408 = vsel %vm808, %v2405, %v2407
        %v2413 = vsel %vm2394, %v2404, 0.0
        %v2414 = vsel %vm2395, %v2406, 0.0
        %v2415 = vsel %vm2396, %v2408, 0.0
        %v2416 = vsel %vm2397, %v2407, 0.0
        %v2417 = vpack.c.bf16 %v2414, %v2413
        %v2418 = vpack.c.bf16 %v2416, %v2415
        %v2421 = vunpack.c.l.b16 %v2417
        %v2422 = vunpack.c.h.b16 %v2417
        %v2423 = vunpack.c.l.b16 %v2418
        %v2424 = vunpack.c.h.b16 %v2418
        %v2425 = vpack.c.b16 %v2421, %v2421
        %v2426 = vpack.c.b16 %v2422, %v2422
        %v2427 = vpack.c.b16 %v2423, %v2423
        %v2428 = vpack.c.b16 %v2424, %v2424
        %2433 = vst.msk [vmem:[#allocation3] sm:$0xf] %vm1425, %v2425
        %2434 = vst.msk [vmem:[#allocation3 + $0x4] sm:$0xf] %vm1425, %v2426
        %2435 = vst.msk [vmem:[#allocation3 + $0x8] sm:$0xf] %vm1425, %v2427
        %vm2436 = vcmask 253952
        %vm2437 = vsmask.f32 256
        %vm2438 = vmand %vm2436, %vm2437
        %v2439 = vld [vmem:[#allocation3 + $0xc] sm:$0x1]
        %v2440 = vsel %vm2438, %v2428, %v2439
        %2441 = vst [vmem:[#allocation3 + $0xc] sm:$0x1] %v2440
        %v2442 = vld [vmem:[#allocation3] sm:$0xf]
        %v2443 = vld [vmem:[#allocation3 + $0x4] sm:$0xf]
        %v2444 = vld [vmem:[#allocation3 + $0x8] sm:$0xf]
        %v2445 = vld [vmem:[#allocation3 + $0xc] sm:$0x1]
        %v2446 = vld [vmem:[#allocation4] sm:$0xf]
        %v2447 = vld [vmem:[#allocation4 + $0x4] sm:$0xf]
        %v2448 = vld [vmem:[#allocation4 + $0x8] sm:$0xf]
        %v2449 = vld [vmem:[#allocation4 + $0xc] sm:$0xf]
        %v2454 = vunpack.c.l.b16 %v2442
        %v2455 = vunpack.c.l.b16 %v2443
        %v2456 = vunpack.c.l.b16 %v2444
        %v2457 = vunpack.c.l.b16 %v2445
        %v2458 = vpack.c.b16 %v2455, %v2454
        %v2459 = vpack.c.b16 %v2457, %v2456
        %v2464 = vunpack.c.l.b16 %v2446
        %v2465 = vunpack.c.l.b16 %v2447
        %v2466 = vunpack.c.l.b16 %v2448
        %v2467 = vunpack.c.l.b16 %v2449
        %v2468 = vpack.c.b16 %v2465, %v2464
        %v2469 = vpack.c.b16 %v2467, %v2466
        %v2473 = vsel %vm365, %v2458, 0
        %v2476 = vsel %vm365, %v2459, 0
        %2478 = vmatprep.subr.bf16.mxu0 0
        %2479 = vmatpush1.bf16.msra.mxu0 0
        %2480 = vmatprep.subr.bf16.mxu0 0
        %2481 = vmatpush1.bf16.msra.mxu0 0
        %2482 = vmatprep.subr.bf16.mxu0 0
        %2483 = vmatpush1.bf16.msra.mxu0 0
        %2484 = vmatprep.subr.bf16.mxu0 0
        %2485 = vmatpush1.bf16.msra.mxu0 0
        %2486 = vmatprep.subr.bf16.mxu0 0
        %2487 = vmatpush1.bf16.msra.mxu0 0
        %2488 = vmatprep.subr.bf16.mxu0 0
        %2489 = vmatpush1.bf16.msra.mxu0 0
        %2490 = vmatprep.subr.bf16.mxu0 0
        %2491 = vmatpush1.bf16.msra.mxu0 %v2469
        %2492 = vmatprep.subr.bf16.mxu0 0
        %2493 = vmatpush1.bf16.msra.mxu0 %v2468
        %2494 = vmatprep.subr.bf16.mxu0 0
        %2495 = vmatpush2.bf16.msra.mxu0 0
        %2496 = vmatprep.subr.bf16.mxu0 0
        %2497 = vmatpush2.bf16.msra.mxu0 0
        %2498 = vmatprep.subr.bf16.mxu0 0
        %2499 = vmatpush2.bf16.msra.mxu0 0
        %2500 = vmatprep.subr.bf16.mxu0 0
        %2501 = vmatpush2.bf16.msra.mxu0 0
        %2502 = vmatprep.subr.bf16.mxu0 0
        %2503 = vmatpush2.bf16.msra.mxu0 0
        %2504 = vmatprep.subr.bf16.mxu0 0
        %2505 = vmatpush2.bf16.msra.mxu0 0
        %2506 = vmatprep.subr.bf16.mxu0 0
        %2507 = vmatpush2.bf16.msra.mxu0 0
        %2508 = vmatprep.subr.bf16.mxu0 0
        %2509 = vmatpush2.bf16.msra.mxu0 0
        %2510 = vmatprep.mubr.bf16.mxu0 0
        %2511 = vmatmul.mubr.bf16.gmra.mxu0 %v2473
        %v2512 = vpop.f32.mrf.mxu0
        %v2513 = vadd.f32 0.0, %v2512
        %v2514 = vpop.f32.mrf.mxu0
        %v2515 = vpop.f32.mrf.mxu0
        %v2516 = vadd.f32 0.0, %v2515
        %v2517 = vpop.f32.mrf.mxu0
        %2518 = vmatprep.mubr.bf16.mxu0 0
        %2519 = vmatmul.mubr.bf16.gmra.mxu0 %v2476
        %v2520 = vpop.f32.mrf.mxu0
        %v2521 = vpop.f32.mrf.mxu0
        %v2522 = vpop.f32.mrf.mxu0
        %v2523 = vpop.f32.mrf.mxu0
        %2524 = vdwg.mxu0
        %v2525 = vadd.f32 %v2513, 0.0
        %v2526 = vadd.f32 %v2516, 0.0
        %s2527 = scalar_lea.vmem [#allocation4], 16
        %v2528 = vld [vmem:[%s2527] sm:$0xf]
        %v2529 = vld [vmem:[%s2527 + $0x4] sm:$0xf]
        %v2530 = vld [vmem:[%s2527 + $0x8] sm:$0xf]
        %v2531 = vld [vmem:[%s2527 + $0xc] sm:$0xf]
        %v2536 = vunpack.c.l.b16 %v2528
        %v2537 = vunpack.c.l.b16 %v2529
        %v2538 = vunpack.c.l.b16 %v2530
        %v2539 = vunpack.c.l.b16 %v2531
        %v2540 = vpack.c.b16 %v2537, %v2536
        %v2541 = vpack.c.b16 %v2539, %v2538
        %2544 = vmatprep.subr.bf16.mxu0 0
        %2545 = vmatpush1.bf16.msra.mxu0 0
        %2546 = vmatprep.subr.bf16.mxu0 0
        %2547 = vmatpush1.bf16.msra.mxu0 0
        %2548 = vmatprep.subr.bf16.mxu0 0
        %2549 = vmatpush1.bf16.msra.mxu0 0
        %2550 = vmatprep.subr.bf16.mxu0 0
        %2551 = vmatpush1.bf16.msra.mxu0 0
        %2552 = vmatprep.subr.bf16.mxu0 0
        %2553 = vmatpush1.bf16.msra.mxu0 0
        %2554 = vmatprep.subr.bf16.mxu0 0
        %2555 = vmatpush1.bf16.msra.mxu0 0
        %2556 = vmatprep.subr.bf16.mxu0 0
        %2557 = vmatpush1.bf16.msra.mxu0 %v2541
        %2558 = vmatprep.subr.bf16.mxu0 0
        %2559 = vmatpush1.bf16.msra.mxu0 %v2540
        %2560 = vmatprep.subr.bf16.mxu0 0
        %2561 = vmatpush2.bf16.msra.mxu0 0
        %2562 = vmatprep.subr.bf16.mxu0 0
        %2563 = vmatpush2.bf16.msra.mxu0 0
        %2564 = vmatprep.subr.bf16.mxu0 0
        %2565 = vmatpush2.bf16.msra.mxu0 0
        %2566 = vmatprep.subr.bf16.mxu0 0
        %2567 = vmatpush2.bf16.msra.mxu0 0
        %2568 = vmatprep.subr.bf16.mxu0 0
        %2569 = vmatpush2.bf16.msra.mxu0 0
        %2570 = vmatprep.subr.bf16.mxu0 0
        %2571 = vmatpush2.bf16.msra.mxu0 0
        %2572 = vmatprep.subr.bf16.mxu0 0
        %2573 = vmatpush2.bf16.msra.mxu0 0
        %2574 = vmatprep.subr.bf16.mxu0 0
        %2575 = vmatpush2.bf16.msra.mxu0 0
        %2576 = vmatprep.mubr.bf16.mxu0 0
        %2577 = vmatmul.mubr.bf16.gmra.mxu0 %v2473
        %v2578 = vpop.f32.mrf.mxu0
        %v2579 = vadd.f32 0.0, %v2578
        %v2580 = vpop.f32.mrf.mxu0
        %v2581 = vpop.f32.mrf.mxu0
        %v2582 = vadd.f32 0.0, %v2581
        %v2583 = vpop.f32.mrf.mxu0
        %2584 = vmatprep.mubr.bf16.mxu0 0
        %2585 = vmatmul.mubr.bf16.gmra.mxu0 %v2476
        %v2586 = vpop.f32.mrf.mxu0
        %v2587 = vadd.f32 0.0, %v2586
        %v2588 = vpop.f32.mrf.mxu0
        %v2589 = vpop.f32.mrf.mxu0
        %v2590 = vpop.f32.mrf.mxu0
        %2591 = vdwg.mxu0
        %v2595 = vrot.slane %v2579, 1
        %v2596 = vrot.slane %v2582, 1
        %v2597 = vsel %vm514, %v2595, %v2596
        %v2598 = vrot.slane %v2587, 1
        %v2599 = vsel %vm514, %v2596, %v2598
        %v2602 = vadd.f32 %v2525, %v2597
        %v2603 = vadd.f32 %v2526, %v2599
        %s2604 = scalar_lea.vmem [#allocation4], 32
        %v2605 = vld [vmem:[%s2604] sm:$0xf]
        %v2606 = vld [vmem:[%s2604 + $0x4] sm:$0xf]
        %v2607 = vld [vmem:[%s2604 + $0x8] sm:$0xf]
        %v2608 = vld [vmem:[%s2604 + $0xc] sm:$0xf]
        %v2613 = vunpack.c.l.b16 %v2605
        %v2614 = vunpack.c.l.b16 %v2606
        %v2615 = vunpack.c.l.b16 %v2607
        %v2616 = vunpack.c.l.b16 %v2608
        %v2617 = vpack.c.b16 %v2614, %v2613
        %v2618 = vpack.c.b16 %v2616, %v2615
        %2621 = vmatprep.subr.bf16.mxu0 0
        %2622 = vmatpush1.bf16.msra.mxu0 0
        %2623 = vmatprep.subr.bf16.mxu0 0
        %2624 = vmatpush1.bf16.msra.mxu0 0
        %2625 = vmatprep.subr.bf16.mxu0 0
        %2626 = vmatpush1.bf16.msra.mxu0 0
        %2627 = vmatprep.subr.bf16.mxu0 0
        %2628 = vmatpush1.bf16.msra.mxu0 0
        %2629 = vmatprep.subr.bf16.mxu0 0
        %2630 = vmatpush1.bf16.msra.mxu0 0
        %2631 = vmatprep.subr.bf16.mxu0 0
        %2632 = vmatpush1.bf16.msra.mxu0 0
        %2633 = vmatprep.subr.bf16.mxu0 0
        %2634 = vmatpush1.bf16.msra.mxu0 %v2618
        %2635 = vmatprep.subr.bf16.mxu0 0
        %2636 = vmatpush1.bf16.msra.mxu0 %v2617
        %2637 = vmatprep.subr.bf16.mxu0 0
        %2638 = vmatpush2.bf16.msra.mxu0 0
        %2639 = vmatprep.subr.bf16.mxu0 0
        %2640 = vmatpush2.bf16.msra.mxu0 0
        %2641 = vmatprep.subr.bf16.mxu0 0
        %2642 = vmatpush2.bf16.msra.mxu0 0
        %2643 = vmatprep.subr.bf16.mxu0 0
        %2644 = vmatpush2.bf16.msra.mxu0 0
        %2645 = vmatprep.subr.bf16.mxu0 0
        %2646 = vmatpush2.bf16.msra.mxu0 0
        %2647 = vmatprep.subr.bf16.mxu0 0
        %2648 = vmatpush2.bf16.msra.mxu0 0
        %2649 = vmatprep.subr.bf16.mxu0 0
        %2650 = vmatpush2.bf16.msra.mxu0 0
        %2651 = vmatprep.subr.bf16.mxu0 0
        %2652 = vmatpush2.bf16.msra.mxu0 0
        %2653 = vmatprep.mubr.bf16.mxu0 0
        %2654 = vmatmul.mubr.bf16.gmra.mxu0 %v2473
        %v2655 = vpop.f32.mrf.mxu0
        %v2656 = vadd.f32 0.0, %v2655
        %v2657 = vpop.f32.mrf.mxu0
        %v2658 = vpop.f32.mrf.mxu0
        %v2659 = vadd.f32 0.0, %v2658
        %v2660 = vpop.f32.mrf.mxu0
        %2661 = vmatprep.mubr.bf16.mxu0 0
        %2662 = vmatmul.mubr.bf16.gmra.mxu0 %v2476
        %v2663 = vpop.f32.mrf.mxu0
        %v2664 = vadd.f32 0.0, %v2663
        %v2665 = vpop.f32.mrf.mxu0
        %v2666 = vpop.f32.mrf.mxu0
        %v2667 = vpop.f32.mrf.mxu0
        %2668 = vdwg.mxu0
        %v2672 = vrot.slane %v2656, 2
        %v2673 = vrot.slane %v2659, 2
        %v2674 = vsel %vm612, %v2672, %v2673
        %v2675 = vrot.slane %v2664, 2
        %v2676 = vsel %vm612, %v2673, %v2675
        %v2679 = vadd.f32 %v2602, %v2674
        %v2680 = vadd.f32 %v2603, %v2676
        %s2681 = scalar_lea.vmem [#allocation4], 48
        %v2682 = vld [vmem:[%s2681] sm:$0xf]
        %v2683 = vld [vmem:[%s2681 + $0x4] sm:$0xf]
        %v2684 = vld [vmem:[%s2681 + $0x8] sm:$0xf]
        %v2685 = vld [vmem:[%s2681 + $0xc] sm:$0xf]
        %v2690 = vunpack.c.l.b16 %v2682
        %v2691 = vunpack.c.l.b16 %v2683
        %v2692 = vunpack.c.l.b16 %v2684
        %v2693 = vunpack.c.l.b16 %v2685
        %v2694 = vpack.c.b16 %v2691, %v2690
        %v2695 = vpack.c.b16 %v2693, %v2692
        %2698 = vmatprep.subr.bf16.mxu0 0
        %2699 = vmatpush1.bf16.msra.mxu0 0
        %2700 = vmatprep.subr.bf16.mxu0 0
        %2701 = vmatpush1.bf16.msra.mxu0 0
        %2702 = vmatprep.subr.bf16.mxu0 0
        %2703 = vmatpush1.bf16.msra.mxu0 0
        %2704 = vmatprep.subr.bf16.mxu0 0
        %2705 = vmatpush1.bf16.msra.mxu0 0
        %2706 = vmatprep.subr.bf16.mxu0 0
        %2707 = vmatpush1.bf16.msra.mxu0 0
        %2708 = vmatprep.subr.bf16.mxu0 0
        %2709 = vmatpush1.bf16.msra.mxu0 0
        %2710 = vmatprep.subr.bf16.mxu0 0
        %2711 = vmatpush1.bf16.msra.mxu0 %v2695
        %2712 = vmatprep.subr.bf16.mxu0 0
        %2713 = vmatpush1.bf16.msra.mxu0 %v2694
        %2714 = vmatprep.subr.bf16.mxu0 0
        %2715 = vmatpush2.bf16.msra.mxu0 0
        %2716 = vmatprep.subr.bf16.mxu0 0
        %2717 = vmatpush2.bf16.msra.mxu0 0
        %2718 = vmatprep.subr.bf16.mxu0 0
        %2719 = vmatpush2.bf16.msra.mxu0 0
        %2720 = vmatprep.subr.bf16.mxu0 0
        %2721 = vmatpush2.bf16.msra.mxu0 0
        %2722 = vmatprep.subr.bf16.mxu0 0
        %2723 = vmatpush2.bf16.msra.mxu0 0
        %2724 = vmatprep.subr.bf16.mxu0 0
        %2725 = vmatpush2.bf16.msra.mxu0 0
        %2726 = vmatprep.subr.bf16.mxu0 0
        %2727 = vmatpush2.bf16.msra.mxu0 0
        %2728 = vmatprep.subr.bf16.mxu0 0
        %2729 = vmatpush2.bf16.msra.mxu0 0
        %2730 = vmatprep.mubr.bf16.mxu0 0
        %2731 = vmatmul.mubr.bf16.gmra.mxu0 %v2473
        %v2732 = vpop.f32.mrf.mxu0
        %v2733 = vadd.f32 0.0, %v2732
        %v2734 = vpop.f32.mrf.mxu0
        %v2735 = vpop.f32.mrf.mxu0
        %v2736 = vadd.f32 0.0, %v2735
        %v2737 = vpop.f32.mrf.mxu0
        %2738 = vmatprep.mubr.bf16.mxu0 0
        %2739 = vmatmul.mubr.bf16.gmra.mxu0 %v2476
        %v2740 = vpop.f32.mrf.mxu0
        %v2741 = vadd.f32 0.0, %v2740
        %v2742 = vpop.f32.mrf.mxu0
        %v2743 = vpop.f32.mrf.mxu0
        %v2744 = vpop.f32.mrf.mxu0
        %2745 = vdwg.mxu0
        %v2749 = vrot.slane %v2733, 3
        %v2750 = vrot.slane %v2736, 3
        %v2751 = vsel %vm710, %v2749, %v2750
        %v2752 = vrot.slane %v2741, 3
        %v2753 = vsel %vm710, %v2750, %v2752
        %v2756 = vadd.f32 %v2679, %v2751
        %v2757 = vadd.f32 %v2680, %v2753
        %s2758 = scalar_lea.vmem [#allocation4], 64
        %v2759 = vld [vmem:[%s2758] sm:$0xf]
        %v2760 = vld [vmem:[%s2758 + $0x4] sm:$0xf]
        %v2761 = vld [vmem:[%s2758 + $0x8] sm:$0xf]
        %v2762 = vld [vmem:[%s2758 + $0xc] sm:$0xf]
        %v2767 = vunpack.c.l.b16 %v2759
        %v2768 = vunpack.c.l.b16 %v2760
        %v2769 = vunpack.c.l.b16 %v2761
        %v2770 = vunpack.c.l.b16 %v2762
        %v2771 = vpack.c.b16 %v2768, %v2767
        %v2772 = vpack.c.b16 %v2770, %v2769
        %2775 = vmatprep.subr.bf16.mxu0 0
        %2776 = vmatpush1.bf16.msra.mxu0 0
        %2777 = vmatprep.subr.bf16.mxu0 0
        %2778 = vmatpush1.bf16.msra.mxu0 0
        %2779 = vmatprep.subr.bf16.mxu0 0
        %2780 = vmatpush1.bf16.msra.mxu0 0
        %2781 = vmatprep.subr.bf16.mxu0 0
        %2782 = vmatpush1.bf16.msra.mxu0 0
        %2783 = vmatprep.subr.bf16.mxu0 0
        %2784 = vmatpush1.bf16.msra.mxu0 0
        %2785 = vmatprep.subr.bf16.mxu0 0
        %2786 = vmatpush1.bf16.msra.mxu0 0
        %2787 = vmatprep.subr.bf16.mxu0 0
        %2788 = vmatpush1.bf16.msra.mxu0 %v2772
        %2789 = vmatprep.subr.bf16.mxu0 0
        %2790 = vmatpush1.bf16.msra.mxu0 %v2771
        %2791 = vmatprep.subr.bf16.mxu0 0
        %2792 = vmatpush2.bf16.msra.mxu0 0
        %2793 = vmatprep.subr.bf16.mxu0 0
        %2794 = vmatpush2.bf16.msra.mxu0 0
        %2795 = vmatprep.subr.bf16.mxu0 0
        %2796 = vmatpush2.bf16.msra.mxu0 0
        %2797 = vmatprep.subr.bf16.mxu0 0
        %2798 = vmatpush2.bf16.msra.mxu0 0
        %2799 = vmatprep.subr.bf16.mxu0 0
        %2800 = vmatpush2.bf16.msra.mxu0 0
        %2801 = vmatprep.subr.bf16.mxu0 0
        %2802 = vmatpush2.bf16.msra.mxu0 0
        %2803 = vmatprep.subr.bf16.mxu0 0
        %2804 = vmatpush2.bf16.msra.mxu0 0
        %2805 = vmatprep.subr.bf16.mxu0 0
        %2806 = vmatpush2.bf16.msra.mxu0 0
        %2807 = vmatprep.mubr.bf16.mxu0 0
        %2808 = vmatmul.mubr.bf16.gmra.mxu0 %v2473
        %v2809 = vpop.f32.mrf.mxu0
        %v2810 = vadd.f32 0.0, %v2809
        %v2811 = vpop.f32.mrf.mxu0
        %v2812 = vpop.f32.mrf.mxu0
        %v2813 = vadd.f32 0.0, %v2812
        %v2814 = vpop.f32.mrf.mxu0
        %2815 = vmatprep.mubr.bf16.mxu0 0
        %2816 = vmatmul.mubr.bf16.gmra.mxu0 %v2476
        %v2817 = vpop.f32.mrf.mxu0
        %v2818 = vadd.f32 0.0, %v2817
        %v2819 = vpop.f32.mrf.mxu0
        %v2820 = vpop.f32.mrf.mxu0
        %v2821 = vpop.f32.mrf.mxu0
        %2822 = vdwg.mxu0
        %v2826 = vrot.slane %v2810, 4
        %v2827 = vrot.slane %v2813, 4
        %v2828 = vsel %vm808, %v2826, %v2827
        %v2829 = vrot.slane %v2818, 4
        %v2830 = vsel %vm808, %v2827, %v2829
        %v2833 = vadd.f32 %v2756, %v2828
        %v2834 = vadd.f32 %v2757, %v2830
        %s2835 = scalar_lea.vmem [#allocation4], 80
        %v2836 = vld [vmem:[%s2835] sm:$0xf]
        %v2837 = vld [vmem:[%s2835 + $0x4] sm:$0xf]
        %v2838 = vld [vmem:[%s2835 + $0x8] sm:$0xf]
        %v2839 = vld [vmem:[%s2835 + $0xc] sm:$0xf]
        %v2844 = vunpack.c.l.b16 %v2836
        %v2845 = vunpack.c.l.b16 %v2837
        %v2846 = vunpack.c.l.b16 %v2838
        %v2847 = vunpack.c.l.b16 %v2839
        %v2848 = vpack.c.b16 %v2845, %v2844
        %v2849 = vpack.c.b16 %v2847, %v2846
        %2852 = vmatprep.subr.bf16.mxu0 0
        %2853 = vmatpush1.bf16.msra.mxu0 0
        %2854 = vmatprep.subr.bf16.mxu0 0
        %2855 = vmatpush1.bf16.msra.mxu0 0
        %2856 = vmatprep.subr.bf16.mxu0 0
        %2857 = vmatpush1.bf16.msra.mxu0 0
        %2858 = vmatprep.subr.bf16.mxu0 0
        %2859 = vmatpush1.bf16.msra.mxu0 0
        %2860 = vmatprep.subr.bf16.mxu0 0
        %2861 = vmatpush1.bf16.msra.mxu0 0
        %2862 = vmatprep.subr.bf16.mxu0 0
        %2863 = vmatpush1.bf16.msra.mxu0 0
        %2864 = vmatprep.subr.bf16.mxu0 0
        %2865 = vmatpush1.bf16.msra.mxu0 %v2849
        %2866 = vmatprep.subr.bf16.mxu0 0
        %2867 = vmatpush1.bf16.msra.mxu0 %v2848
        %2868 = vmatprep.subr.bf16.mxu0 0
        %2869 = vmatpush2.bf16.msra.mxu0 0
        %2870 = vmatprep.subr.bf16.mxu0 0
        %2871 = vmatpush2.bf16.msra.mxu0 0
        %2872 = vmatprep.subr.bf16.mxu0 0
        %2873 = vmatpush2.bf16.msra.mxu0 0
        %2874 = vmatprep.subr.bf16.mxu0 0
        %2875 = vmatpush2.bf16.msra.mxu0 0
        %2876 = vmatprep.subr.bf16.mxu0 0
        %2877 = vmatpush2.bf16.msra.mxu0 0
        %2878 = vmatprep.subr.bf16.mxu0 0
        %2879 = vmatpush2.bf16.msra.mxu0 0
        %2880 = vmatprep.subr.bf16.mxu0 0
        %2881 = vmatpush2.bf16.msra.mxu0 0
        %2882 = vmatprep.subr.bf16.mxu0 0
        %2883 = vmatpush2.bf16.msra.mxu0 0
        %2884 = vmatprep.mubr.bf16.mxu0 0
        %2885 = vmatmul.mubr.bf16.gmra.mxu0 %v2473
        %v2886 = vpop.f32.mrf.mxu0
        %v2887 = vadd.f32 0.0, %v2886
        %v2888 = vpop.f32.mrf.mxu0
        %v2889 = vpop.f32.mrf.mxu0
        %v2890 = vadd.f32 0.0, %v2889
        %v2891 = vpop.f32.mrf.mxu0
        %2892 = vmatprep.mubr.bf16.mxu0 0
        %2893 = vmatmul.mubr.bf16.gmra.mxu0 %v2476
        %v2894 = vpop.f32.mrf.mxu0
        %v2895 = vadd.f32 0.0, %v2894
        %v2896 = vpop.f32.mrf.mxu0
        %v2897 = vpop.f32.mrf.mxu0
        %v2898 = vpop.f32.mrf.mxu0
        %2899 = vdwg.mxu0
        %v2903 = vrot.slane %v2887, 5
        %v2904 = vrot.slane %v2890, 5
        %v2905 = vsel %vm906, %v2903, %v2904
        %v2906 = vrot.slane %v2895, 5
        %v2907 = vsel %vm906, %v2904, %v2906
        %v2910 = vadd.f32 %v2833, %v2905
        %v2911 = vadd.f32 %v2834, %v2907
        %s2912 = scalar_lea.vmem [#allocation4], 96
        %v2913 = vld [vmem:[%s2912] sm:$0xf]
        %v2914 = vld [vmem:[%s2912 + $0x4] sm:$0xf]
        %v2915 = vld [vmem:[%s2912 + $0x8] sm:$0xf]
        %v2916 = vld [vmem:[%s2912 + $0xc] sm:$0xf]
        %v2921 = vunpack.c.l.b16 %v2913
        %v2922 = vunpack.c.l.b16 %v2914
        %v2923 = vunpack.c.l.b16 %v2915
        %v2924 = vunpack.c.l.b16 %v2916
        %v2925 = vpack.c.b16 %v2922, %v2921
        %v2926 = vpack.c.b16 %v2924, %v2923
        %2929 = vmatprep.subr.bf16.mxu0 0
        %2930 = vmatpush1.bf16.msra.mxu0 0
        %2931 = vmatprep.subr.bf16.mxu0 0
        %2932 = vmatpush1.bf16.msra.mxu0 0
        %2933 = vmatprep.subr.bf16.mxu0 0
        %2934 = vmatpush1.bf16.msra.mxu0 0
        %2935 = vmatprep.subr.bf16.mxu0 0
        %2936 = vmatpush1.bf16.msra.mxu0 0
        %2937 = vmatprep.subr.bf16.mxu0 0
        %2938 = vmatpush1.bf16.msra.mxu0 0
        %2939 = vmatprep.subr.bf16.mxu0 0
        %2940 = vmatpush1.bf16.msra.mxu0 0
        %2941 = vmatprep.subr.bf16.mxu0 0
        %2942 = vmatpush1.bf16.msra.mxu0 %v2926
        %2943 = vmatprep.subr.bf16.mxu0 0
        %2944 = vmatpush1.bf16.msra.mxu0 %v2925
        %2945 = vmatprep.subr.bf16.mxu0 0
        %2946 = vmatpush2.bf16.msra.mxu0 0
        %2947 = vmatprep.subr.bf16.mxu0 0
        %2948 = vmatpush2.bf16.msra.mxu0 0
        %2949 = vmatprep.subr.bf16.mxu0 0
        %2950 = vmatpush2.bf16.msra.mxu0 0
        %2951 = vmatprep.subr.bf16.mxu0 0
        %2952 = vmatpush2.bf16.msra.mxu0 0
        %2953 = vmatprep.subr.bf16.mxu0 0
        %2954 = vmatpush2.bf16.msra.mxu0 0
        %2955 = vmatprep.subr.bf16.mxu0 0
        %2956 = vmatpush2.bf16.msra.mxu0 0
        %2957 = vmatprep.subr.bf16.mxu0 0
        %2958 = vmatpush2.bf16.msra.mxu0 0
        %2959 = vmatprep.subr.bf16.mxu0 0
        %2960 = vmatpush2.bf16.msra.mxu0 0
        %2961 = vmatprep.mubr.bf16.mxu0 0
        %2962 = vmatmul.mubr.bf16.gmra.mxu0 %v2473
        %v2963 = vpop.f32.mrf.mxu0
        %v2964 = vadd.f32 0.0, %v2963
        %v2965 = vpop.f32.mrf.mxu0
        %v2966 = vpop.f32.mrf.mxu0
        %v2967 = vadd.f32 0.0, %v2966
        %v2968 = vpop.f32.mrf.mxu0
        %2969 = vmatprep.mubr.bf16.mxu0 0
        %2970 = vmatmul.mubr.bf16.gmra.mxu0 %v2476
        %v2971 = vpop.f32.mrf.mxu0
        %v2972 = vadd.f32 0.0, %v2971
        %v2973 = vpop.f32.mrf.mxu0
        %v2974 = vpop.f32.mrf.mxu0
        %v2975 = vpop.f32.mrf.mxu0
        %2976 = vdwg.mxu0
        %v2980 = vrot.slane %v2964, 6
        %v2981 = vrot.slane %v2967, 6
        %v2982 = vsel %vm1004, %v2980, %v2981
        %v2983 = vrot.slane %v2972, 6
        %v2984 = vsel %vm1004, %v2981, %v2983
        %v2987 = vadd.f32 %v2910, %v2982
        %v2988 = vadd.f32 %v2911, %v2984
        %s2989 = scalar_lea.vmem [#allocation4], 112
        %v2990 = vld [vmem:[%s2989] sm:$0xf]
        %v2991 = vld [vmem:[%s2989 + $0x4] sm:$0xf]
        %v2992 = vld [vmem:[%s2989 + $0x8] sm:$0xf]
        %v2993 = vld [vmem:[%s2989 + $0xc] sm:$0xf]
        %v2998 = vunpack.c.l.b16 %v2990
        %v2999 = vunpack.c.l.b16 %v2991
        %v3000 = vunpack.c.l.b16 %v2992
        %v3001 = vunpack.c.l.b16 %v2993
        %v3002 = vpack.c.b16 %v2999, %v2998
        %v3003 = vpack.c.b16 %v3001, %v3000
        %3006 = vmatprep.subr.bf16.mxu0 0
        %3007 = vmatpush1.bf16.msra.mxu0 0
        %3008 = vmatprep.subr.bf16.mxu0 0
        %3009 = vmatpush1.bf16.msra.mxu0 0
        %3010 = vmatprep.subr.bf16.mxu0 0
        %3011 = vmatpush1.bf16.msra.mxu0 0
        %3012 = vmatprep.subr.bf16.mxu0 0
        %3013 = vmatpush1.bf16.msra.mxu0 0
        %3014 = vmatprep.subr.bf16.mxu0 0
        %3015 = vmatpush1.bf16.msra.mxu0 0
        %3016 = vmatprep.subr.bf16.mxu0 0
        %3017 = vmatpush1.bf16.msra.mxu0 0
        %3018 = vmatprep.subr.bf16.mxu0 0
        %3019 = vmatpush1.bf16.msra.mxu0 %v3003
        %3020 = vmatprep.subr.bf16.mxu0 0
        %3021 = vmatpush1.bf16.msra.mxu0 %v3002
        %3022 = vmatprep.subr.bf16.mxu0 0
        %3023 = vmatpush2.bf16.msra.mxu0 0
        %3024 = vmatprep.subr.bf16.mxu0 0
        %3025 = vmatpush2.bf16.msra.mxu0 0
        %3026 = vmatprep.subr.bf16.mxu0 0
        %3027 = vmatpush2.bf16.msra.mxu0 0
        %3028 = vmatprep.subr.bf16.mxu0 0
        %3029 = vmatpush2.bf16.msra.mxu0 0
        %3030 = vmatprep.subr.bf16.mxu0 0
        %3031 = vmatpush2.bf16.msra.mxu0 0
        %3032 = vmatprep.subr.bf16.mxu0 0
        %3033 = vmatpush2.bf16.msra.mxu0 0
        %3034 = vmatprep.subr.bf16.mxu0 0
        %3035 = vmatpush2.bf16.msra.mxu0 0
        %3036 = vmatprep.subr.bf16.mxu0 0
        %3037 = vmatpush2.bf16.msra.mxu0 0
        %3038 = vmatprep.mubr.bf16.mxu0 0
        %3039 = vmatmul.mubr.bf16.gmra.mxu0 %v2473
        %v3040 = vpop.f32.mrf.mxu0
        %v3041 = vadd.f32 0.0, %v3040
        %v3042 = vpop.f32.mrf.mxu0
        %v3043 = vpop.f32.mrf.mxu0
        %v3044 = vadd.f32 0.0, %v3043
        %v3045 = vpop.f32.mrf.mxu0
        %3046 = vmatprep.mubr.bf16.mxu0 0
        %3047 = vmatmul.mubr.bf16.gmra.mxu0 %v2476
        %v3048 = vpop.f32.mrf.mxu0
        %v3049 = vadd.f32 0.0, %v3048
        %v3050 = vpop.f32.mrf.mxu0
        %v3051 = vpop.f32.mrf.mxu0
        %v3052 = vpop.f32.mrf.mxu0
        %3053 = vdwg.mxu0
        %v3057 = vrot.slane %v3041, 7
        %v3058 = vrot.slane %v3044, 7
        %v3059 = vsel %vm1104, %v3057, %v3058
        %v3060 = vrot.slane %v3049, 7
        %v3061 = vsel %vm1104, %v3058, %v3060
        %v3064 = vadd.f32 %v2987, %v3059
        %v3065 = vadd.f32 %v2988, %v3061
        %s3066 = scalar_lea.vmem [#allocation4], 128
        %v3067 = vld [vmem:[%s3066] sm:$0xf]
        %v3068 = vld [vmem:[%s3066 + $0x4] sm:$0xf]
        %v3069 = vld [vmem:[%s3066 + $0x8] sm:$0xf]
        %v3070 = vld [vmem:[%s3066 + $0xc] sm:$0xf]
        %v3075 = vunpack.c.l.b16 %v3067
        %v3076 = vunpack.c.l.b16 %v3068
        %v3077 = vunpack.c.l.b16 %v3069
        %v3078 = vunpack.c.l.b16 %v3070
        %v3079 = vpack.c.b16 %v3076, %v3075
        %v3080 = vpack.c.b16 %v3078, %v3077
        %3083 = vmatprep.subr.bf16.mxu0 0
        %3084 = vmatpush1.bf16.msra.mxu0 0
        %3085 = vmatprep.subr.bf16.mxu0 0
        %3086 = vmatpush1.bf16.msra.mxu0 0
        %3087 = vmatprep.subr.bf16.mxu0 0
        %3088 = vmatpush1.bf16.msra.mxu0 0
        %3089 = vmatprep.subr.bf16.mxu0 0
        %3090 = vmatpush1.bf16.msra.mxu0 0
        %3091 = vmatprep.subr.bf16.mxu0 0
        %3092 = vmatpush1.bf16.msra.mxu0 0
        %3093 = vmatprep.subr.bf16.mxu0 0
        %3094 = vmatpush1.bf16.msra.mxu0 0
        %3095 = vmatprep.subr.bf16.mxu0 0
        %3096 = vmatpush1.bf16.msra.mxu0 %v3080
        %3097 = vmatprep.subr.bf16.mxu0 0
        %3098 = vmatpush1.bf16.msra.mxu0 %v3079
        %3099 = vmatprep.subr.bf16.mxu0 0
        %3100 = vmatpush2.bf16.msra.mxu0 0
        %3101 = vmatprep.subr.bf16.mxu0 0
        %3102 = vmatpush2.bf16.msra.mxu0 0
        %3103 = vmatprep.subr.bf16.mxu0 0
        %3104 = vmatpush2.bf16.msra.mxu0 0
        %3105 = vmatprep.subr.bf16.mxu0 0
        %3106 = vmatpush2.bf16.msra.mxu0 0
        %3107 = vmatprep.subr.bf16.mxu0 0
        %3108 = vmatpush2.bf16.msra.mxu0 0
        %3109 = vmatprep.subr.bf16.mxu0 0
        %3110 = vmatpush2.bf16.msra.mxu0 0
        %3111 = vmatprep.subr.bf16.mxu0 0
        %3112 = vmatpush2.bf16.msra.mxu0 0
        %3113 = vmatprep.subr.bf16.mxu0 0
        %3114 = vmatpush2.bf16.msra.mxu0 0
        %3115 = vmatprep.mubr.bf16.mxu0 0
        %3116 = vmatmul.mubr.bf16.gmra.mxu0 %v2473
        %v3117 = vpop.f32.mrf.mxu0
        %v3118 = vpop.f32.mrf.mxu0
        %v3119 = vpop.f32.mrf.mxu0
        %v3120 = vadd.f32 0.0, %v3119
        %v3121 = vpop.f32.mrf.mxu0
        %3122 = vmatprep.mubr.bf16.mxu0 0
        %3123 = vmatmul.mubr.bf16.gmra.mxu0 %v2476
        %v3124 = vpop.f32.mrf.mxu0
        %v3125 = vadd.f32 0.0, %v3124
        %v3126 = vpop.f32.mrf.mxu0
        %v3127 = vpop.f32.mrf.mxu0
        %v3128 = vpop.f32.mrf.mxu0
        %3129 = vdwg.mxu0
        %v3130 = vadd.f32 %v3064, %v3120
        %v3131 = vadd.f32 %v3065, %v3125
        %s3132 = scalar_lea.vmem [#allocation4], 144
        %v3133 = vld [vmem:[%s3132] sm:$0xf]
        %v3134 = vld [vmem:[%s3132 + $0x4] sm:$0xf]
        %v3135 = vld [vmem:[%s3132 + $0x8] sm:$0xf]
        %v3136 = vld [vmem:[%s3132 + $0xc] sm:$0xf]
        %v3141 = vunpack.c.l.b16 %v3133
        %v3142 = vunpack.c.l.b16 %v3134
        %v3143 = vunpack.c.l.b16 %v3135
        %v3144 = vunpack.c.l.b16 %v3136
        %v3145 = vpack.c.b16 %v3142, %v3141
        %v3146 = vpack.c.b16 %v3144, %v3143
        %3149 = vmatprep.subr.bf16.mxu0 0
        %3150 = vmatpush1.bf16.msra.mxu0 0
        %3151 = vmatprep.subr.bf16.mxu0 0
        %3152 = vmatpush1.bf16.msra.mxu0 0
        %3153 = vmatprep.subr.bf16.mxu0 0
        %3154 = vmatpush1.bf16.msra.mxu0 0
        %3155 = vmatprep.subr.bf16.mxu0 0
        %3156 = vmatpush1.bf16.msra.mxu0 0
        %3157 = vmatprep.subr.bf16.mxu0 0
        %3158 = vmatpush1.bf16.msra.mxu0 0
        %3159 = vmatprep.subr.bf16.mxu0 0
        %3160 = vmatpush1.bf16.msra.mxu0 0
        %3161 = vmatprep.subr.bf16.mxu0 0
        %3162 = vmatpush1.bf16.msra.mxu0 %v3146
        %3163 = vmatprep.subr.bf16.mxu0 0
        %3164 = vmatpush1.bf16.msra.mxu0 %v3145
        %3165 = vmatprep.subr.bf16.mxu0 0
        %3166 = vmatpush2.bf16.msra.mxu0 0
        %3167 = vmatprep.subr.bf16.mxu0 0
        %3168 = vmatpush2.bf16.msra.mxu0 0
        %3169 = vmatprep.subr.bf16.mxu0 0
        %3170 = vmatpush2.bf16.msra.mxu0 0
        %3171 = vmatprep.subr.bf16.mxu0 0
        %3172 = vmatpush2.bf16.msra.mxu0 0
        %3173 = vmatprep.subr.bf16.mxu0 0
        %3174 = vmatpush2.bf16.msra.mxu0 0
        %3175 = vmatprep.subr.bf16.mxu0 0
        %3176 = vmatpush2.bf16.msra.mxu0 0
        %3177 = vmatprep.subr.bf16.mxu0 0
        %3178 = vmatpush2.bf16.msra.mxu0 0
        %3179 = vmatprep.subr.bf16.mxu0 0
        %3180 = vmatpush2.bf16.msra.mxu0 0
        %3181 = vmatprep.mubr.bf16.mxu0 0
        %3182 = vmatmul.mubr.bf16.gmra.mxu0 %v2473
        %v3183 = vpop.f32.mrf.mxu0
        %v3184 = vpop.f32.mrf.mxu0
        %v3185 = vpop.f32.mrf.mxu0
        %v3186 = vadd.f32 0.0, %v3185
        %v3187 = vpop.f32.mrf.mxu0
        %3188 = vmatprep.mubr.bf16.mxu0 0
        %3189 = vmatmul.mubr.bf16.gmra.mxu0 %v2476
        %v3190 = vpop.f32.mrf.mxu0
        %v3191 = vadd.f32 0.0, %v3190
        %v3192 = vpop.f32.mrf.mxu0
        %v3193 = vpop.f32.mrf.mxu0
        %v3194 = vadd.f32 0.0, %v3193
        %v3195 = vpop.f32.mrf.mxu0
        %3196 = vdwg.mxu0
        %v3200 = vrot.slane %v3186, 1
        %v3201 = vrot.slane %v3191, 1
        %v3202 = vsel %vm514, %v3200, %v3201
        %v3203 = vrot.slane %v3194, 1
        %v3204 = vsel %vm514, %v3201, %v3203
        %v3207 = vadd.f32 %v3130, %v3202
        %v3208 = vadd.f32 %v3131, %v3204
        %v3209 = vld [vmem:[%s6] sm:$0x1]
        %v3211 = vlaneseq
        %v3212 = vshrl.u32 %v3211, 7
        %v3213 = vsub.s32 0, %v3212
        %v3214 = vrot.slane %v3209, %v3213
        %v3216 = vadd.f32 %v3207, %v3214
        %v3217 = vadd.f32 %v3208, %v3214
        %3218 = vst [vmem:[%s310] sm:$0xff] %v3216
        %3219 = vst [vmem:[%s310 + $0x8] sm:$0xff] %v3217
        %s3220 = sand.u32 %s198, 1
        %s3221 = scalar_lea.sflag [#allocation6], %s3220
        %s3222 = sand.u32 %s198, 1
        %s3223 = smul.addr %s3222, 16
        %s3224 = scalar_lea.vmem [#allocation7], %s3223
        // Predicated region
        $region53: #{tpu_custom_call.1} parent=47 // pred_check
          %p3225 = pneg %p208
        $region54: #{tpu_custom_call.1} parent=47 // pred_check_branch
          %3227 = sbr.rel (%p3225) target = $region56
        $region55: #{tpu_custom_call.1} parent=47 // pred_region
          %s3228 = smul.u32 2, %s27
          %s3230 = ssub.s32 256, 256
          %3231 = vsyncadd %s3221, %s3230
          %s3232 = smul.addr %s26, 8
          %s3233 = sadd.s32 %s3228, %s3232
          %s3234 = smul.addr %s3233, 128
          %s3235 = scalar_lea.hbm %s7, %s3234
          %s3236 = sshll.u32 %s3224, 4
          %s3237 = int_to_ptr.vmem [resolvable:$true] %s3236
          %3242 = dma.vmem_to_hbm [thread:$0]  %s3237, 256, %s3235, %s3221, 128, 128, 8
        $region56: #{tpu_custom_call.1} parent=47 // pred_fallthru
          _
      $region48: #{tpu_custom_call.1} parent=5 // pred_fallthru
        _
      %p3243 = scmp.le.s32.totalorder 2, %s17
      // Predicated region
      $region57: #{tpu_custom_call.1} parent=5 // pred_check
        %p3244 = pneg %p3243
      $region58: #{tpu_custom_call.1} parent=5 // pred_check_branch
        %3246 = sbr.rel (%p3244) target = $region60
      $region59: #{tpu_custom_call.1} parent=5 // pred_region
        %s3247 = ssub.s32 %s17, 2
        // Predicated region
        $region61: #{tpu_custom_call.1} parent=59 // pred_check
          %p3248 = pneg %p214
        $region62: #{tpu_custom_call.1} parent=59 // pred_check_branch
          %3250 = sbr.rel (%p3248) target = $region64
        $region63: #{tpu_custom_call.1} parent=59 // pred_region
          %s3251 = sand.u32 %s199, 1
          %s3252 = scalar_lea.sflag [#allocation6], %s3251
          %s3253 = sand.u32 %s199, 1
          %s3254 = smul.addr %s3253, 16
          %s3255 = scalar_lea.vmem [#allocation7], %s3254
          %3256 = dma.done %s3252, 256
        $region64: #{tpu_custom_call.1} parent=59 // pred_fallthru
          _
      $region60: #{tpu_custom_call.1} parent=5 // pred_fallthru
        _
    $region6: #{tpu_custom_call.1} parent=1 // loop_footer
      %s21 = sadd.s32 1, %s17
    $region7: #{tpu_custom_call.1} parent=1 // loop_footer_branch
      %16 = sbr.rel target = $region3
    $region8: #{tpu_custom_call.1} parent=1 // loop_exit
      _
    %3257 = vsyncpa [#allocation5], 1
    %s3258 = scalar_lea.sflag [#allocation5], 1
    %3259 = vsyncpa %s3258, 1
    %3260 = vsyncpa [#allocation6], 1
    %s3261 = scalar_lea.sflag [#allocation6], 1
    %3262 = vsyncpa %s3261, 1

</llo_original>
